<compile_context>
chip_gen: v6e
topology: v6e:2x2x1
jax: 0.10.0
libtpu: 0.0.40
codegen_flags: <defaults>
</compile_context>

<pallas_src>
import math

import jax
import jax.numpy as jnp
from jax import lax
from jax.experimental import pallas as pl
from jax.experimental.pallas import tpu as pltpu

# Above the 16/32 MiB default scoped limits on v5e/v6e/v7x, below v7x's 64 MiB
# physical VMEM (perf feedback: set an explicit limit once tiles are enlarged).
_VMEM_LIMIT_BYTES = 48 * 1024 * 1024


def _round_up(x, m):
    return ((x + m - 1) // m) * m


# ---------------------------------------------------------------------------
# Kernel A: self-attention (one head per grid step) + residual + LayerNorm1.
# ---------------------------------------------------------------------------
def _attn_norm1_kernel(x_ref, wq_ref, wk_ref, wv_ref, bq_ref, bk_ref, bv_ref,
                       wo_ref, bo_ref, g_ref, beta_ref, y_ref, acc_ref):
    f32 = jnp.float32
    h_idx = pl.program_id(1)
    n_heads = pl.num_programs(1)

    x = x_ref[0]                                                  # [S, E] bf16

    q = jnp.dot(x, wq_ref[0], preferred_element_type=f32) + bq_ref[0].astype(f32)
    k = jnp.dot(x, wk_ref[0], preferred_element_type=f32) + bk_ref[0].astype(f32)
    v = jnp.dot(x, wv_ref[0], preferred_element_type=f32) + bv_ref[0].astype(f32)

    head_dim = q.shape[-1]
    scale = 1.0 / math.sqrt(head_dim)

    # scores = q @ k^T (contract the head dim of both operands), f32 accum.
    s = lax.dot_general(q.astype(jnp.bfloat16), k.astype(jnp.bfloat16),
                        dimension_numbers=(((1,), (1,)), ((), ())),
                        preferred_element_type=f32) * scale       # [S, S]
    s = s - jnp.max(s, axis=-1, keepdims=True)
    p = jnp.exp(s)
    p = p / jnp.sum(p, axis=-1, keepdims=True)

    ctx = jnp.dot(p.astype(jnp.bfloat16), v.astype(jnp.bfloat16),
                  preferred_element_type=f32)                     # [S, Dh]
    # Partial output projection for this head (sums over heads == full proj).
    part = jnp.dot(ctx.astype(jnp.bfloat16), wo_ref[0],
                   preferred_element_type=f32)                    # [S, E]

    @pl.when(h_idx == 0)
    def _():
        acc_ref[...] = jnp.zeros_like(acc_ref)

    acc_ref[...] += part

    @pl.when(h_idx == n_heads - 1)
    def _():
        y = x.astype(f32) + acc_ref[...] + bo_ref[...].astype(f32)
        mu = jnp.mean(y, axis=-1, keepdims=True)
        var = jnp.mean((y - mu) ** 2, axis=-1, keepdims=True)
        yn = (y - mu) * lax.rsqrt(var + 1e-5)
        y_ref[0] = (yn * g_ref[...].astype(f32)
                    + beta_ref[...].astype(f32)).astype(y_ref.dtype)


# ---------------------------------------------------------------------------
# Kernel B: FFN (fc1 -> GELU -> fc2) + residual + LayerNorm2, row-tiled.
# ---------------------------------------------------------------------------
def _ffn_norm2_kernel(y_ref, w1_ref, b1_ref, w2_ref, b2_ref, g_ref, beta_ref, o_ref):
    f32 = jnp.float32
    y = y_ref[...]                                                # [tm, E] bf16

    # fc1: bf16 MXU with f32 accumulation; stay in f32 through bias + GELU
    # (the bf16 round-trip of the previous version is removed, per feedback).
    h = jnp.dot(y, w1_ref[...], preferred_element_type=f32) + b1_ref[...].astype(f32)
    # tanh-approximate GELU -> EUP slot (perf feedback); one bf16 cast before fc2.
    h = jax.nn.gelu(h, approximate=True).astype(jnp.bfloat16)

    o = jnp.dot(h, w2_ref[...], preferred_element_type=f32) + b2_ref[...].astype(f32)

    # residual + LayerNorm2 fused in (f32 statistics).
    z = y.astype(f32) + o
    mu = jnp.mean(z, axis=-1, keepdims=True)
    var = jnp.mean((z - mu) ** 2, axis=-1, keepdims=True)
    zn = (z - mu) * lax.rsqrt(var + 1e-5)
    o_ref[...] = (zn * g_ref[...].astype(f32)
                  + beta_ref[...].astype(f32)).astype(o_ref.dtype)


# ---------------------------------------------------------------------------
# Wrappers.
# ---------------------------------------------------------------------------
def _encoder_forward(x, p, *, num_heads, tm, single_buffer_weights):
    B, S, E = x.shape
    H = num_heads
    assert E % H == 0
    Dh = E // H
    Hff = p["w1"].shape[0]
    dt = x.dtype

    def const_spec(shape, index_map):
        # Constant-index weight/bias blocks: single-buffer them so VMEM is not
        # spent on a useless second copy (perf feedback, matters at real sizes).
        if single_buffer_weights:
            return pl.BlockSpec(shape, index_map, pipeline_mode=pl.Buffered(1))
        return pl.BlockSpec(shape, index_map)

    # ---- wrapper-side layout plumbing for attention (plain XLA ops) ----------
    wq = p["in_w"][0 * E:1 * E]                       # [E, E] (rows = out feat)
    wk = p["in_w"][1 * E:2 * E]
    wv = p["in_w"][2 * E:3 * E]
    wq_h = wq.reshape(H, Dh, E).transpose(0, 2, 1)    # [H, E, Dh]
    wk_h = wk.reshape(H, Dh, E).transpose(0, 2, 1)
    wv_h = wv.reshape(H, Dh, E).transpose(0, 2, 1)
    bq_h = p["in_b"][0 * E:1 * E].reshape(H, 1, Dh)
    bk_h = p["in_b"][1 * E:2 * E].reshape(H, 1, Dh)
    bv_h = p["in_b"][2 * E:3 * E].reshape(H, 1, Dh)
    wo_h = p["out_w"].T.reshape(H, Dh, E)             # [H, Dh, E]
    bo = p["out_b"].reshape(1, E)
    g1 = p["g1"].reshape(1, E)
    beta1 = p["b1"].reshape(1, E)

    head_w_in = pl.BlockSpec((1, E, Dh), lambda b, h: (h, 0, 0))
    head_b_in = pl.BlockSpec((1, 1, Dh), lambda b, h: (h, 0, 0))
    head_w_out = pl.BlockSpec((1, Dh, E), lambda b, h: (h, 0, 0))

    y1 = pl.pallas_call(
        _attn_norm1_kernel,
        out_shape=jax.ShapeDtypeStruct((B, S, E), dt),
        grid_spec=pltpu.PrefetchScalarGridSpec(
            num_scalar_prefetch=0,
            grid=(B, H),                                # head axis = reduction (last)
            in_specs=[
                pl.BlockSpec((1, S, E), lambda b, h: (b, 0, 0)),   # x
                head_w_in, head_w_in, head_w_in,                   # Wq^T, Wk^T, Wv^T
                head_b_in, head_b_in, head_b_in,                   # bq, bk, bv
                head_w_out,                                        # Wo^T row-block
                const_spec((1, E), lambda b, h: (0, 0)),           # bo
                const_spec((1, E), lambda b, h: (0, 0)),           # gamma1
                const_spec((1, E), lambda b, h: (0, 0)),           # beta1
            ],
            out_specs=pl.BlockSpec((1, S, E), lambda b, h: (b, 0, 0)),
            scratch_shapes=[pltpu.VMEM((S, E), jnp.float32)],
        ),
        compiler_params=pltpu.CompilerParams(
            dimension_semantics=("parallel", "arbitrary"),
            vmem_limit_bytes=_VMEM_LIMIT_BYTES,
        ),
    )(x, wq_h, wk_h, wv_h, bq_h, bk_h, bv_h, wo_h, bo, g1, beta1)

    # ---- FFN + residual + LayerNorm2 over row tiles of tokens ----------------
    T = B * S
    y1_2d = y1.reshape(T, E)
    T_pad = _round_up(T, 8)
    tm_eff = tm
    if T_pad <= tm_eff:
        tm_eff = T_pad                   # toy shapes: single grid step
    else:
        T_pad = _round_up(T, tm_eff)     # ragged T: pad rows, slice afterwards
    if T_pad != T:
        y1_2d = jnp.pad(y1_2d, ((0, T_pad - T), (0, 0)))

    w1_t = p["w1"].T                     # [E, Hff]
    fb1 = p["fb1"].reshape(1, Hff)
    w2_t = p["w2"].T                     # [Hff, E]
    fb2 = p["fb2"].reshape(1, E)
    g2 = p["g2"].reshape(1, E)
    beta2 = p["b2"].reshape(1, E)

    # Note: for very large hidden sizes (weights no longer VMEM-resident) the
    # right extension is a second "arbitrary" grid axis over the hidden dim
    # with an f32 accumulator; not needed at these sizes.
    out2d = pl.pallas_call(
        _ffn_norm2_kernel,
        out_shape=jax.ShapeDtypeStruct((T_pad, E), dt),
        grid_spec=pltpu.PrefetchScalarGridSpec(
            num_scalar_prefetch=0,
            grid=(T_pad // tm_eff,),
            in_specs=[
                pl.BlockSpec((tm_eff, E), lambda i: (i, 0)),       # y1 row tile
                const_spec((E, Hff), lambda i: (0, 0)),            # W1^T (resident)
                const_spec((1, Hff), lambda i: (0, 0)),            # b1
                const_spec((Hff, E), lambda i: (0, 0)),            # W2^T (resident)
                const_spec((1, E), lambda i: (0, 0)),              # b2
                const_spec((1, E), lambda i: (0, 0)),              # gamma2
                const_spec((1, E), lambda i: (0, 0)),              # beta2
            ],
            out_specs=pl.BlockSpec((tm_eff, E), lambda i: (i, 0)),
        ),
        compiler_params=pltpu.CompilerParams(
            dimension_semantics=("parallel",),
            vmem_limit_bytes=_VMEM_LIMIT_BYTES,
        ),
    )(y1_2d, w1_t, fb1, w2_t, fb2, g2, beta2)

    return out2d[:T].reshape(B, S, E)


def encoder_forward(x, params, *, num_heads, tm=256):
    try:
        return _encoder_forward(x, params, num_heads=num_heads, tm=tm,
                                single_buffer_weights=True)
    except Exception:
        # If this JAX build rejects pipeline_mode=pl.Buffered(1), fall back to
        # default double-buffering (correctness identical).
        return _encoder_forward(x, params, num_heads=num_heads, tm=tm,
                                single_buffer_weights=False)


# ---------------------------------------------------------------------------
# Pure-JAX f32 reference (PyTorch semantics: exact erf GELU, eps=1e-5).
# ---------------------------------------------------------------------------
def encoder_reference(x, p, *, num_heads):
    f32 = jnp.float32
    B, S, E = x.shape
    H = num_heads
    Dh = E // H
    xf = x.astype(f32)

    qkv = jnp.einsum("bse,fe->bsf", xf, p["in_w"].astype(f32)) + p["in_b"].astype(f32)
    q, k, v = jnp.split(qkv, 3, axis=-1)

    def split_heads(t):
        return t.reshape(B, S, H, Dh).transpose(0, 2, 1, 3)

    q, k, v = split_heads(q), split_heads(k), split_heads(v)
    s = jnp.einsum("bhqd,bhkd->bhqk", q, k) / math.sqrt(Dh)
    a = jax.nn.softmax(s, axis=-1)
    ctx = jnp.einsum("bhqk,bhkd->bhqd", a, v)
    ctx = ctx.transpose(0, 2, 1, 3).reshape(B, S, E)
    attn = jnp.einsum("bse,oe->bso", ctx, p["out_w"].astype(f32)) + p["out_b"].astype(f32)

    def layer_norm(z, g, b):
        mu = z.mean(-1, keepdims=True)
        var = ((z - mu) ** 2).mean(-1, keepdims=True)
        return (z - mu) * lax.rsqrt(var + 1e-5) * g.astype(f32) + b.astype(f32)

    y1 = layer_norm(xf + attn, p["g1"], p["b1"])

    h = jnp.einsum("bse,fe->bsf", y1, p["w1"].astype(f32)) + p["fb1"].astype(f32)
    h = 0.5 * h * (1.0 + lax.erf(h / math.sqrt(2.0)))      # exact GELU
    f = jnp.einsum("bsf,ef->bse", h, p["w2"].astype(f32)) + p["fb2"].astype(f32)
    y2 = layer_norm(y1 + f, p["g2"], p["b2"])
    return y2


if __name__ == "__main__":
    # Module defaults: embed_dim=512, num_heads=8, inner_scale=4; small batch/seq.
    B, S = 2, 8
    E, H = 512, 8
    Hff = 4 * E
    dt = jnp.bfloat16

    key = jax.random.PRNGKey(0)
    ks = jax.random.split(key, 16)

    def u(k, shape, lim):
        return jax.random.uniform(k, shape, minval=-lim, maxval=lim).astype(dt)

    lim_e = 1.0 / math.sqrt(E)
    lim_h = 1.0 / math.sqrt(Hff)
    params = dict(
        in_w=u(ks[0], (3 * E, E), lim_e),     # MHA in_proj_weight [3E, E]
        in_b=u(ks[1], (3 * E,), lim_e),       # MHA in_proj_bias   [3E]
        out_w=u(ks[2], (E, E), lim_e),        # MHA out_proj.weight
        out_b=u(ks[3], (E,), lim_e),          # MHA out_proj.bias
        g1=(1.0 + 0.2 * jax.random.normal(ks[4], (E,))).astype(dt),   # norm1 gamma
        b1=(0.1 * jax.random.normal(ks[5], (E,))).astype(dt),         # norm1 beta
        w1=u(ks[6], (Hff, E), lim_e),         # FFN fc1 weight [Hff, E]
        fb1=u(ks[7], (Hff,), lim_e),          # FFN fc1 bias
        w2=u(ks[8], (E, Hff), lim_h),         # FFN fc2 weight [E, Hff]
        fb2=u(ks[9], (E,), lim_h),            # FFN fc2 bias
        g2=(1.0 + 0.2 * jax.random.normal(ks[10], (E,))).astype(dt),  # norm2 gamma
        b2=(0.1 * jax.random.normal(ks[11], (E,))).astype(dt),        # norm2 beta
    )
    x = jax.random.normal(ks[12], (B, S, E), dtype=jnp.float32).astype(dt)

    out = encoder_forward(x, params, num_heads=H)
    out = jax.block_until_ready(out)

    ref = encoder_reference(x, params, num_heads=H)
    err = jnp.max(jnp.abs(out.astype(jnp.float32) - ref.astype(jnp.float32)))
    # bf16 end-to-end (bf16 params/activations, f32 accumulation) vs f32 reference.
    assert err <= 0.1, f"mismatch vs reference, max abs err = {err}"

    print("KERNEL_OK")
</pallas_src>

<mosaic_0001>
module attributes {stable_mosaic.version = 11 : i64} {
  func.func @_attn_norm1_kernel(%arg0: i32, %arg1: i32, %arg2: memref<1x8x512xbf16, #tpu.memory_space<vmem>>, %arg3: memref<1x512x64xbf16, #tpu.memory_space<vmem>>, %arg4: memref<1x512x64xbf16, #tpu.memory_space<vmem>>, %arg5: memref<1x512x64xbf16, #tpu.memory_space<vmem>>, %arg6: memref<1x1x64xbf16, #tpu.memory_space<vmem>>, %arg7: memref<1x1x64xbf16, #tpu.memory_space<vmem>>, %arg8: memref<1x1x64xbf16, #tpu.memory_space<vmem>>, %arg9: memref<1x64x512xbf16, #tpu.memory_space<vmem>>, %arg10: memref<1x512xbf16, #tpu.memory_space<vmem>>, %arg11: memref<1x512xbf16, #tpu.memory_space<vmem>>, %arg12: memref<1x512xbf16, #tpu.memory_space<vmem>>, %arg13: memref<1x8x512xbf16, #tpu.memory_space<vmem>>, %arg14: memref<8x512xf32, #tpu.memory_space<vmem>>) attributes {dimension_semantics = [#tpu.dimension_semantics<parallel>, #tpu.dimension_semantics<arbitrary>], iteration_bounds = array<i64: 2, 8>, scalar_prefetch = 0 : i64, scratch_operands = 1 : i64, tpu.core_type = #tpu.core_type<tc>, window_params = [{transform_indices = @transform_0, window_bounds = array<i64: 1, 8, 512>}, {transform_indices = @transform_1, window_bounds = array<i64: 1, 512, 64>}, {transform_indices = @transform_2, window_bounds = array<i64: 1, 512, 64>}, {transform_indices = @transform_3, window_bounds = array<i64: 1, 512, 64>}, {transform_indices = @transform_4, window_bounds = array<i64: 1, 1, 64>}, {transform_indices = @transform_5, window_bounds = array<i64: 1, 1, 64>}, {transform_indices = @transform_6, window_bounds = array<i64: 1, 1, 64>}, {transform_indices = @transform_7, window_bounds = array<i64: 1, 64, 512>}, {pipeline_mode = #tpu.pipeline_mode<synchronous>, transform_indices = @transform_8, window_bounds = array<i64: 1, 512>}, {pipeline_mode = #tpu.pipeline_mode<synchronous>, transform_indices = @transform_9, window_bounds = array<i64: 1, 512>}, {pipeline_mode = #tpu.pipeline_mode<synchronous>, transform_indices = @transform_10, window_bounds = array<i64: 1, 512>}, {transform_indices = @transform_11, window_bounds = array<i64: 1, 8, 512>}]} {
    %c0 = arith.constant 0 : index
    %c0_0 = arith.constant 0 : index
    %c0_1 = arith.constant 0 : index
    %0 = vector.load %arg2[%c0, %c0_0, %c0_1] : memref<1x8x512xbf16, #tpu.memory_space<vmem>>, vector<1x8x512xbf16>
    %1 = vector.shape_cast %0 : vector<1x8x512xbf16> to vector<8x512xbf16>
    %c0_2 = arith.constant 0 : index
    %c0_3 = arith.constant 0 : index
    %c0_4 = arith.constant 0 : index
    %2 = vector.load %arg3[%c0_2, %c0_3, %c0_4] : memref<1x512x64xbf16, #tpu.memory_space<vmem>>, vector<1x512x64xbf16>
    %3 = vector.shape_cast %2 : vector<1x512x64xbf16> to vector<512x64xbf16>
    %cst = arith.constant dense<0.000000e+00> : vector<8x64xf32>
    %4 = tpu.matmul %1, %3, %cst {dimension_numbers = #tpu.dot_dimension_numbers<[1], [0], [0], [1], [0, 0, 1, 1], [], []>} : vector<8x512xbf16>, vector<512x64xbf16>, vector<8x64xf32> -> vector<8x64xf32>
    %c0_5 = arith.constant 0 : index
    %c0_6 = arith.constant 0 : index
    %c0_7 = arith.constant 0 : index
    %5 = vector.load %arg6[%c0_5, %c0_6, %c0_7] : memref<1x1x64xbf16, #tpu.memory_space<vmem>>, vector<1x1x64xbf16>
    %6 = vector.shape_cast %5 : vector<1x1x64xbf16> to vector<1x64xbf16>
    %7 = arith.extf %6 : vector<1x64xbf16> to vector<1x64xf32>
    %8 = vector.broadcast %7 : vector<1x64xf32> to vector<8x64xf32>
    %9 = arith.addf %4, %8 : vector<8x64xf32>
    %c0_8 = arith.constant 0 : index
    %c0_9 = arith.constant 0 : index
    %c0_10 = arith.constant 0 : index
    %10 = vector.load %arg4[%c0_8, %c0_9, %c0_10] : memref<1x512x64xbf16, #tpu.memory_space<vmem>>, vector<1x512x64xbf16>
    %11 = vector.shape_cast %10 : vector<1x512x64xbf16> to vector<512x64xbf16>
    %cst_11 = arith.constant dense<0.000000e+00> : vector<8x64xf32>
    %12 = tpu.matmul %1, %11, %cst_11 {dimension_numbers = #tpu.dot_dimension_numbers<[1], [0], [0], [1], [0, 0, 1, 1], [], []>} : vector<8x512xbf16>, vector<512x64xbf16>, vector<8x64xf32> -> vector<8x64xf32>
    %c0_12 = arith.constant 0 : index
    %c0_13 = arith.constant 0 : index
    %c0_14 = arith.constant 0 : index
    %13 = vector.load %arg7[%c0_12, %c0_13, %c0_14] : memref<1x1x64xbf16, #tpu.memory_space<vmem>>, vector<1x1x64xbf16>
    %14 = vector.shape_cast %13 : vector<1x1x64xbf16> to vector<1x64xbf16>
    %15 = arith.extf %14 : vector<1x64xbf16> to vector<1x64xf32>
    %16 = vector.broadcast %15 : vector<1x64xf32> to vector<8x64xf32>
    %17 = arith.addf %12, %16 : vector<8x64xf32>
    %c0_15 = arith.constant 0 : index
    %c0_16 = arith.constant 0 : index
    %c0_17 = arith.constant 0 : index
    %18 = vector.load %arg5[%c0_15, %c0_16, %c0_17] : memref<1x512x64xbf16, #tpu.memory_space<vmem>>, vector<1x512x64xbf16>
    %19 = vector.shape_cast %18 : vector<1x512x64xbf16> to vector<512x64xbf16>
    %cst_18 = arith.constant dense<0.000000e+00> : vector<8x64xf32>
    %20 = tpu.matmul %1, %19, %cst_18 {dimension_numbers = #tpu.dot_dimension_numbers<[1], [0], [0], [1], [0, 0, 1, 1], [], []>} : vector<8x512xbf16>, vector<512x64xbf16>, vector<8x64xf32> -> vector<8x64xf32>
    %c0_19 = arith.constant 0 : index
    %c0_20 = arith.constant 0 : index
    %c0_21 = arith.constant 0 : index
    %21 = vector.load %arg8[%c0_19, %c0_20, %c0_21] : memref<1x1x64xbf16, #tpu.memory_space<vmem>>, vector<1x1x64xbf16>
    %22 = vector.shape_cast %21 : vector<1x1x64xbf16> to vector<1x64xbf16>
    %23 = arith.extf %22 : vector<1x64xbf16> to vector<1x64xf32>
    %24 = vector.broadcast %23 : vector<1x64xf32> to vector<8x64xf32>
    %25 = arith.addf %20, %24 : vector<8x64xf32>
    %26 = arith.truncf %9 : vector<8x64xf32> to vector<8x64xbf16>
    %27 = arith.truncf %17 : vector<8x64xf32> to vector<8x64xbf16>
    %cst_22 = arith.constant dense<0.000000e+00> : vector<8x8xf32>
    %28 = tpu.matmul %26, %27, %cst_22 {dimension_numbers = #tpu.dot_dimension_numbers<[1], [1], [0], [0], [0, 0, 1, 0], [], []>} : vector<8x64xbf16>, vector<8x64xbf16>, vector<8x8xf32> -> vector<8x8xf32>
    %cst_23 = arith.constant 1.250000e-01 : f32
    %29 = vector.broadcast %cst_23 : f32 to vector<8x8xf32>
    %30 = arith.mulf %28, %29 : vector<8x8xf32>
    %cst_24 = arith.constant dense<0xFF800000> : vector<8xf32>
    %31 = vector.multi_reduction <maximumf>, %30, %cst_24 [1] : vector<8x8xf32> to vector<8xf32>
    %32 = vector.shape_cast %31 : vector<8xf32> to vector<8x1xf32>
    %33 = vector.broadcast %32 : vector<8x1xf32> to vector<8x8xf32>
    %34 = arith.subf %30, %33 : vector<8x8xf32>
    %35 = math.exp %34 : vector<8x8xf32>
    %cst_25 = arith.constant dense<0.000000e+00> : vector<8xf32>
    %36 = vector.multi_reduction <add>, %35, %cst_25 [1] : vector<8x8xf32> to vector<8xf32>
    %37 = vector.shape_cast %36 : vector<8xf32> to vector<8x1xf32>
    %38 = vector.broadcast %37 : vector<8x1xf32> to vector<8x8xf32>
    %39 = arith.divf %35, %38 : vector<8x8xf32>
    %40 = arith.truncf %39 : vector<8x8xf32> to vector<8x8xbf16>
    %41 = arith.truncf %25 : vector<8x64xf32> to vector<8x64xbf16>
    %cst_26 = arith.constant dense<0.000000e+00> : vector<8x64xf32>
    %42 = tpu.matmul %40, %41, %cst_26 {dimension_numbers = #tpu.dot_dimension_numbers<[1], [0], [0], [1], [0, 0, 1, 1], [], []>} : vector<8x8xbf16>, vector<8x64xbf16>, vector<8x64xf32> -> vector<8x64xf32>
    %43 = arith.truncf %42 : vector<8x64xf32> to vector<8x64xbf16>
    %c0_27 = arith.constant 0 : index
    %c0_28 = arith.constant 0 : index
    %c0_29 = arith.constant 0 : index
    %44 = vector.load %arg9[%c0_27, %c0_28, %c0_29] : memref<1x64x512xbf16, #tpu.memory_space<vmem>>, vector<1x64x512xbf16>
    %45 = vector.shape_cast %44 : vector<1x64x512xbf16> to vector<64x512xbf16>
    %cst_30 = arith.constant dense<0.000000e+00> : vector<8x512xf32>
    %46 = tpu.matmul %43, %45, %cst_30 {dimension_numbers = #tpu.dot_dimension_numbers<[1], [0], [0], [1], [0, 0, 1, 1], [], []>} : vector<8x64xbf16>, vector<64x512xbf16>, vector<8x512xf32> -> vector<8x512xf32>
    %c0_i32 = arith.constant 0 : i32
    %47 = arith.cmpi eq, %arg1, %c0_i32 : i32
    %48 = arith.extui %47 : i1 to i32
    %c0_i32_31 = arith.constant 0 : i32
    %49 = arith.cmpi ne, %48, %c0_i32_31 : i32
    scf.if %49 {
      %cst_37 = arith.constant 0.000000e+00 : f32
      %56 = vector.broadcast %cst_37 : f32 to vector<8x512xf32>
      %c0_38 = arith.constant 0 : index
      %c0_39 = arith.constant 0 : index
      %57 = vector.load %arg14[%c0_38, %c0_39] : memref<8x512xf32, #tpu.memory_space<vmem>>, vector<8x512xf32>
      tpu.vector_store %arg14[%c0_38, %c0_39], %56 {strides = array<i32>} : memref<8x512xf32, #tpu.memory_space<vmem>>, vector<8x512xf32>,
    } else {
    }
    %c0_32 = arith.constant 0 : index
    %c0_33 = arith.constant 0 : index
    %50 = vector.load %arg14[%c0_32, %c0_33] : memref<8x512xf32, #tpu.memory_space<vmem>>, vector<8x512xf32>
    %51 = arith.addf %50, %46 : vector<8x512xf32>
    %c0_34 = arith.constant 0 : index
    %c0_35 = arith.constant 0 : index
    %52 = vector.load %arg14[%c0_34, %c0_35] : memref<8x512xf32, #tpu.memory_space<vmem>>, vector<8x512xf32>
    tpu.vector_store %arg14[%c0_34, %c0_35], %51 {strides = array<i32>} : memref<8x512xf32, #tpu.memory_space<vmem>>, vector<8x512xf32>,
    %c7_i32 = arith.constant 7 : i32
    %53 = arith.cmpi eq, %arg1, %c7_i32 : i32
    %54 = arith.extui %53 : i1 to i32
    %c0_i32_36 = arith.constant 0 : i32
    %55 = arith.cmpi ne, %54, %c0_i32_36 : i32
    scf.if %55 {
      %56 = arith.extf %1 : vector<8x512xbf16> to vector<8x512xf32>
      %c0_37 = arith.constant 0 : index
      %c0_38 = arith.constant 0 : index
      %57 = vector.load %arg14[%c0_37, %c0_38] : memref<8x512xf32, #tpu.memory_space<vmem>>, vector<8x512xf32>
      %58 = arith.addf %56, %57 : vector<8x512xf32>
      %c0_39 = arith.constant 0 : index
      %c0_40 = arith.constant 0 : index
      %59 = vector.load %arg10[%c0_39, %c0_40] : memref<1x512xbf16, #tpu.memory_space<vmem>>, vector<1x512xbf16>
      %60 = arith.extf %59 : vector<1x512xbf16> to vector<1x512xf32>
      %61 = vector.broadcast %60 : vector<1x512xf32> to vector<8x512xf32>
      %62 = arith.addf %58, %61 : vector<8x512xf32>
      %cst_41 = arith.constant dense<0.000000e+00> : vector<8xf32>
      %63 = vector.multi_reduction <add>, %62, %cst_41 [1] : vector<8x512xf32> to vector<8xf32>
      %64 = vector.shape_cast %63 : vector<8xf32> to vector<8x1xf32>
      %cst_42 = arith.constant 5.120000e+02 : f32
      %65 = vector.broadcast %cst_42 : f32 to vector<8x1xf32>
      %66 = arith.divf %64, %65 : vector<8x1xf32>
      %67 = vector.broadcast %66 : vector<8x1xf32> to vector<8x512xf32>
      %68 = arith.subf %62, %67 : vector<8x512xf32>
      %69 = arith.mulf %68, %68 : vector<8x512xf32>
      %cst_43 = arith.constant dense<0.000000e+00> : vector<8xf32>
      %70 = vector.multi_reduction <add>, %69, %cst_43 [1] : vector<8x512xf32> to vector<8xf32>
      %71 = vector.shape_cast %70 : vector<8xf32> to vector<8x1xf32>
      %cst_44 = arith.constant 5.120000e+02 : f32
      %72 = vector.broadcast %cst_44 : f32 to vector<8x1xf32>
      %73 = arith.divf %71, %72 : vector<8x1xf32>
      %74 = vector.broadcast %66 : vector<8x1xf32> to vector<8x512xf32>
      %75 = arith.subf %62, %74 : vector<8x512xf32>
      %cst_45 = arith.constant 9.99999974E-6 : f32
      %76 = vector.broadcast %cst_45 : f32 to vector<8x1xf32>
      %77 = arith.addf %73, %76 : vector<8x1xf32>
      %78 = math.rsqrt %77 : vector<8x1xf32>
      %79 = vector.broadcast %78 : vector<8x1xf32> to vector<8x512xf32>
      %80 = arith.mulf %75, %79 : vector<8x512xf32>
      %c0_46 = arith.constant 0 : index
      %c0_47 = arith.constant 0 : index
      %81 = vector.load %arg11[%c0_46, %c0_47] : memref<1x512xbf16, #tpu.memory_space<vmem>>, vector<1x512xbf16>
      %82 = arith.extf %81 : vector<1x512xbf16> to vector<1x512xf32>
      %83 = vector.broadcast %82 : vector<1x512xf32> to vector<8x512xf32>
      %84 = arith.mulf %80, %83 : vector<8x512xf32>
      %c0_48 = arith.constant 0 : index
      %c0_49 = arith.constant 0 : index
      %85 = vector.load %arg12[%c0_48, %c0_49] : memref<1x512xbf16, #tpu.memory_space<vmem>>, vector<1x512xbf16>
      %86 = arith.extf %85 : vector<1x512xbf16> to vector<1x512xf32>
      %87 = vector.broadcast %86 : vector<1x512xf32> to vector<8x512xf32>
      %88 = arith.addf %84, %87 : vector<8x512xf32>
      %89 = arith.truncf %88 : vector<8x512xf32> to vector<8x512xbf16>
      %c0_50 = arith.constant 0 : index
      %c0_51 = arith.constant 0 : index
      %c0_52 = arith.constant 0 : index
      %90 = vector.load %arg13[%c0_50, %c0_51, %c0_52] : memref<1x8x512xbf16, #tpu.memory_space<vmem>>, vector<1x8x512xbf16>
      %91 = vector.shape_cast %90 : vector<1x8x512xbf16> to vector<8x512xbf16>
      %92 = vector.shape_cast %89 : vector<8x512xbf16> to vector<1x8x512xbf16>
      tpu.vector_store %arg13[%c0_50, %c0_51, %c0_52], %92 {strides = array<i32>} : memref<1x8x512xbf16, #tpu.memory_space<vmem>>, vector<1x8x512xbf16>,
    } else {
    }
    return
  }
  func.func @transform_0(%arg0: i32, %arg1: i32) -> (i32, i32, i32) {
    %c0_i32 = arith.constant 0 : i32
    %c0_i32_0 = arith.constant 0 : i32
    %c0_i32_1 = arith.constant 0 : i32
    return %arg0, %c0_i32, %c0_i32_0 : i32, i32, i32
  }
  func.func @transform_1(%arg0: i32, %arg1: i32) -> (i32, i32, i32) {
    %c0_i32 = arith.constant 0 : i32
    %c0_i32_0 = arith.constant 0 : i32
    %c0_i32_1 = arith.constant 0 : i32
    return %arg1, %c0_i32, %c0_i32_0 : i32, i32, i32
  }
  func.func @transform_2(%arg0: i32, %arg1: i32) -> (i32, i32, i32) {
    %c0_i32 = arith.constant 0 : i32
    %c0_i32_0 = arith.constant 0 : i32
    %c0_i32_1 = arith.constant 0 : i32
    return %arg1, %c0_i32, %c0_i32_0 : i32, i32, i32
  }
  func.func @transform_3(%arg0: i32, %arg1: i32) -> (i32, i32, i32) {
    %c0_i32 = arith.constant 0 : i32
    %c0_i32_0 = arith.constant 0 : i32
    %c0_i32_1 = arith.constant 0 : i32
    return %arg1, %c0_i32, %c0_i32_0 : i32, i32, i32
  }
  func.func @transform_4(%arg0: i32, %arg1: i32) -> (i32, i32, i32) {
    %c0_i32 = arith.constant 0 : i32
    %c0_i32_0 = arith.constant 0 : i32
    %c0_i32_1 = arith.constant 0 : i32
    return %arg1, %c0_i32, %c0_i32_0 : i32, i32, i32
  }
  func.func @transform_5(%arg0: i32, %arg1: i32) -> (i32, i32, i32) {
    %c0_i32 = arith.constant 0 : i32
    %c0_i32_0 = arith.constant 0 : i32
    %c0_i32_1 = arith.constant 0 : i32
    return %arg1, %c0_i32, %c0_i32_0 : i32, i32, i32
  }
  func.func @transform_6(%arg0: i32, %arg1: i32) -> (i32, i32, i32) {
    %c0_i32 = arith.constant 0 : i32
    %c0_i32_0 = arith.constant 0 : i32
    %c0_i32_1 = arith.constant 0 : i32
    return %arg1, %c0_i32, %c0_i32_0 : i32, i32, i32
  }
  func.func @transform_7(%arg0: i32, %arg1: i32) -> (i32, i32, i32) {
    %c0_i32 = arith.constant 0 : i32
    %c0_i32_0 = arith.constant 0 : i32
    %c0_i32_1 = arith.constant 0 : i32
    return %arg1, %c0_i32, %c0_i32_0 : i32, i32, i32
  }
  func.func @transform_8(%arg0: i32, %arg1: i32) -> (i32, i32) {
    %c0_i32 = arith.constant 0 : i32
    %c0_i32_0 = arith.constant 0 : i32
    %c0_i32_1 = arith.constant 0 : i32
    return %c0_i32, %c0_i32_0 : i32, i32
  }
  func.func @transform_9(%arg0: i32, %arg1: i32) -> (i32, i32) {
    %c0_i32 = arith.constant 0 : i32
    %c0_i32_0 = arith.constant 0 : i32
    %c0_i32_1 = arith.constant 0 : i32
    return %c0_i32, %c0_i32_0 : i32, i32
  }
  func.func @transform_10(%arg0: i32, %arg1: i32) -> (i32, i32) {
    %c0_i32 = arith.constant 0 : i32
    %c0_i32_0 = arith.constant 0 : i32
    %c0_i32_1 = arith.constant 0 : i32
    return %c0_i32, %c0_i32_0 : i32, i32
  }
  func.func @transform_11(%arg0: i32, %arg1: i32) -> (i32, i32, i32) {
    %c0_i32 = arith.constant 0 : i32
    %c0_i32_0 = arith.constant 0 : i32
    %c0_i32_1 = arith.constant 0 : i32
    return %arg0, %c0_i32, %c0_i32_0 : i32, i32, i32
  }
}

module attributes {stable_mosaic.version = 11 : i64} {
  func.func @_attn_norm1_kernel(%arg0: i32, %arg1: i32, %arg2: memref<1x8x512xbf16, #tpu.memory_space<vmem>>, %arg3: memref<1x512x64xbf16, #tpu.memory_space<vmem>>, %arg4: memref<1x512x64xbf16, #tpu.memory_space<vmem>>, %arg5: memref<1x512x64xbf16, #tpu.memory_space<vmem>>, %arg6: memref<1x1x64xbf16, #tpu.memory_space<vmem>>, %arg7: memref<1x1x64xbf16, #tpu.memory_space<vmem>>, %arg8: memref<1x1x64xbf16, #tpu.memory_space<vmem>>, %arg9: memref<1x64x512xbf16, #tpu.memory_space<vmem>>, %arg10: memref<1x512xbf16, #tpu.memory_space<vmem>>, %arg11: memref<1x512xbf16, #tpu.memory_space<vmem>>, %arg12: memref<1x512xbf16, #tpu.memory_space<vmem>>, %arg13: memref<1x8x512xbf16, #tpu.memory_space<vmem>>, %arg14: memref<8x512xf32, #tpu.memory_space<vmem>>) attributes {dimension_semantics = [#tpu.dimension_semantics<parallel>, #tpu.dimension_semantics<arbitrary>], iteration_bounds = array<i64: 2, 8>, scalar_prefetch = 0 : i64, scratch_operands = 1 : i64, tpu.core_type = #tpu.core_type<tc>, window_params = [{transform_indices = @transform_0, window_bounds = array<i64: 1, 8, 512>}, {transform_indices = @transform_1, window_bounds = array<i64: 1, 512, 64>}, {transform_indices = @transform_2, window_bounds = array<i64: 1, 512, 64>}, {transform_indices = @transform_3, window_bounds = array<i64: 1, 512, 64>}, {transform_indices = @transform_4, window_bounds = array<i64: 1, 1, 64>}, {transform_indices = @transform_5, window_bounds = array<i64: 1, 1, 64>}, {transform_indices = @transform_6, window_bounds = array<i64: 1, 1, 64>}, {transform_indices = @transform_7, window_bounds = array<i64: 1, 64, 512>}, {pipeline_mode = #tpu.pipeline_mode<synchronous>, transform_indices = @transform_8, window_bounds = array<i64: 1, 512>}, {pipeline_mode = #tpu.pipeline_mode<synchronous>, transform_indices = @transform_9, window_bounds = array<i64: 1, 512>}, {pipeline_mode = #tpu.pipeline_mode<synchronous>, transform_indices = @transform_10, window_bounds = array<i64: 1, 512>}, {transform_indices = @transform_11, window_bounds = array<i64: 1, 8, 512>}]} {
    %c0 = arith.constant 0 : index
    %c0_0 = arith.constant 0 : index
    %c0_1 = arith.constant 0 : index
    %0 = vector.load %arg2[%c0, %c0_0, %c0_1] : memref<1x8x512xbf16, #tpu.memory_space<vmem>>, vector<1x8x512xbf16>
    %1 = vector.shape_cast %0 : vector<1x8x512xbf16> to vector<8x512xbf16>
    %c0_2 = arith.constant 0 : index
    %c0_3 = arith.constant 0 : index
    %c0_4 = arith.constant 0 : index
    %2 = vector.load %arg3[%c0_2, %c0_3, %c0_4] : memref<1x512x64xbf16, #tpu.memory_space<vmem>>, vector<1x512x64xbf16>
    %3 = vector.shape_cast %2 : vector<1x512x64xbf16> to vector<512x64xbf16>
    %cst = arith.constant dense<0.000000e+00> : vector<8x64xf32>
    %4 = tpu.matmul %1, %3, %cst {dimension_numbers = #tpu.dot_dimension_numbers<[1], [0], [0], [1], [0, 0, 1, 1], [], []>} : vector<8x512xbf16>, vector<512x64xbf16>, vector<8x64xf32> -> vector<8x64xf32>
    %c0_5 = arith.constant 0 : index
    %c0_6 = arith.constant 0 : index
    %c0_7 = arith.constant 0 : index
    %5 = vector.load %arg6[%c0_5, %c0_6, %c0_7] : memref<1x1x64xbf16, #tpu.memory_space<vmem>>, vector<1x1x64xbf16>
    %6 = vector.shape_cast %5 : vector<1x1x64xbf16> to vector<1x64xbf16>
    %7 = arith.extf %6 : vector<1x64xbf16> to vector<1x64xf32>
    %8 = vector.broadcast %7 : vector<1x64xf32> to vector<8x64xf32>
    %9 = arith.addf %4, %8 : vector<8x64xf32>
    %c0_8 = arith.constant 0 : index
    %c0_9 = arith.constant 0 : index
    %c0_10 = arith.constant 0 : index
    %10 = vector.load %arg4[%c0_8, %c0_9, %c0_10] : memref<1x512x64xbf16, #tpu.memory_space<vmem>>, vector<1x512x64xbf16>
    %11 = vector.shape_cast %10 : vector<1x512x64xbf16> to vector<512x64xbf16>
    %cst_11 = arith.constant dense<0.000000e+00> : vector<8x64xf32>
    %12 = tpu.matmul %1, %11, %cst_11 {dimension_numbers = #tpu.dot_dimension_numbers<[1], [0], [0], [1], [0, 0, 1, 1], [], []>} : vector<8x512xbf16>, vector<512x64xbf16>, vector<8x64xf32> -> vector<8x64xf32>
    %c0_12 = arith.constant 0 : index
    %c0_13 = arith.constant 0 : index
    %c0_14 = arith.constant 0 : index
    %13 = vector.load %arg7[%c0_12, %c0_13, %c0_14] : memref<1x1x64xbf16, #tpu.memory_space<vmem>>, vector<1x1x64xbf16>
    %14 = vector.shape_cast %13 : vector<1x1x64xbf16> to vector<1x64xbf16>
    %15 = arith.extf %14 : vector<1x64xbf16> to vector<1x64xf32>
    %16 = vector.broadcast %15 : vector<1x64xf32> to vector<8x64xf32>
    %17 = arith.addf %12, %16 : vector<8x64xf32>
    %c0_15 = arith.constant 0 : index
    %c0_16 = arith.constant 0 : index
    %c0_17 = arith.constant 0 : index
    %18 = vector.load %arg5[%c0_15, %c0_16, %c0_17] : memref<1x512x64xbf16, #tpu.memory_space<vmem>>, vector<1x512x64xbf16>
    %19 = vector.shape_cast %18 : vector<1x512x64xbf16> to vector<512x64xbf16>
    %cst_18 = arith.constant dense<0.000000e+00> : vector<8x64xf32>
    %20 = tpu.matmul %1, %19, %cst_18 {dimension_numbers = #tpu.dot_dimension_numbers<[1], [0], [0], [1], [0, 0, 1, 1], [], []>} : vector<8x512xbf16>, vector<512x64xbf16>, vector<8x64xf32> -> vector<8x64xf32>
    %c0_19 = arith.constant 0 : index
    %c0_20 = arith.constant 0 : index
    %c0_21 = arith.constant 0 : index
    %21 = vector.load %arg8[%c0_19, %c0_20, %c0_21] : memref<1x1x64xbf16, #tpu.memory_space<vmem>>, vector<1x1x64xbf16>
    %22 = vector.shape_cast %21 : vector<1x1x64xbf16> to vector<1x64xbf16>
    %23 = arith.extf %22 : vector<1x64xbf16> to vector<1x64xf32>
    %24 = vector.broadcast %23 : vector<1x64xf32> to vector<8x64xf32>
    %25 = arith.addf %20, %24 : vector<8x64xf32>
    %26 = arith.truncf %9 : vector<8x64xf32> to vector<8x64xbf16>
    %27 = arith.truncf %17 : vector<8x64xf32> to vector<8x64xbf16>
    %cst_22 = arith.constant dense<0.000000e+00> : vector<8x8xf32>
    %28 = tpu.matmul %26, %27, %cst_22 {dimension_numbers = #tpu.dot_dimension_numbers<[1], [1], [0], [0], [0, 0, 1, 0], [], []>} : vector<8x64xbf16>, vector<8x64xbf16>, vector<8x8xf32> -> vector<8x8xf32>
    %cst_23 = arith.constant 1.250000e-01 : f32
    %29 = vector.broadcast %cst_23 : f32 to vector<8x8xf32>
    %30 = arith.mulf %28, %29 : vector<8x8xf32>
    %cst_24 = arith.constant dense<0xFF800000> : vector<8xf32>
    %31 = vector.multi_reduction <maximumf>, %30, %cst_24 [1] : vector<8x8xf32> to vector<8xf32>
    %32 = vector.shape_cast %31 : vector<8xf32> to vector<8x1xf32>
    %33 = vector.broadcast %32 : vector<8x1xf32> to vector<8x8xf32>
    %34 = arith.subf %30, %33 : vector<8x8xf32>
    %35 = math.exp %34 : vector<8x8xf32>
    %cst_25 = arith.constant dense<0.000000e+00> : vector<8xf32>
    %36 = vector.multi_reduction <add>, %35, %cst_25 [1] : vector<8x8xf32> to vector<8xf32>
    %37 = vector.shape_cast %36 : vector<8xf32> to vector<8x1xf32>
    %38 = vector.broadcast %37 : vector<8x1xf32> to vector<8x8xf32>
    %39 = arith.divf %35, %38 : vector<8x8xf32>
    %40 = arith.truncf %39 : vector<8x8xf32> to vector<8x8xbf16>
    %41 = arith.truncf %25 : vector<8x64xf32> to vector<8x64xbf16>
    %cst_26 = arith.constant dense<0.000000e+00> : vector<8x64xf32>
    %42 = tpu.matmul %40, %41, %cst_26 {dimension_numbers = #tpu.dot_dimension_numbers<[1], [0], [0], [1], [0, 0, 1, 1], [], []>} : vector<8x8xbf16>, vector<8x64xbf16>, vector<8x64xf32> -> vector<8x64xf32>
    %43 = arith.truncf %42 : vector<8x64xf32> to vector<8x64xbf16>
    %c0_27 = arith.constant 0 : index
    %c0_28 = arith.constant 0 : index
    %c0_29 = arith.constant 0 : index
    %44 = vector.load %arg9[%c0_27, %c0_28, %c0_29] : memref<1x64x512xbf16, #tpu.memory_space<vmem>>, vector<1x64x512xbf16>
    %45 = vector.shape_cast %44 : vector<1x64x512xbf16> to vector<64x512xbf16>
    %cst_30 = arith.constant dense<0.000000e+00> : vector<8x512xf32>
    %46 = tpu.matmul %43, %45, %cst_30 {dimension_numbers = #tpu.dot_dimension_numbers<[1], [0], [0], [1], [0, 0, 1, 1], [], []>} : vector<8x64xbf16>, vector<64x512xbf16>, vector<8x512xf32> -> vector<8x512xf32>
    %c0_i32 = arith.constant 0 : i32
    %47 = arith.cmpi eq, %arg1, %c0_i32 : i32
    %48 = arith.extui %47 : i1 to i32
    %c0_i32_31 = arith.constant 0 : i32
    %49 = arith.cmpi ne, %48, %c0_i32_31 : i32
    scf.if %49 {
      %cst_37 = arith.constant 0.000000e+00 : f32
      %56 = vector.broadcast %cst_37 : f32 to vector<8x512xf32>
      %c0_38 = arith.constant 0 : index
      %c0_39 = arith.constant 0 : index
      %57 = vector.load %arg14[%c0_38, %c0_39] : memref<8x512xf32, #tpu.memory_space<vmem>>, vector<8x512xf32>
      tpu.vector_store %arg14[%c0_38, %c0_39], %56 {strides = array<i32>} : memref<8x512xf32, #tpu.memory_space<vmem>>, vector<8x512xf32>,
    } else {
    }
    %c0_32 = arith.constant 0 : index
    %c0_33 = arith.constant 0 : index
    %50 = vector.load %arg14[%c0_32, %c0_33] : memref<8x512xf32, #tpu.memory_space<vmem>>, vector<8x512xf32>
    %51 = arith.addf %50, %46 : vector<8x512xf32>
    %c0_34 = arith.constant 0 : index
    %c0_35 = arith.constant 0 : index
    %52 = vector.load %arg14[%c0_34, %c0_35] : memref<8x512xf32, #tpu.memory_space<vmem>>, vector<8x512xf32>
    tpu.vector_store %arg14[%c0_34, %c0_35], %51 {strides = array<i32>} : memref<8x512xf32, #tpu.memory_space<vmem>>, vector<8x512xf32>,
    %c7_i32 = arith.constant 7 : i32
    %53 = arith.cmpi eq, %arg1, %c7_i32 : i32
    %54 = arith.extui %53 : i1 to i32
    %c0_i32_36 = arith.constant 0 : i32
    %55 = arith.cmpi ne, %54, %c0_i32_36 : i32
    scf.if %55 {
      %56 = arith.extf %1 : vector<8x512xbf16> to vector<8x512xf32>
      %c0_37 = arith.constant 0 : index
      %c0_38 = arith.constant 0 : index
      %57 = vector.load %arg14[%c0_37, %c0_38] : memref<8x512xf32, #tpu.memory_space<vmem>>, vector<8x512xf32>
      %58 = arith.addf %56, %57 : vector<8x512xf32>
      %c0_39 = arith.constant 0 : index
      %c0_40 = arith.constant 0 : index
      %59 = vector.load %arg10[%c0_39, %c0_40] : memref<1x512xbf16, #tpu.memory_space<vmem>>, vector<1x512xbf16>
      %60 = arith.extf %59 : vector<1x512xbf16> to vector<1x512xf32>
      %61 = vector.broadcast %60 : vector<1x512xf32> to vector<8x512xf32>
      %62 = arith.addf %58, %61 : vector<8x512xf32>
      %cst_41 = arith.constant dense<0.000000e+00> : vector<8xf32>
      %63 = vector.multi_reduction <add>, %62, %cst_41 [1] : vector<8x512xf32> to vector<8xf32>
      %64 = vector.shape_cast %63 : vector<8xf32> to vector<8x1xf32>
      %cst_42 = arith.constant 5.120000e+02 : f32
      %65 = vector.broadcast %cst_42 : f32 to vector<8x1xf32>
      %66 = arith.divf %64, %65 : vector<8x1xf32>
      %67 = vector.broadcast %66 : vector<8x1xf32> to vector<8x512xf32>
      %68 = arith.subf %62, %67 : vector<8x512xf32>
      %69 = arith.mulf %68, %68 : vector<8x512xf32>
      %cst_43 = arith.constant dense<0.000000e+00> : vector<8xf32>
      %70 = vector.multi_reduction <add>, %69, %cst_43 [1] : vector<8x512xf32> to vector<8xf32>
      %71 = vector.shape_cast %70 : vector<8xf32> to vector<8x1xf32>
      %cst_44 = arith.constant 5.120000e+02 : f32
      %72 = vector.broadcast %cst_44 : f32 to vector<8x1xf32>
      %73 = arith.divf %71, %72 : vector<8x1xf32>
      %74 = vector.broadcast %66 : vector<8x1xf32> to vector<8x512xf32>
      %75 = arith.subf %62, %74 : vector<8x512xf32>
      %cst_45 = arith.constant 9.99999974E-6 : f32
      %76 = vector.broadcast %cst_45 : f32 to vector<8x1xf32>
      %77 = arith.addf %73, %76 : vector<8x1xf32>
      %78 = math.rsqrt %77 : vector<8x1xf32>
      %79 = vector.broadcast %78 : vector<8x1xf32> to vector<8x512xf32>
      %80 = arith.mulf %75, %79 : vector<8x512xf32>
      %c0_46 = arith.constant 0 : index
      %c0_47 = arith.constant 0 : index
      %81 = vector.load %arg11[%c0_46, %c0_47] : memref<1x512xbf16, #tpu.memory_space<vmem>>, vector<1x512xbf16>
      %82 = arith.extf %81 : vector<1x512xbf16> to vector<1x512xf32>
      %83 = vector.broadcast %82 : vector<1x512xf32> to vector<8x512xf32>
      %84 = arith.mulf %80, %83 : vector<8x512xf32>
      %c0_48 = arith.constant 0 : index
      %c0_49 = arith.constant 0 : index
      %85 = vector.load %arg12[%c0_48, %c0_49] : memref<1x512xbf16, #tpu.memory_space<vmem>>, vector<1x512xbf16>
      %86 = arith.extf %85 : vector<1x512xbf16> to vector<1x512xf32>
      %87 = vector.broadcast %86 : vector<1x512xf32> to vector<8x512xf32>
      %88 = arith.addf %84, %87 : vector<8x512xf32>
      %89 = arith.truncf %88 : vector<8x512xf32> to vector<8x512xbf16>
      %c0_50 = arith.constant 0 : index
      %c0_51 = arith.constant 0 : index
      %c0_52 = arith.constant 0 : index
      %90 = vector.load %arg13[%c0_50, %c0_51, %c0_52] : memref<1x8x512xbf16, #tpu.memory_space<vmem>>, vector<1x8x512xbf16>
      %91 = vector.shape_cast %90 : vector<1x8x512xbf16> to vector<8x512xbf16>
      %92 = vector.shape_cast %89 : vector<8x512xbf16> to vector<1x8x512xbf16>
      tpu.vector_store %arg13[%c0_50, %c0_51, %c0_52], %92 {strides = array<i32>} : memref<1x8x512xbf16, #tpu.memory_space<vmem>>, vector<1x8x512xbf16>,
    } else {
    }
    return
  }
  func.func @transform_0(%arg0: i32, %arg1: i32) -> (i32, i32, i32) {
    %c0_i32 = arith.constant 0 : i32
    %c0_i32_0 = arith.constant 0 : i32
    %c0_i32_1 = arith.constant 0 : i32
    return %arg0, %c0_i32, %c0_i32_0 : i32, i32, i32
  }
  func.func @transform_1(%arg0: i32, %arg1: i32) -> (i32, i32, i32) {
    %c0_i32 = arith.constant 0 : i32
    %c0_i32_0 = arith.constant 0 : i32
    %c0_i32_1 = arith.constant 0 : i32
    return %arg1, %c0_i32, %c0_i32_0 : i32, i32, i32
  }
  func.func @transform_2(%arg0: i32, %arg1: i32) -> (i32, i32, i32) {
    %c0_i32 = arith.constant 0 : i32
    %c0_i32_0 = arith.constant 0 : i32
    %c0_i32_1 = arith.constant 0 : i32
    return %arg1, %c0_i32, %c0_i32_0 : i32, i32, i32
  }
  func.func @transform_3(%arg0: i32, %arg1: i32) -> (i32, i32, i32) {
    %c0_i32 = arith.constant 0 : i32
    %c0_i32_0 = arith.constant 0 : i32
    %c0_i32_1 = arith.constant 0 : i32
    return %arg1, %c0_i32, %c0_i32_0 : i32, i32, i32
  }
  func.func @transform_4(%arg0: i32, %arg1: i32) -> (i32, i32, i32) {
    %c0_i32 = arith.constant 0 : i32
    %c0_i32_0 = arith.constant 0 : i32
    %c0_i32_1 = arith.constant 0 : i32
    return %arg1, %c0_i32, %c0_i32_0 : i32, i32, i32
  }
  func.func @transform_5(%arg0: i32, %arg1: i32) -> (i32, i32, i32) {
    %c0_i32 = arith.constant 0 : i32
    %c0_i32_0 = arith.constant 0 : i32
    %c0_i32_1 = arith.constant 0 : i32
    return %arg1, %c0_i32, %c0_i32_0 : i32, i32, i32
  }
  func.func @transform_6(%arg0: i32, %arg1: i32) -> (i32, i32, i32) {
    %c0_i32 = arith.constant 0 : i32
    %c0_i32_0 = arith.constant 0 : i32
    %c0_i32_1 = arith.constant 0 : i32
    return %arg1, %c0_i32, %c0_i32_0 : i32, i32, i32
  }
  func.func @transform_7(%arg0: i32, %arg1: i32) -> (i32, i32, i32) {
    %c0_i32 = arith.constant 0 : i32
    %c0_i32_0 = arith.constant 0 : i32
    %c0_i32_1 = arith.constant 0 : i32
    return %arg1, %c0_i32, %c0_i32_0 : i32, i32, i32
  }
  func.func @transform_8(%arg0: i32, %arg1: i32) -> (i32, i32) {
    %c0_i32 = arith.constant 0 : i32
    %c0_i32_0 = arith.constant 0 : i32
    %c0_i32_1 = arith.constant 0 : i32
    return %c0_i32, %c0_i32_0 : i32, i32
  }
  func.func @transform_9(%arg0: i32, %arg1: i32) -> (i32, i32) {
    %c0_i32 = arith.constant 0 : i32
    %c0_i32_0 = arith.constant 0 : i32
    %c0_i32_1 = arith.constant 0 : i32
    return %c0_i32, %c0_i32_0 : i32, i32
  }
  func.func @transform_10(%arg0: i32, %arg1: i32) -> (i32, i32) {
    %c0_i32 = arith.constant 0 : i32
    %c0_i32_0 = arith.constant 0 : i32
    %c0_i32_1 = arith.constant 0 : i32
    return %c0_i32, %c0_i32_0 : i32, i32
  }
  func.func @transform_11(%arg0: i32, %arg1: i32) -> (i32, i32, i32) {
    %c0_i32 = arith.constant 0 : i32
    %c0_i32_0 = arith.constant 0 : i32
    %c0_i32_1 = arith.constant 0 : i32
    return %arg0, %c0_i32, %c0_i32_0 : i32, i32, i32
  }
}

</mosaic_0001>

<llo_original>
// kernel: tpu_custom_call.1
$region0: #{tpu_custom_call.1}
  #allocation0 [shape = 'u32[]', space=smem, size = 0x4, offset = 0x4, fixed_abs, tag = 'smem constant byte address 0x4 - core index']
  #allocation1 [shape = 'u32[144,128]{1,0:T(1,128)}', space=vmem, size = 0x12000, scoped, tag = 'internal scratch']
  #allocation2 [shape = 'f32[8,512]{1,0:T(8,128)}', space=vmem, size = 0x4000, scoped, tag = 'scratch operand']
  %s0 = inlined_call_operand.vmem [shape: bf16[2,8,512], index: 0, kind: input, shape index: {}]
  %s1 = inlined_call_operand.vmem [shape: bf16[8,512,64], index: 1, kind: input, shape index: {}]
  %s2 = inlined_call_operand.vmem [shape: bf16[8,512,64], index: 2, kind: input, shape index: {}]
  %s3 = inlined_call_operand.vmem [shape: bf16[8,512,64], index: 3, kind: input, shape index: {}]
  %s4 = inlined_call_operand.vmem [shape: bf16[8,1,64], index: 4, kind: input, shape index: {}]
  %s5 = inlined_call_operand.vmem [shape: bf16[8,1,64], index: 5, kind: input, shape index: {}]
  %s6 = inlined_call_operand.vmem [shape: bf16[8,1,64], index: 6, kind: input, shape index: {}]
  %s7 = inlined_call_operand.vmem [shape: bf16[8,64,512], index: 7, kind: input, shape index: {}]
  %s8 = inlined_call_operand.vmem [shape: bf16[1,512], index: 8, kind: input, shape index: {}]
  %s9 = inlined_call_operand.vmem [shape: bf16[1,512], index: 9, kind: input, shape index: {}]
  %s10 = inlined_call_operand.vmem [shape: bf16[1,512], index: 10, kind: input, shape index: {}]
  %s11 = inlined_call_operand.hbm [shape: bf16[2,8,512], index: 11, kind: output, shape index: {}]
  %s12 = sld [smem:[#allocation0]]
  $region85: #{tpu_custom_call.1} parent=0
    _
  %s14 = ssub.s32 1, %s12
  %s15 = scalar_select 0, %s14, %s12
  $region1: #{tpu_custom_call.1} parent=0
    #allocation3 [shape = 'u8[16384]{0}', space=vmem, size = 0x4000, scoped, tag = 'output window, operand 0']
    #allocation4 [shape = 's32[2]{0}', space=sflag, size = 0x8, scoped, tag = 'scoped memory for tpu_custom_call.1']
    %16 = vsyncpa [#allocation4], 0
    %s17 = scalar_lea.sflag [#allocation4], 1
    %18 = vsyncpa %s17, 0
    loop: start=0, step=1, limit=18
    $region2: #{tpu_custom_call.1} parent=1 // loop_pre_header
      _
    $region3: #{tpu_custom_call.1} parent=1 // loop_header
      %s20 = sphi 0, %s24
      %p21 = scmp.ge.s32.totalorder %s20, 18
      %s27 = sphi 0, %s39
      %s28 = sphi 0, %s35
      %s29 = sphi 0, %s27
      %s30 = sphi 0, %s28
      %s31 = sphi 0, %s29
      %s32 = sphi 0, %s30
      %s42 = sphi 0, %s44
      %s45 = sphi 0, %s42
      %s46 = sphi 0, %s45
      %s62 = sphi 0, %s46
      %s68 = sphi 0, %s70
      %s71 = sphi 0, %s68
      %s72 = sphi 0, %s71
      %s88 = sphi 0, %s72
      %s94 = sphi 0, %s96
      %s97 = sphi 0, %s94
      %s98 = sphi 0, %s97
      %s114 = sphi 0, %s98
      %s120 = sphi 0, %s122
      %s123 = sphi 0, %s120
      %s124 = sphi 0, %s123
      %s140 = sphi 0, %s124
      %s146 = sphi 0, %s148
      %s149 = sphi 0, %s146
      %s150 = sphi 0, %s149
      %s166 = sphi 0, %s150
      %s172 = sphi 0, %s174
      %s175 = sphi 0, %s172
      %s176 = sphi 0, %s175
      %s192 = sphi 0, %s176
      %s198 = sphi 0, %s200
      %s201 = sphi 0, %s198
      %s202 = sphi 0, %s201
      %s218 = sphi 0, %s202
      %s224 = sphi 0, %s226
      %s227 = sphi 0, %s224
      %s228 = sphi 0, %s227
      %s244 = sphi 0, %s228
      %s248 = sphi 0, %s248
      %s250 = sphi 0, %s248
      %s251 = sphi 0, %s250
      %s265 = sphi 0, %s251
      %s269 = sphi 0, %s269
      %s271 = sphi 0, %s269
      %s272 = sphi 0, %s271
      %s286 = sphi 0, %s272
      %s290 = sphi 0, %s290
      %s292 = sphi 0, %s290
      %s293 = sphi 0, %s292
      %s307 = sphi 0, %s293
      %s313 = sphi 0, %s315
      %s316 = sphi 0, %s313
      %s317 = sphi 0, %s316
      %s333 = sphi 0, %s317
    $region4: #{tpu_custom_call.1} parent=1 // loop_header_branch
      %23 = sbr.rel (%p21) target = $region8
    $region5: #{tpu_custom_call.1} parent=1 // loop_body
      %s25 = ssub.s32 %s20, 1
      %s26 = ssub.s32 %s20, 2
      %s33 = sadd.s32 1, %s28
      %p34 = scmp.ge.s32.totalorder %s33, 8
      %s35 = scalar_select %p34, 0, %s33
      %s36 = sadd.s32 1, %s27
      %s37 = scalar_select %p34, %s36, %s27
      %p38 = scmp.ge.s32.totalorder %s37, 2
      %s39 = scalar_select %p38, 0, %s37
      %s40 = ssub.s32 %s27, %s39
      %p41 = scmp.eq.s32.totalorder %s40, 0
      %s43 = sadd.s32 %s42, 1
      %s44 = scalar_select %p41, %s42, %s43
      %p47 = pneg %p41
      %p48 = scmp.eq.s32.totalorder %s20, 15
      %p49 = por %p47, %p48
      %p50 = scmp.ne.s32.totalorder %s42, %s45
      %p51 = scmp.eq.s32.totalorder %s20, 0
      %p52 = por %p50, %p51
      %p53 = scmp.ne.s32.totalorder %s42, %s45
      %p54 = scmp.eq.s32.totalorder %s25, 15
      %p55 = por %p53, %p54
      %p56 = scmp.ne.s32.totalorder %s45, %s46
      %p57 = scmp.eq.s32.totalorder %s25, 0
      %p58 = por %p56, %p57
      %p59 = scmp.ne.s32.totalorder %s45, %s46
      %p60 = scmp.eq.s32.totalorder %s26, 15
      %p61 = por %p59, %p60
      %p63 = scmp.ne.s32.totalorder %s46, %s62
      %p64 = scmp.eq.s32.totalorder %s26, 0
      %p65 = por %p63, %p64
      %s66 = ssub.s32 %s28, %s35
      %p67 = scmp.eq.s32.totalorder %s66, 0
      %s69 = sadd.s32 %s68, 1
      %s70 = scalar_select %p67, %s68, %s69
      %p73 = pneg %p67
      %p74 = scmp.eq.s32.totalorder %s20, 15
      %p75 = por %p73, %p74
      %p76 = scmp.ne.s32.totalorder %s68, %s71
      %p77 = scmp.eq.s32.totalorder %s20, 0
      %p78 = por %p76, %p77
      %p79 = scmp.ne.s32.totalorder %s68, %s71
      %p80 = scmp.eq.s32.totalorder %s25, 15
      %p81 = por %p79, %p80
      %p82 = scmp.ne.s32.totalorder %s71, %s72
      %p83 = scmp.eq.s32.totalorder %s25, 0
      %p84 = por %p82, %p83
      %p85 = scmp.ne.s32.totalorder %s71, %s72
      %p86 = scmp.eq.s32.totalorder %s26, 15
      %p87 = por %p85, %p86
      %p89 = scmp.ne.s32.totalorder %s72, %s88
      %p90 = scmp.eq.s32.totalorder %s26, 0
      %p91 = por %p89, %p90
      %s92 = ssub.s32 %s28, %s35
      %p93 = scmp.eq.s32.totalorder %s92, 0
      %s95 = sadd.s32 %s94, 1
      %s96 = scalar_select %p93, %s94, %s95
      %p99 = pneg %p93
      %p100 = scmp.eq.s32.totalorder %s20, 15
      %p101 = por %p99, %p100
      %p102 = scmp.ne.s32.totalorder %s94, %s97
      %p103 = scmp.eq.s32.totalorder %s20, 0
      %p104 = por %p102, %p103
      %p105 = scmp.ne.s32.totalorder %s94, %s97
      %p106 = scmp.eq.s32.totalorder %s25, 15
      %p107 = por %p105, %p106
      %p108 = scmp.ne.s32.totalorder %s97, %s98
      %p109 = scmp.eq.s32.totalorder %s25, 0
      %p110 = por %p108, %p109
      %p111 = scmp.ne.s32.totalorder %s97, %s98
      %p112 = scmp.eq.s32.totalorder %s26, 15
      %p113 = por %p111, %p112
      %p115 = scmp.ne.s32.totalorder %s98, %s114
      %p116 = scmp.eq.s32.totalorder %s26, 0
      %p117 = por %p115, %p116
      %s118 = ssub.s32 %s28, %s35
      %p119 = scmp.eq.s32.totalorder %s118, 0
      %s121 = sadd.s32 %s120, 1
      %s122 = scalar_select %p119, %s120, %s121
      %p125 = pneg %p119
      %p126 = scmp.eq.s32.totalorder %s20, 15
      %p127 = por %p125, %p126
      %p128 = scmp.ne.s32.totalorder %s120, %s123
      %p129 = scmp.eq.s32.totalorder %s20, 0
      %p130 = por %p128, %p129
      %p131 = scmp.ne.s32.totalorder %s120, %s123
      %p132 = scmp.eq.s32.totalorder %s25, 15
      %p133 = por %p131, %p132
      %p134 = scmp.ne.s32.totalorder %s123, %s124
      %p135 = scmp.eq.s32.totalorder %s25, 0
      %p136 = por %p134, %p135
      %p137 = scmp.ne.s32.totalorder %s123, %s124
      %p138 = scmp.eq.s32.totalorder %s26, 15
      %p139 = por %p137, %p138
      %p141 = scmp.ne.s32.totalorder %s124, %s140
      %p142 = scmp.eq.s32.totalorder %s26, 0
      %p143 = por %p141, %p142
      %s144 = ssub.s32 %s28, %s35
      %p145 = scmp.eq.s32.totalorder %s144, 0
      %s147 = sadd.s32 %s146, 1
      %s148 = scalar_select %p145, %s146, %s147
      %p151 = pneg %p145
      %p152 = scmp.eq.s32.totalorder %s20, 15
      %p153 = por %p151, %p152
      %p154 = scmp.ne.s32.totalorder %s146, %s149
      %p155 = scmp.eq.s32.totalorder %s20, 0
      %p156 = por %p154, %p155
      %p157 = scmp.ne.s32.totalorder %s146, %s149
      %p158 = scmp.eq.s32.totalorder %s25, 15
      %p159 = por %p157, %p158
      %p160 = scmp.ne.s32.totalorder %s149, %s150
      %p161 = scmp.eq.s32.totalorder %s25, 0
      %p162 = por %p160, %p161
      %p163 = scmp.ne.s32.totalorder %s149, %s150
      %p164 = scmp.eq.s32.totalorder %s26, 15
      %p165 = por %p163, %p164
      %p167 = scmp.ne.s32.totalorder %s150, %s166
      %p168 = scmp.eq.s32.totalorder %s26, 0
      %p169 = por %p167, %p168
      %s170 = ssub.s32 %s28, %s35
      %p171 = scmp.eq.s32.totalorder %s170, 0
      %s173 = sadd.s32 %s172, 1
      %s174 = scalar_select %p171, %s172, %s173
      %p177 = pneg %p171
      %p178 = scmp.eq.s32.totalorder %s20, 15
      %p179 = por %p177, %p178
      %p180 = scmp.ne.s32.totalorder %s172, %s175
      %p181 = scmp.eq.s32.totalorder %s20, 0
      %p182 = por %p180, %p181
      %p183 = scmp.ne.s32.totalorder %s172, %s175
      %p184 = scmp.eq.s32.totalorder %s25, 15
      %p185 = por %p183, %p184
      %p186 = scmp.ne.s32.totalorder %s175, %s176
      %p187 = scmp.eq.s32.totalorder %s25, 0
      %p188 = por %p186, %p187
      %p189 = scmp.ne.s32.totalorder %s175, %s176
      %p190 = scmp.eq.s32.totalorder %s26, 15
      %p191 = por %p189, %p190
      %p193 = scmp.ne.s32.totalorder %s176, %s192
      %p194 = scmp.eq.s32.totalorder %s26, 0
      %p195 = por %p193, %p194
      %s196 = ssub.s32 %s28, %s35
      %p197 = scmp.eq.s32.totalorder %s196, 0
      %s199 = sadd.s32 %s198, 1
      %s200 = scalar_select %p197, %s198, %s199
      %p203 = pneg %p197
      %p204 = scmp.eq.s32.totalorder %s20, 15
      %p205 = por %p203, %p204
      %p206 = scmp.ne.s32.totalorder %s198, %s201
      %p207 = scmp.eq.s32.totalorder %s20, 0
      %p208 = por %p206, %p207
      %p209 = scmp.ne.s32.totalorder %s198, %s201
      %p210 = scmp.eq.s32.totalorder %s25, 15
      %p211 = por %p209, %p210
      %p212 = scmp.ne.s32.totalorder %s201, %s202
      %p213 = scmp.eq.s32.totalorder %s25, 0
      %p214 = por %p212, %p213
      %p215 = scmp.ne.s32.totalorder %s201, %s202
      %p216 = scmp.eq.s32.totalorder %s26, 15
      %p217 = por %p215, %p216
      %p219 = scmp.ne.s32.totalorder %s202, %s218
      %p220 = scmp.eq.s32.totalorder %s26, 0
      %p221 = por %p219, %p220
      %s222 = ssub.s32 %s28, %s35
      %p223 = scmp.eq.s32.totalorder %s222, 0
      %s225 = sadd.s32 %s224, 1
      %s226 = scalar_select %p223, %s224, %s225
      %p229 = pneg %p223
      %p230 = scmp.eq.s32.totalorder %s20, 15
      %p231 = por %p229, %p230
      %p232 = scmp.ne.s32.totalorder %s224, %s227
      %p233 = scmp.eq.s32.totalorder %s20, 0
      %p234 = por %p232, %p233
      %p235 = scmp.ne.s32.totalorder %s224, %s227
      %p236 = scmp.eq.s32.totalorder %s25, 15
      %p237 = por %p235, %p236
      %p238 = scmp.ne.s32.totalorder %s227, %s228
      %p239 = scmp.eq.s32.totalorder %s25, 0
      %p240 = por %p238, %p239
      %p241 = scmp.ne.s32.totalorder %s227, %s228
      %p242 = scmp.eq.s32.totalorder %s26, 15
      %p243 = por %p241, %p242
      %p245 = scmp.ne.s32.totalorder %s228, %s244
      %p246 = scmp.eq.s32.totalorder %s26, 0
      %p247 = por %p245, %p246
      %s249 = sadd.s32 %s248, 1
      %p252 = scmp.eq.s32.totalorder %s20, 15
      %p253 = scmp.ne.s32.totalorder %s248, %s250
      %p254 = scmp.eq.s32.totalorder %s20, 0
      %p255 = por %p253, %p254
      %p256 = scmp.ne.s32.totalorder %s248, %s250
      %p257 = scmp.eq.s32.totalorder %s25, 15
      %p258 = por %p256, %p257
      %p259 = scmp.ne.s32.totalorder %s250, %s251
      %p260 = scmp.eq.s32.totalorder %s25, 0
      %p261 = por %p259, %p260
      %p262 = scmp.ne.s32.totalorder %s250, %s251
      %p263 = scmp.eq.s32.totalorder %s26, 15
      %p264 = por %p262, %p263
      %p266 = scmp.ne.s32.totalorder %s251, %s265
      %p267 = scmp.eq.s32.totalorder %s26, 0
      %p268 = por %p266, %p267
      %s270 = sadd.s32 %s269, 1
      %p273 = scmp.eq.s32.totalorder %s20, 15
      %p274 = scmp.ne.s32.totalorder %s269, %s271
      %p275 = scmp.eq.s32.totalorder %s20, 0
      %p276 = por %p274, %p275
      %p277 = scmp.ne.s32.totalorder %s269, %s271
      %p278 = scmp.eq.s32.totalorder %s25, 15
      %p279 = por %p277, %p278
      %p280 = scmp.ne.s32.totalorder %s271, %s272
      %p281 = scmp.eq.s32.totalorder %s25, 0
      %p282 = por %p280, %p281
      %p283 = scmp.ne.s32.totalorder %s271, %s272
      %p284 = scmp.eq.s32.totalorder %s26, 15
      %p285 = por %p283, %p284
      %p287 = scmp.ne.s32.totalorder %s272, %s286
      %p288 = scmp.eq.s32.totalorder %s26, 0
      %p289 = por %p287, %p288
      %s291 = sadd.s32 %s290, 1
      %p294 = scmp.eq.s32.totalorder %s20, 15
      %p295 = scmp.ne.s32.totalorder %s290, %s292
      %p296 = scmp.eq.s32.totalorder %s20, 0
      %p297 = por %p295, %p296
      %p298 = scmp.ne.s32.totalorder %s290, %s292
      %p299 = scmp.eq.s32.totalorder %s25, 15
      %p300 = por %p298, %p299
      %p301 = scmp.ne.s32.totalorder %s292, %s293
      %p302 = scmp.eq.s32.totalorder %s25, 0
      %p303 = por %p301, %p302
      %p304 = scmp.ne.s32.totalorder %s292, %s293
      %p305 = scmp.eq.s32.totalorder %s26, 15
      %p306 = por %p304, %p305
      %p308 = scmp.ne.s32.totalorder %s293, %s307
      %p309 = scmp.eq.s32.totalorder %s26, 0
      %p310 = por %p308, %p309
      %s311 = ssub.s32 %s27, %s39
      %p312 = scmp.eq.s32.totalorder %s311, 0
      %s314 = sadd.s32 %s313, 1
      %s315 = scalar_select %p312, %s313, %s314
      %p318 = pneg %p312
      %p319 = scmp.eq.s32.totalorder %s20, 15
      %p320 = por %p318, %p319
      %p321 = scmp.ne.s32.totalorder %s313, %s316
      %p322 = scmp.eq.s32.totalorder %s20, 0
      %p323 = por %p321, %p322
      %p324 = scmp.ne.s32.totalorder %s313, %s316
      %p325 = scmp.eq.s32.totalorder %s25, 15
      %p326 = por %p324, %p325
      %p327 = scmp.ne.s32.totalorder %s316, %s317
      %p328 = scmp.eq.s32.totalorder %s25, 0
      %p329 = por %p327, %p328
      %p330 = scmp.ne.s32.totalorder %s316, %s317
      %p331 = scmp.eq.s32.totalorder %s26, 15
      %p332 = por %p330, %p331
      %p334 = scmp.ne.s32.totalorder %s317, %s333
      %p335 = scmp.eq.s32.totalorder %s26, 0
      %p336 = por %p334, %p335
      %p337 = scmp.le.s32.totalorder 1, %s20
      %p338 = scmp.lt.s32.totalorder %s20, 17
      %p339 = pnand %p337, %p338
      %p340 = pneg %p339
      // Predicated region
      $region9: #{tpu_custom_call.1} parent=5 // pred_check
        _
      $region10: #{tpu_custom_call.1} parent=5 // pred_check_branch
        %342 = sbr.rel (%p339) target = $region12
      $region11: #{tpu_custom_call.1} parent=5 // pred_region
        %s343 = ssub.s32 %s20, 1
        // Predicated region
        $region13: #{tpu_custom_call.1} parent=11 // pred_check
          %p344 = pneg %p261
        $region14: #{tpu_custom_call.1} parent=11 // pred_check_branch
          %346 = sbr.rel (%p344) target = $region16
        $region15: #{tpu_custom_call.1} parent=11 // pred_region
          _
        $region16: #{tpu_custom_call.1} parent=11 // pred_fallthru
          _
        // Predicated region
        $region17: #{tpu_custom_call.1} parent=11 // pred_check
          %p347 = pneg %p282
        $region18: #{tpu_custom_call.1} parent=11 // pred_check_branch
          %349 = sbr.rel (%p347) target = $region20
        $region19: #{tpu_custom_call.1} parent=11 // pred_region
          _
        $region20: #{tpu_custom_call.1} parent=11 // pred_fallthru
          _
        // Predicated region
        $region21: #{tpu_custom_call.1} parent=11 // pred_check
          %p350 = pneg %p303
        $region22: #{tpu_custom_call.1} parent=11 // pred_check_branch
          %352 = sbr.rel (%p350) target = $region24
        $region23: #{tpu_custom_call.1} parent=11 // pred_region
          _
        $region24: #{tpu_custom_call.1} parent=11 // pred_fallthru
          _
      $region12: #{tpu_custom_call.1} parent=5 // pred_fallthru
        _
      %p353 = scmp.lt.s32.totalorder %s20, 16
      // Predicated region
      $region25: #{tpu_custom_call.1} parent=5 // pred_check
        %p354 = pneg %p353
      $region26: #{tpu_custom_call.1} parent=5 // pred_check_branch
        %356 = sbr.rel (%p354) target = $region28
      $region27: #{tpu_custom_call.1} parent=5 // pred_region
        // Predicated region
        $region29: #{tpu_custom_call.1} parent=27 // pred_check
          %p357 = pneg %p52
        $region30: #{tpu_custom_call.1} parent=27 // pred_check_branch
          %359 = sbr.rel (%p357) target = $region32
        $region31: #{tpu_custom_call.1} parent=27 // pred_region
          %p360 = scmp.lt.s32.totalorder %s27, 1
          %s361 = scalar_select %p360, %s27, 1
          %s362 = smul.addr %s361, 4
          %s363 = smul.addr %s362, 4
          %s364 = scalar_lea.vmem %s0, %s363
        $region32: #{tpu_custom_call.1} parent=27 // pred_fallthru
          _
        // Predicated region
        $region33: #{tpu_custom_call.1} parent=27 // pred_check
          %p365 = pneg %p78
        $region34: #{tpu_custom_call.1} parent=27 // pred_check_branch
          %367 = sbr.rel (%p365) target = $region36
        $region35: #{tpu_custom_call.1} parent=27 // pred_region
          %p368 = scmp.lt.s32.totalorder %s28, 7
          %s369 = scalar_select %p368, %s28, 7
          %s370 = smul.addr %s369, 64
          %s371 = smul.addr %s370, 4
          %s372 = scalar_lea.vmem %s1, %s371
        $region36: #{tpu_custom_call.1} parent=27 // pred_fallthru
          _
        // Predicated region
        $region37: #{tpu_custom_call.1} parent=27 // pred_check
          %p373 = pneg %p104
        $region38: #{tpu_custom_call.1} parent=27 // pred_check_branch
          %375 = sbr.rel (%p373) target = $region40
        $region39: #{tpu_custom_call.1} parent=27 // pred_region
          %p376 = scmp.lt.s32.totalorder %s28, 7
          %s377 = scalar_select %p376, %s28, 7
          %s378 = smul.addr %s377, 64
          %s379 = smul.addr %s378, 4
          %s380 = scalar_lea.vmem %s2, %s379
        $region40: #{tpu_custom_call.1} parent=27 // pred_fallthru
          _
        // Predicated region
        $region41: #{tpu_custom_call.1} parent=27 // pred_check
          %p381 = pneg %p130
        $region42: #{tpu_custom_call.1} parent=27 // pred_check_branch
          %383 = sbr.rel (%p381) target = $region44
        $region43: #{tpu_custom_call.1} parent=27 // pred_region
          %p384 = scmp.lt.s32.totalorder %s28, 7
          %s385 = scalar_select %p384, %s28, 7
          %s386 = smul.addr %s385, 64
          %s387 = smul.addr %s386, 4
          %s388 = scalar_lea.vmem %s3, %s387
        $region44: #{tpu_custom_call.1} parent=27 // pred_fallthru
          _
        // Predicated region
        $region45: #{tpu_custom_call.1} parent=27 // pred_check
          %p389 = pneg %p156
        $region46: #{tpu_custom_call.1} parent=27 // pred_check_branch
          %391 = sbr.rel (%p389) target = $region48
        $region47: #{tpu_custom_call.1} parent=27 // pred_region
          %p392 = scmp.lt.s32.totalorder %s28, 7
          %s393 = scalar_select %p392, %s28, 7
          %s394 = scalar_lea.vmem %s4, %s393
        $region48: #{tpu_custom_call.1} parent=27 // pred_fallthru
          _
        // Predicated region
        $region49: #{tpu_custom_call.1} parent=27 // pred_check
          %p395 = pneg %p182
        $region50: #{tpu_custom_call.1} parent=27 // pred_check_branch
          %397 = sbr.rel (%p395) target = $region52
        $region51: #{tpu_custom_call.1} parent=27 // pred_region
          %p398 = scmp.lt.s32.totalorder %s28, 7
          %s399 = scalar_select %p398, %s28, 7
          %s400 = scalar_lea.vmem %s5, %s399
        $region52: #{tpu_custom_call.1} parent=27 // pred_fallthru
          _
        // Predicated region
        $region53: #{tpu_custom_call.1} parent=27 // pred_check
          %p401 = pneg %p208
        $region54: #{tpu_custom_call.1} parent=27 // pred_check_branch
          %403 = sbr.rel (%p401) target = $region56
        $region55: #{tpu_custom_call.1} parent=27 // pred_region
          %p404 = scmp.lt.s32.totalorder %s28, 7
          %s405 = scalar_select %p404, %s28, 7
          %s406 = scalar_lea.vmem %s6, %s405
        $region56: #{tpu_custom_call.1} parent=27 // pred_fallthru
          _
        // Predicated region
        $region57: #{tpu_custom_call.1} parent=27 // pred_check
          %p407 = pneg %p234
        $region58: #{tpu_custom_call.1} parent=27 // pred_check_branch
          %409 = sbr.rel (%p407) target = $region60
        $region59: #{tpu_custom_call.1} parent=27 // pred_region
          %p410 = scmp.lt.s32.totalorder %s28, 7
          %s411 = scalar_select %p410, %s28, 7
          %s412 = smul.addr %s411, 32
          %s413 = smul.addr %s412, 4
          %s414 = scalar_lea.vmem %s7, %s413
        $region60: #{tpu_custom_call.1} parent=27 // pred_fallthru
          _
      $region28: #{tpu_custom_call.1} parent=5 // pred_fallthru
        _
      %p415 = scmp.le.s32.totalorder 1, %s20
      %p416 = scmp.lt.s32.totalorder %s20, 17
      %p417 = pnand %p415, %p416
      %p418 = pneg %p417
      // Predicated region
      $region61: #{tpu_custom_call.1} parent=5 // pred_check
        _
      $region62: #{tpu_custom_call.1} parent=5 // pred_check_branch
        %420 = sbr.rel (%p417) target = $region64
      $region63: #{tpu_custom_call.1} parent=5 // pred_region
        %s421 = ssub.s32 %s20, 1
        %p422 = scmp.lt.s32.totalorder %s29, 1
        %s423 = scalar_select %p422, %s29, 1
        %s424 = smul.addr %s423, 4
        %s425 = smul.addr %s424, 4
        %s426 = scalar_lea.vmem %s0, %s425
        %p427 = pneg %p58
        %p428 = pneg %p55
        %p429 = scmp.lt.s32.totalorder %s30, 7
        %s430 = scalar_select %p429, %s30, 7
        %s431 = smul.addr %s430, 64
        %s432 = smul.addr %s431, 4
        %s433 = scalar_lea.vmem %s1, %s432
        %p434 = pneg %p84
        %p435 = pneg %p81
        %p436 = scmp.lt.s32.totalorder %s30, 7
        %s437 = scalar_select %p436, %s30, 7
        %s438 = smul.addr %s437, 64
        %s439 = smul.addr %s438, 4
        %s440 = scalar_lea.vmem %s2, %s439
        %p441 = pneg %p110
        %p442 = pneg %p107
        %p443 = scmp.lt.s32.totalorder %s30, 7
        %s444 = scalar_select %p443, %s30, 7
        %s445 = smul.addr %s444, 64
        %s446 = smul.addr %s445, 4
        %s447 = scalar_lea.vmem %s3, %s446
        %p448 = pneg %p136
        %p449 = pneg %p133
        %p450 = scmp.lt.s32.totalorder %s30, 7
        %s451 = scalar_select %p450, %s30, 7
        %s452 = scalar_lea.vmem %s4, %s451
        %p453 = pneg %p162
        %p454 = pneg %p159
        %p455 = scmp.lt.s32.totalorder %s30, 7
        %s456 = scalar_select %p455, %s30, 7
        %s457 = scalar_lea.vmem %s5, %s456
        %p458 = pneg %p188
        %p459 = pneg %p185
        %p460 = scmp.lt.s32.totalorder %s30, 7
        %s461 = scalar_select %p460, %s30, 7
        %s462 = scalar_lea.vmem %s6, %s461
        %p463 = pneg %p214
        %p464 = pneg %p211
        %p465 = scmp.lt.s32.totalorder %s30, 7
        %s466 = scalar_select %p465, %s30, 7
        %s467 = smul.addr %s466, 32
        %s468 = smul.addr %s467, 4
        %s469 = scalar_lea.vmem %s7, %s468
        %p470 = pneg %p240
        %p471 = pneg %p237
        %p472 = pneg %p261
        %p473 = pneg %p258
        %p474 = pneg %p282
        %p475 = pneg %p279
        %p476 = pneg %p303
        %p477 = pneg %p300
        %p478 = pneg %p329
        %p479 = pneg %p326
        %s480 = sand.u32 %s316, 1
        %s481 = scalar_lea.sflag [#allocation4], %s480
        %s482 = sand.u32 %s316, 1
        %s483 = smul.addr %s482, 16
        %s484 = scalar_lea.vmem [#allocation3], %s483
        %p485 = scmp.lt.s32.totalorder %s29, 1
        %s486 = scalar_select %p485, %s29, 1
        %s487 = smul.addr %s486, 4
        %s488 = smul.addr %s487, 4
        %s489 = scalar_lea.vmem %s0, %s488
        %p490 = scmp.lt.s32.totalorder %s30, 7
        %s491 = scalar_select %p490, %s30, 7
        %s492 = smul.addr %s491, 64
        %s493 = smul.addr %s492, 4
        %s494 = scalar_lea.vmem %s1, %s493
        %p495 = scmp.lt.s32.totalorder %s30, 7
        %s496 = scalar_select %p495, %s30, 7
        %s497 = smul.addr %s496, 64
        %s498 = smul.addr %s497, 4
        %s499 = scalar_lea.vmem %s2, %s498
        %p500 = scmp.lt.s32.totalorder %s30, 7
        %s501 = scalar_select %p500, %s30, 7
        %s502 = smul.addr %s501, 64
        %s503 = smul.addr %s502, 4
        %s504 = scalar_lea.vmem %s3, %s503
        %p505 = scmp.lt.s32.totalorder %s30, 7
        %s506 = scalar_select %p505, %s30, 7
        %s507 = scalar_lea.vmem %s4, %s506
        %p508 = scmp.lt.s32.totalorder %s30, 7
        %s509 = scalar_select %p508, %s30, 7
        %s510 = scalar_lea.vmem %s5, %s509
        %p511 = scmp.lt.s32.totalorder %s30, 7
        %s512 = scalar_select %p511, %s30, 7
        %s513 = scalar_lea.vmem %s6, %s512
        %p514 = scmp.lt.s32.totalorder %s30, 7
        %s515 = scalar_select %p514, %s30, 7
        %s516 = smul.addr %s515, 32
        %s517 = smul.addr %s516, 4
        %s518 = scalar_lea.vmem %s7, %s517
        %v520 = vld [vmem:[%s489] sm:$0xff]
        %v521 = vld [vmem:[%s489 + $0x8] sm:$0xff]
        %v522 = vld [vmem:[%s494] sm:$0xf]
        %v523 = vld [vmem:[%s494 + $0x4] sm:$0xf]
        %v524 = vld [vmem:[%s494 + $0x8] sm:$0xf]
        %v525 = vld [vmem:[%s494 + $0xc] sm:$0xf]
        %v526 = vld [vmem:[%s494 + $0x10] sm:$0xf]
        %v527 = vld [vmem:[%s494 + $0x14] sm:$0xf]
        %v528 = vld [vmem:[%s494 + $0x18] sm:$0xf]
        %v529 = vld [vmem:[%s494 + $0x1c] sm:$0xf]
        %v530 = vld [vmem:[%s494 + $0x20] sm:$0xf]
        %v531 = vld [vmem:[%s494 + $0x24] sm:$0xf]
        %v532 = vld [vmem:[%s494 + $0x28] sm:$0xf]
        %v533 = vld [vmem:[%s494 + $0x2c] sm:$0xf]
        %v534 = vld [vmem:[%s494 + $0x30] sm:$0xf]
        %v535 = vld [vmem:[%s494 + $0x34] sm:$0xf]
        %v536 = vld [vmem:[%s494 + $0x38] sm:$0xf]
        %v537 = vld [vmem:[%s494 + $0x3c] sm:$0xf]
        %v538 = vld [vmem:[%s494 + $0x40] sm:$0xf]
        %v539 = vld [vmem:[%s494 + $0x44] sm:$0xf]
        %v540 = vld [vmem:[%s494 + $0x48] sm:$0xf]
        %v541 = vld [vmem:[%s494 + $0x4c] sm:$0xf]
        %v542 = vld [vmem:[%s494 + $0x50] sm:$0xf]
        %v543 = vld [vmem:[%s494 + $0x54] sm:$0xf]
        %v544 = vld [vmem:[%s494 + $0x58] sm:$0xf]
        %v545 = vld [vmem:[%s494 + $0x5c] sm:$0xf]
        %v546 = vld [vmem:[%s494 + $0x60] sm:$0xf]
        %v547 = vld [vmem:[%s494 + $0x64] sm:$0xf]
        %v548 = vld [vmem:[%s494 + $0x68] sm:$0xf]
        %v549 = vld [vmem:[%s494 + $0x6c] sm:$0xf]
        %v550 = vld [vmem:[%s494 + $0x70] sm:$0xf]
        %v551 = vld [vmem:[%s494 + $0x74] sm:$0xf]
        %v552 = vld [vmem:[%s494 + $0x78] sm:$0xf]
        %v553 = vld [vmem:[%s494 + $0x7c] sm:$0xf]
        %v554 = vld [vmem:[%s494 + $0x80] sm:$0xf]
        %v555 = vld [vmem:[%s494 + $0x84] sm:$0xf]
        %v556 = vld [vmem:[%s494 + $0x88] sm:$0xf]
        %v557 = vld [vmem:[%s494 + $0x8c] sm:$0xf]
        %v558 = vld [vmem:[%s494 + $0x90] sm:$0xf]
        %v559 = vld [vmem:[%s494 + $0x94] sm:$0xf]
        %v560 = vld [vmem:[%s494 + $0x98] sm:$0xf]
        %v561 = vld [vmem:[%s494 + $0x9c] sm:$0xf]
        %v562 = vld [vmem:[%s494 + $0xa0] sm:$0xf]
        %v563 = vld [vmem:[%s494 + $0xa4] sm:$0xf]
        %v564 = vld [vmem:[%s494 + $0xa8] sm:$0xf]
        %v565 = vld [vmem:[%s494 + $0xac] sm:$0xf]
        %v566 = vld [vmem:[%s494 + $0xb0] sm:$0xf]
        %v567 = vld [vmem:[%s494 + $0xb4] sm:$0xf]
        %v568 = vld [vmem:[%s494 + $0xb8] sm:$0xf]
        %v569 = vld [vmem:[%s494 + $0xbc] sm:$0xf]
        %v570 = vld [vmem:[%s494 + $0xc0] sm:$0xf]
        %v571 = vld [vmem:[%s494 + $0xc4] sm:$0xf]
        %v572 = vld [vmem:[%s494 + $0xc8] sm:$0xf]
        %v573 = vld [vmem:[%s494 + $0xcc] sm:$0xf]
        %v574 = vld [vmem:[%s494 + $0xd0] sm:$0xf]
        %v575 = vld [vmem:[%s494 + $0xd4] sm:$0xf]
        %v576 = vld [vmem:[%s494 + $0xd8] sm:$0xf]
        %v577 = vld [vmem:[%s494 + $0xdc] sm:$0xf]
        %v578 = vld [vmem:[%s494 + $0xe0] sm:$0xf]
        %v579 = vld [vmem:[%s494 + $0xe4] sm:$0xf]
        %v580 = vld [vmem:[%s494 + $0xe8] sm:$0xf]
        %v581 = vld [vmem:[%s494 + $0xec] sm:$0xf]
        %v582 = vld [vmem:[%s494 + $0xf0] sm:$0xf]
        %v583 = vld [vmem:[%s494 + $0xf4] sm:$0xf]
        %v584 = vld [vmem:[%s494 + $0xf8] sm:$0xf]
        %v585 = vld [vmem:[%s494 + $0xfc] sm:$0xf]
        %v586 = vld [vmem:[%s507] sm:$0x1]
        %v587 = vunpack.c.l.bf16 %v586
        %v588 = vlaneseq
        %v589 = vshrl.u32 %v588, 7
        %v590 = vsub.s32 0, %v589
        %v591 = vrot.slane %v587, %v590
        %v594 = vunpack.c.l.b16 %v520
        %v595 = vunpack.c.h.b16 %v520
        %v596 = vunpack.c.l.b16 %v521
        %v597 = vunpack.c.h.b16 %v521
        %v598 = vpack.c.b16 %v594, %v594
        %v599 = vpack.c.b16 %v595, %v595
        %v600 = vpack.c.b16 %v596, %v596
        %v601 = vpack.c.b16 %v597, %v597
        %v670 = vunpack.c.l.b16 %v522
        %v671 = vunpack.c.l.b16 %v523
        %v672 = vunpack.c.l.b16 %v524
        %v673 = vunpack.c.l.b16 %v525
        %v674 = vunpack.c.l.b16 %v526
        %v675 = vunpack.c.l.b16 %v527
        %v676 = vunpack.c.l.b16 %v528
        %v677 = vunpack.c.l.b16 %v529
        %v678 = vunpack.c.l.b16 %v530
        %v679 = vunpack.c.l.b16 %v531
        %v680 = vunpack.c.l.b16 %v532
        %v681 = vunpack.c.l.b16 %v533
        %v682 = vunpack.c.l.b16 %v534
        %v683 = vunpack.c.l.b16 %v535
        %v684 = vunpack.c.l.b16 %v536
        %v685 = vunpack.c.l.b16 %v537
        %v686 = vunpack.c.l.b16 %v538
        %v687 = vunpack.c.l.b16 %v539
        %v688 = vunpack.c.l.b16 %v540
        %v689 = vunpack.c.l.b16 %v541
        %v690 = vunpack.c.l.b16 %v542
        %v691 = vunpack.c.l.b16 %v543
        %v692 = vunpack.c.l.b16 %v544
        %v693 = vunpack.c.l.b16 %v545
        %v694 = vunpack.c.l.b16 %v546
        %v695 = vunpack.c.l.b16 %v547
        %v696 = vunpack.c.l.b16 %v548
        %v697 = vunpack.c.l.b16 %v549
        %v698 = vunpack.c.l.b16 %v550
        %v699 = vunpack.c.l.b16 %v551
        %v700 = vunpack.c.l.b16 %v552
        %v701 = vunpack.c.l.b16 %v553
        %v702 = vunpack.c.l.b16 %v554
        %v703 = vunpack.c.l.b16 %v555
        %v704 = vunpack.c.l.b16 %v556
        %v705 = vunpack.c.l.b16 %v557
        %v706 = vunpack.c.l.b16 %v558
        %v707 = vunpack.c.l.b16 %v559
        %v708 = vunpack.c.l.b16 %v560
        %v709 = vunpack.c.l.b16 %v561
        %v710 = vunpack.c.l.b16 %v562
        %v711 = vunpack.c.l.b16 %v563
        %v712 = vunpack.c.l.b16 %v564
        %v713 = vunpack.c.l.b16 %v565
        %v714 = vunpack.c.l.b16 %v566
        %v715 = vunpack.c.l.b16 %v567
        %v716 = vunpack.c.l.b16 %v568
        %v717 = vunpack.c.l.b16 %v569
        %v718 = vunpack.c.l.b16 %v570
        %v719 = vunpack.c.l.b16 %v571
        %v720 = vunpack.c.l.b16 %v572
        %v721 = vunpack.c.l.b16 %v573
        %v722 = vunpack.c.l.b16 %v574
        %v723 = vunpack.c.l.b16 %v575
        %v724 = vunpack.c.l.b16 %v576
        %v725 = vunpack.c.l.b16 %v577
        %v726 = vunpack.c.l.b16 %v578
        %v727 = vunpack.c.l.b16 %v579
        %v728 = vunpack.c.l.b16 %v580
        %v729 = vunpack.c.l.b16 %v581
        %v730 = vunpack.c.l.b16 %v582
        %v731 = vunpack.c.l.b16 %v583
        %v732 = vunpack.c.l.b16 %v584
        %v733 = vunpack.c.l.b16 %v585
        %v734 = vpack.c.b16 %v671, %v670
        %v735 = vpack.c.b16 %v673, %v672
        %v736 = vpack.c.b16 %v675, %v674
        %v737 = vpack.c.b16 %v677, %v676
        %v738 = vpack.c.b16 %v679, %v678
        %v739 = vpack.c.b16 %v681, %v680
        %v740 = vpack.c.b16 %v683, %v682
        %v741 = vpack.c.b16 %v685, %v684
        %v742 = vpack.c.b16 %v687, %v686
        %v743 = vpack.c.b16 %v689, %v688
        %v744 = vpack.c.b16 %v691, %v690
        %v745 = vpack.c.b16 %v693, %v692
        %v746 = vpack.c.b16 %v695, %v694
        %v747 = vpack.c.b16 %v697, %v696
        %v748 = vpack.c.b16 %v699, %v698
        %v749 = vpack.c.b16 %v701, %v700
        %v750 = vpack.c.b16 %v703, %v702
        %v751 = vpack.c.b16 %v705, %v704
        %v752 = vpack.c.b16 %v707, %v706
        %v753 = vpack.c.b16 %v709, %v708
        %v754 = vpack.c.b16 %v711, %v710
        %v755 = vpack.c.b16 %v713, %v712
        %v756 = vpack.c.b16 %v715, %v714
        %v757 = vpack.c.b16 %v717, %v716
        %v758 = vpack.c.b16 %v719, %v718
        %v759 = vpack.c.b16 %v721, %v720
        %v760 = vpack.c.b16 %v723, %v722
        %v761 = vpack.c.b16 %v725, %v724
        %v762 = vpack.c.b16 %v727, %v726
        %v763 = vpack.c.b16 %v729, %v728
        %v764 = vpack.c.b16 %v731, %v730
        %v765 = vpack.c.b16 %v733, %v732
        %798 = vmatprep.subr.bf16.mxu0 0
        %799 = vmatpush1.bf16.msra.mxu0 %v741
        %800 = vmatprep.subr.bf16.mxu0 0
        %801 = vmatpush1.bf16.msra.mxu0 %v740
        %802 = vmatprep.subr.bf16.mxu0 0
        %803 = vmatpush1.bf16.msra.mxu0 %v739
        %804 = vmatprep.subr.bf16.mxu0 0
        %805 = vmatpush1.bf16.msra.mxu0 %v738
        %806 = vmatprep.subr.bf16.mxu0 0
        %807 = vmatpush1.bf16.msra.mxu0 %v737
        %808 = vmatprep.subr.bf16.mxu0 0
        %809 = vmatpush1.bf16.msra.mxu0 %v736
        %810 = vmatprep.subr.bf16.mxu0 0
        %811 = vmatpush1.bf16.msra.mxu0 %v735
        %812 = vmatprep.subr.bf16.mxu0 0
        %813 = vmatpush1.bf16.msra.mxu0 %v734
        %814 = vmatprep.subr.bf16.mxu0 0
        %815 = vmatpush2.bf16.msra.mxu0 %v749
        %816 = vmatprep.subr.bf16.mxu0 0
        %817 = vmatpush2.bf16.msra.mxu0 %v748
        %818 = vmatprep.subr.bf16.mxu0 0
        %819 = vmatpush2.bf16.msra.mxu0 %v747
        %820 = vmatprep.subr.bf16.mxu0 0
        %821 = vmatpush2.bf16.msra.mxu0 %v746
        %822 = vmatprep.subr.bf16.mxu0 0
        %823 = vmatpush2.bf16.msra.mxu0 %v745
        %824 = vmatprep.subr.bf16.mxu0 0
        %825 = vmatpush2.bf16.msra.mxu0 %v744
        %826 = vmatprep.subr.bf16.mxu0 0
        %827 = vmatpush2.bf16.msra.mxu0 %v743
        %828 = vmatprep.subr.bf16.mxu0 0
        %829 = vmatpush2.bf16.msra.mxu0 %v742
        %830 = vmatprep.mubr.bf16.mxu0 %v599
        %831 = vmatmul.mubr.bf16.gmra.mxu0 %v598
        %v832 = vpop.f32.mrf.mxu0
        %v833 = vadd.f32 %v591, %v832
        %v834 = vpop.f32.mrf.mxu0
        %v835 = vpop.f32.mrf.mxu0
        %v836 = vpop.f32.mrf.mxu0
        %837 = vdwg.mxu0
        %838 = vmatprep.subr.bf16.mxu0 0
        %839 = vmatpush1.bf16.msra.mxu0 %v757
        %840 = vmatprep.subr.bf16.mxu0 0
        %841 = vmatpush1.bf16.msra.mxu0 %v756
        %842 = vmatprep.subr.bf16.mxu0 0
        %843 = vmatpush1.bf16.msra.mxu0 %v755
        %844 = vmatprep.subr.bf16.mxu0 0
        %845 = vmatpush1.bf16.msra.mxu0 %v754
        %846 = vmatprep.subr.bf16.mxu0 0
        %847 = vmatpush1.bf16.msra.mxu0 %v753
        %848 = vmatprep.subr.bf16.mxu0 0
        %849 = vmatpush1.bf16.msra.mxu0 %v752
        %850 = vmatprep.subr.bf16.mxu0 0
        %851 = vmatpush1.bf16.msra.mxu0 %v751
        %852 = vmatprep.subr.bf16.mxu0 0
        %853 = vmatpush1.bf16.msra.mxu0 %v750
        %854 = vmatprep.subr.bf16.mxu0 0
        %855 = vmatpush2.bf16.msra.mxu0 %v765
        %856 = vmatprep.subr.bf16.mxu0 0
        %857 = vmatpush2.bf16.msra.mxu0 %v764
        %858 = vmatprep.subr.bf16.mxu0 0
        %859 = vmatpush2.bf16.msra.mxu0 %v763
        %860 = vmatprep.subr.bf16.mxu0 0
        %861 = vmatpush2.bf16.msra.mxu0 %v762
        %862 = vmatprep.subr.bf16.mxu0 0
        %863 = vmatpush2.bf16.msra.mxu0 %v761
        %864 = vmatprep.subr.bf16.mxu0 0
        %865 = vmatpush2.bf16.msra.mxu0 %v760
        %866 = vmatprep.subr.bf16.mxu0 0
        %867 = vmatpush2.bf16.msra.mxu0 %v759
        %868 = vmatprep.subr.bf16.mxu0 0
        %869 = vmatpush2.bf16.msra.mxu0 %v758
        %870 = vmatprep.mubr.bf16.mxu0 %v601
        %871 = vmatmul.mubr.bf16.gmra.mxu0 %v600
        %v872 = vpop.f32.mrf.mxu0
        %v873 = vadd.f32 %v833, %v872
        %v874 = vpop.f32.mrf.mxu0
        %v875 = vpop.f32.mrf.mxu0
        %v876 = vpop.f32.mrf.mxu0
        %877 = vdwg.mxu0
        %v878 = vld [vmem:[%s499] sm:$0xf]
        %v879 = vld [vmem:[%s499 + $0x4] sm:$0xf]
        %v880 = vld [vmem:[%s499 + $0x8] sm:$0xf]
        %v881 = vld [vmem:[%s499 + $0xc] sm:$0xf]
        %v882 = vld [vmem:[%s499 + $0x10] sm:$0xf]
        %v883 = vld [vmem:[%s499 + $0x14] sm:$0xf]
        %v884 = vld [vmem:[%s499 + $0x18] sm:$0xf]
        %v885 = vld [vmem:[%s499 + $0x1c] sm:$0xf]
        %v886 = vld [vmem:[%s499 + $0x20] sm:$0xf]
        %v887 = vld [vmem:[%s499 + $0x24] sm:$0xf]
        %v888 = vld [vmem:[%s499 + $0x28] sm:$0xf]
        %v889 = vld [vmem:[%s499 + $0x2c] sm:$0xf]
        %v890 = vld [vmem:[%s499 + $0x30] sm:$0xf]
        %v891 = vld [vmem:[%s499 + $0x34] sm:$0xf]
        %v892 = vld [vmem:[%s499 + $0x38] sm:$0xf]
        %v893 = vld [vmem:[%s499 + $0x3c] sm:$0xf]
        %v894 = vld [vmem:[%s499 + $0x40] sm:$0xf]
        %v895 = vld [vmem:[%s499 + $0x44] sm:$0xf]
        %v896 = vld [vmem:[%s499 + $0x48] sm:$0xf]
        %v897 = vld [vmem:[%s499 + $0x4c] sm:$0xf]
        %v898 = vld [vmem:[%s499 + $0x50] sm:$0xf]
        %v899 = vld [vmem:[%s499 + $0x54] sm:$0xf]
        %v900 = vld [vmem:[%s499 + $0x58] sm:$0xf]
        %v901 = vld [vmem:[%s499 + $0x5c] sm:$0xf]
        %v902 = vld [vmem:[%s499 + $0x60] sm:$0xf]
        %v903 = vld [vmem:[%s499 + $0x64] sm:$0xf]
        %v904 = vld [vmem:[%s499 + $0x68] sm:$0xf]
        %v905 = vld [vmem:[%s499 + $0x6c] sm:$0xf]
        %v906 = vld [vmem:[%s499 + $0x70] sm:$0xf]
        %v907 = vld [vmem:[%s499 + $0x74] sm:$0xf]
        %v908 = vld [vmem:[%s499 + $0x78] sm:$0xf]
        %v909 = vld [vmem:[%s499 + $0x7c] sm:$0xf]
        %v910 = vld [vmem:[%s499 + $0x80] sm:$0xf]
        %v911 = vld [vmem:[%s499 + $0x84] sm:$0xf]
        %v912 = vld [vmem:[%s499 + $0x88] sm:$0xf]
        %v913 = vld [vmem:[%s499 + $0x8c] sm:$0xf]
        %v914 = vld [vmem:[%s499 + $0x90] sm:$0xf]
        %v915 = vld [vmem:[%s499 + $0x94] sm:$0xf]
        %v916 = vld [vmem:[%s499 + $0x98] sm:$0xf]
        %v917 = vld [vmem:[%s499 + $0x9c] sm:$0xf]
        %v918 = vld [vmem:[%s499 + $0xa0] sm:$0xf]
        %v919 = vld [vmem:[%s499 + $0xa4] sm:$0xf]
        %v920 = vld [vmem:[%s499 + $0xa8] sm:$0xf]
        %v921 = vld [vmem:[%s499 + $0xac] sm:$0xf]
        %v922 = vld [vmem:[%s499 + $0xb0] sm:$0xf]
        %v923 = vld [vmem:[%s499 + $0xb4] sm:$0xf]
        %v924 = vld [vmem:[%s499 + $0xb8] sm:$0xf]
        %v925 = vld [vmem:[%s499 + $0xbc] sm:$0xf]
        %v926 = vld [vmem:[%s499 + $0xc0] sm:$0xf]
        %v927 = vld [vmem:[%s499 + $0xc4] sm:$0xf]
        %v928 = vld [vmem:[%s499 + $0xc8] sm:$0xf]
        %v929 = vld [vmem:[%s499 + $0xcc] sm:$0xf]
        %v930 = vld [vmem:[%s499 + $0xd0] sm:$0xf]
        %v931 = vld [vmem:[%s499 + $0xd4] sm:$0xf]
        %v932 = vld [vmem:[%s499 + $0xd8] sm:$0xf]
        %v933 = vld [vmem:[%s499 + $0xdc] sm:$0xf]
        %v934 = vld [vmem:[%s499 + $0xe0] sm:$0xf]
        %v935 = vld [vmem:[%s499 + $0xe4] sm:$0xf]
        %v936 = vld [vmem:[%s499 + $0xe8] sm:$0xf]
        %v937 = vld [vmem:[%s499 + $0xec] sm:$0xf]
        %v938 = vld [vmem:[%s499 + $0xf0] sm:$0xf]
        %v939 = vld [vmem:[%s499 + $0xf4] sm:$0xf]
        %v940 = vld [vmem:[%s499 + $0xf8] sm:$0xf]
        %v941 = vld [vmem:[%s499 + $0xfc] sm:$0xf]
        %v942 = vld [vmem:[%s510] sm:$0x1]
        %v943 = vunpack.c.l.bf16 %v942
        %v944 = vlaneseq
        %v945 = vshrl.u32 %v944, 7
        %v946 = vsub.s32 0, %v945
        %v947 = vrot.slane %v943, %v946
        %v1012 = vunpack.c.l.b16 %v878
        %v1013 = vunpack.c.l.b16 %v879
        %v1014 = vunpack.c.l.b16 %v880
        %v1015 = vunpack.c.l.b16 %v881
        %v1016 = vunpack.c.l.b16 %v882
        %v1017 = vunpack.c.l.b16 %v883
        %v1018 = vunpack.c.l.b16 %v884
        %v1019 = vunpack.c.l.b16 %v885
        %v1020 = vunpack.c.l.b16 %v886
        %v1021 = vunpack.c.l.b16 %v887
        %v1022 = vunpack.c.l.b16 %v888
        %v1023 = vunpack.c.l.b16 %v889
        %v1024 = vunpack.c.l.b16 %v890
        %v1025 = vunpack.c.l.b16 %v891
        %v1026 = vunpack.c.l.b16 %v892
        %v1027 = vunpack.c.l.b16 %v893
        %v1028 = vunpack.c.l.b16 %v894
        %v1029 = vunpack.c.l.b16 %v895
        %v1030 = vunpack.c.l.b16 %v896
        %v1031 = vunpack.c.l.b16 %v897
        %v1032 = vunpack.c.l.b16 %v898
        %v1033 = vunpack.c.l.b16 %v899
        %v1034 = vunpack.c.l.b16 %v900
        %v1035 = vunpack.c.l.b16 %v901
        %v1036 = vunpack.c.l.b16 %v902
        %v1037 = vunpack.c.l.b16 %v903
        %v1038 = vunpack.c.l.b16 %v904
        %v1039 = vunpack.c.l.b16 %v905
        %v1040 = vunpack.c.l.b16 %v906
        %v1041 = vunpack.c.l.b16 %v907
        %v1042 = vunpack.c.l.b16 %v908
        %v1043 = vunpack.c.l.b16 %v909
        %v1044 = vunpack.c.l.b16 %v910
        %v1045 = vunpack.c.l.b16 %v911
        %v1046 = vunpack.c.l.b16 %v912
        %v1047 = vunpack.c.l.b16 %v913
        %v1048 = vunpack.c.l.b16 %v914
        %v1049 = vunpack.c.l.b16 %v915
        %v1050 = vunpack.c.l.b16 %v916
        %v1051 = vunpack.c.l.b16 %v917
        %v1052 = vunpack.c.l.b16 %v918
        %v1053 = vunpack.c.l.b16 %v919
        %v1054 = vunpack.c.l.b16 %v920
        %v1055 = vunpack.c.l.b16 %v921
        %v1056 = vunpack.c.l.b16 %v922
        %v1057 = vunpack.c.l.b16 %v923
        %v1058 = vunpack.c.l.b16 %v924
        %v1059 = vunpack.c.l.b16 %v925
        %v1060 = vunpack.c.l.b16 %v926
        %v1061 = vunpack.c.l.b16 %v927
        %v1062 = vunpack.c.l.b16 %v928
        %v1063 = vunpack.c.l.b16 %v929
        %v1064 = vunpack.c.l.b16 %v930
        %v1065 = vunpack.c.l.b16 %v931
        %v1066 = vunpack.c.l.b16 %v932
        %v1067 = vunpack.c.l.b16 %v933
        %v1068 = vunpack.c.l.b16 %v934
        %v1069 = vunpack.c.l.b16 %v935
        %v1070 = vunpack.c.l.b16 %v936
        %v1071 = vunpack.c.l.b16 %v937
        %v1072 = vunpack.c.l.b16 %v938
        %v1073 = vunpack.c.l.b16 %v939
        %v1074 = vunpack.c.l.b16 %v940
        %v1075 = vunpack.c.l.b16 %v941
        %v1076 = vpack.c.b16 %v1013, %v1012
        %v1077 = vpack.c.b16 %v1015, %v1014
        %v1078 = vpack.c.b16 %v1017, %v1016
        %v1079 = vpack.c.b16 %v1019, %v1018
        %v1080 = vpack.c.b16 %v1021, %v1020
        %v1081 = vpack.c.b16 %v1023, %v1022
        %v1082 = vpack.c.b16 %v1025, %v1024
        %v1083 = vpack.c.b16 %v1027, %v1026
        %v1084 = vpack.c.b16 %v1029, %v1028
        %v1085 = vpack.c.b16 %v1031, %v1030
        %v1086 = vpack.c.b16 %v1033, %v1032
        %v1087 = vpack.c.b16 %v1035, %v1034
        %v1088 = vpack.c.b16 %v1037, %v1036
        %v1089 = vpack.c.b16 %v1039, %v1038
        %v1090 = vpack.c.b16 %v1041, %v1040
        %v1091 = vpack.c.b16 %v1043, %v1042
        %v1092 = vpack.c.b16 %v1045, %v1044
        %v1093 = vpack.c.b16 %v1047, %v1046
        %v1094 = vpack.c.b16 %v1049, %v1048
        %v1095 = vpack.c.b16 %v1051, %v1050
        %v1096 = vpack.c.b16 %v1053, %v1052
        %v1097 = vpack.c.b16 %v1055, %v1054
        %v1098 = vpack.c.b16 %v1057, %v1056
        %v1099 = vpack.c.b16 %v1059, %v1058
        %v1100 = vpack.c.b16 %v1061, %v1060
        %v1101 = vpack.c.b16 %v1063, %v1062
        %v1102 = vpack.c.b16 %v1065, %v1064
        %v1103 = vpack.c.b16 %v1067, %v1066
        %v1104 = vpack.c.b16 %v1069, %v1068
        %v1105 = vpack.c.b16 %v1071, %v1070
        %v1106 = vpack.c.b16 %v1073, %v1072
        %v1107 = vpack.c.b16 %v1075, %v1074
        %1140 = vmatprep.subr.bf16.mxu0 0
        %1141 = vmatpush1.bf16.msra.mxu0 %v1083
        %1142 = vmatprep.subr.bf16.mxu0 0
        %1143 = vmatpush1.bf16.msra.mxu0 %v1082
        %1144 = vmatprep.subr.bf16.mxu0 0
        %1145 = vmatpush1.bf16.msra.mxu0 %v1081
        %1146 = vmatprep.subr.bf16.mxu0 0
        %1147 = vmatpush1.bf16.msra.mxu0 %v1080
        %1148 = vmatprep.subr.bf16.mxu0 0
        %1149 = vmatpush1.bf16.msra.mxu0 %v1079
        %1150 = vmatprep.subr.bf16.mxu0 0
        %1151 = vmatpush1.bf16.msra.mxu0 %v1078
        %1152 = vmatprep.subr.bf16.mxu0 0
        %1153 = vmatpush1.bf16.msra.mxu0 %v1077
        %1154 = vmatprep.subr.bf16.mxu0 0
        %1155 = vmatpush1.bf16.msra.mxu0 %v1076
        %1156 = vmatprep.subr.bf16.mxu0 0
        %1157 = vmatpush2.bf16.msra.mxu0 %v1091
        %1158 = vmatprep.subr.bf16.mxu0 0
        %1159 = vmatpush2.bf16.msra.mxu0 %v1090
        %1160 = vmatprep.subr.bf16.mxu0 0
        %1161 = vmatpush2.bf16.msra.mxu0 %v1089
        %1162 = vmatprep.subr.bf16.mxu0 0
        %1163 = vmatpush2.bf16.msra.mxu0 %v1088
        %1164 = vmatprep.subr.bf16.mxu0 0
        %1165 = vmatpush2.bf16.msra.mxu0 %v1087
        %1166 = vmatprep.subr.bf16.mxu0 0
        %1167 = vmatpush2.bf16.msra.mxu0 %v1086
        %1168 = vmatprep.subr.bf16.mxu0 0
        %1169 = vmatpush2.bf16.msra.mxu0 %v1085
        %1170 = vmatprep.subr.bf16.mxu0 0
        %1171 = vmatpush2.bf16.msra.mxu0 %v1084
        %1172 = vmatprep.mubr.bf16.mxu0 %v599
        %1173 = vmatmul.mubr.bf16.gmra.mxu0 %v598
        %v1174 = vpop.f32.mrf.mxu0
        %v1175 = vadd.f32 %v947, %v1174
        %v1176 = vpop.f32.mrf.mxu0
        %v1177 = vpop.f32.mrf.mxu0
        %v1178 = vpop.f32.mrf.mxu0
        %1179 = vdwg.mxu0
        %1180 = vmatprep.subr.bf16.mxu0 0
        %1181 = vmatpush1.bf16.msra.mxu0 %v1099
        %1182 = vmatprep.subr.bf16.mxu0 0
        %1183 = vmatpush1.bf16.msra.mxu0 %v1098
        %1184 = vmatprep.subr.bf16.mxu0 0
        %1185 = vmatpush1.bf16.msra.mxu0 %v1097
        %1186 = vmatprep.subr.bf16.mxu0 0
        %1187 = vmatpush1.bf16.msra.mxu0 %v1096
        %1188 = vmatprep.subr.bf16.mxu0 0
        %1189 = vmatpush1.bf16.msra.mxu0 %v1095
        %1190 = vmatprep.subr.bf16.mxu0 0
        %1191 = vmatpush1.bf16.msra.mxu0 %v1094
        %1192 = vmatprep.subr.bf16.mxu0 0
        %1193 = vmatpush1.bf16.msra.mxu0 %v1093
        %1194 = vmatprep.subr.bf16.mxu0 0
        %1195 = vmatpush1.bf16.msra.mxu0 %v1092
        %1196 = vmatprep.subr.bf16.mxu0 0
        %1197 = vmatpush2.bf16.msra.mxu0 %v1107
        %1198 = vmatprep.subr.bf16.mxu0 0
        %1199 = vmatpush2.bf16.msra.mxu0 %v1106
        %1200 = vmatprep.subr.bf16.mxu0 0
        %1201 = vmatpush2.bf16.msra.mxu0 %v1105
        %1202 = vmatprep.subr.bf16.mxu0 0
        %1203 = vmatpush2.bf16.msra.mxu0 %v1104
        %1204 = vmatprep.subr.bf16.mxu0 0
        %1205 = vmatpush2.bf16.msra.mxu0 %v1103
        %1206 = vmatprep.subr.bf16.mxu0 0
        %1207 = vmatpush2.bf16.msra.mxu0 %v1102
        %1208 = vmatprep.subr.bf16.mxu0 0
        %1209 = vmatpush2.bf16.msra.mxu0 %v1101
        %1210 = vmatprep.subr.bf16.mxu0 0
        %1211 = vmatpush2.bf16.msra.mxu0 %v1100
        %1212 = vmatprep.mubr.bf16.mxu0 %v601
        %1213 = vmatmul.mubr.bf16.gmra.mxu0 %v600
        %v1214 = vpop.f32.mrf.mxu0
        %v1215 = vadd.f32 %v1175, %v1214
        %v1216 = vpop.f32.mrf.mxu0
        %v1217 = vpop.f32.mrf.mxu0
        %v1218 = vpop.f32.mrf.mxu0
        %1219 = vdwg.mxu0
        %v1220 = vld [vmem:[%s504] sm:$0xf]
        %v1221 = vld [vmem:[%s504 + $0x4] sm:$0xf]
        %v1222 = vld [vmem:[%s504 + $0x8] sm:$0xf]
        %v1223 = vld [vmem:[%s504 + $0xc] sm:$0xf]
        %v1224 = vld [vmem:[%s504 + $0x10] sm:$0xf]
        %v1225 = vld [vmem:[%s504 + $0x14] sm:$0xf]
        %v1226 = vld [vmem:[%s504 + $0x18] sm:$0xf]
        %v1227 = vld [vmem:[%s504 + $0x1c] sm:$0xf]
        %v1228 = vld [vmem:[%s504 + $0x20] sm:$0xf]
        %v1229 = vld [vmem:[%s504 + $0x24] sm:$0xf]
        %v1230 = vld [vmem:[%s504 + $0x28] sm:$0xf]
        %v1231 = vld [vmem:[%s504 + $0x2c] sm:$0xf]
        %v1232 = vld [vmem:[%s504 + $0x30] sm:$0xf]
        %v1233 = vld [vmem:[%s504 + $0x34] sm:$0xf]
        %v1234 = vld [vmem:[%s504 + $0x38] sm:$0xf]
        %v1235 = vld [vmem:[%s504 + $0x3c] sm:$0xf]
        %v1236 = vld [vmem:[%s504 + $0x40] sm:$0xf]
        %v1237 = vld [vmem:[%s504 + $0x44] sm:$0xf]
        %v1238 = vld [vmem:[%s504 + $0x48] sm:$0xf]
        %v1239 = vld [vmem:[%s504 + $0x4c] sm:$0xf]
        %v1240 = vld [vmem:[%s504 + $0x50] sm:$0xf]
        %v1241 = vld [vmem:[%s504 + $0x54] sm:$0xf]
        %v1242 = vld [vmem:[%s504 + $0x58] sm:$0xf]
        %v1243 = vld [vmem:[%s504 + $0x5c] sm:$0xf]
        %v1244 = vld [vmem:[%s504 + $0x60] sm:$0xf]
        %v1245 = vld [vmem:[%s504 + $0x64] sm:$0xf]
        %v1246 = vld [vmem:[%s504 + $0x68] sm:$0xf]
        %v1247 = vld [vmem:[%s504 + $0x6c] sm:$0xf]
        %v1248 = vld [vmem:[%s504 + $0x70] sm:$0xf]
        %v1249 = vld [vmem:[%s504 + $0x74] sm:$0xf]
        %v1250 = vld [vmem:[%s504 + $0x78] sm:$0xf]
        %v1251 = vld [vmem:[%s504 + $0x7c] sm:$0xf]
        %v1252 = vld [vmem:[%s504 + $0x80] sm:$0xf]
        %v1253 = vld [vmem:[%s504 + $0x84] sm:$0xf]
        %v1254 = vld [vmem:[%s504 + $0x88] sm:$0xf]
        %v1255 = vld [vmem:[%s504 + $0x8c] sm:$0xf]
        %v1256 = vld [vmem:[%s504 + $0x90] sm:$0xf]
        %v1257 = vld [vmem:[%s504 + $0x94] sm:$0xf]
        %v1258 = vld [vmem:[%s504 + $0x98] sm:$0xf]
        %v1259 = vld [vmem:[%s504 + $0x9c] sm:$0xf]
        %v1260 = vld [vmem:[%s504 + $0xa0] sm:$0xf]
        %v1261 = vld [vmem:[%s504 + $0xa4] sm:$0xf]
        %v1262 = vld [vmem:[%s504 + $0xa8] sm:$0xf]
        %v1263 = vld [vmem:[%s504 + $0xac] sm:$0xf]
        %v1264 = vld [vmem:[%s504 + $0xb0] sm:$0xf]
        %v1265 = vld [vmem:[%s504 + $0xb4] sm:$0xf]
        %v1266 = vld [vmem:[%s504 + $0xb8] sm:$0xf]
        %v1267 = vld [vmem:[%s504 + $0xbc] sm:$0xf]
        %v1268 = vld [vmem:[%s504 + $0xc0] sm:$0xf]
        %v1269 = vld [vmem:[%s504 + $0xc4] sm:$0xf]
        %v1270 = vld [vmem:[%s504 + $0xc8] sm:$0xf]
        %v1271 = vld [vmem:[%s504 + $0xcc] sm:$0xf]
        %v1272 = vld [vmem:[%s504 + $0xd0] sm:$0xf]
        %v1273 = vld [vmem:[%s504 + $0xd4] sm:$0xf]
        %v1274 = vld [vmem:[%s504 + $0xd8] sm:$0xf]
        %v1275 = vld [vmem:[%s504 + $0xdc] sm:$0xf]
        %v1276 = vld [vmem:[%s504 + $0xe0] sm:$0xf]
        %v1277 = vld [vmem:[%s504 + $0xe4] sm:$0xf]
        %v1278 = vld [vmem:[%s504 + $0xe8] sm:$0xf]
        %v1279 = vld [vmem:[%s504 + $0xec] sm:$0xf]
        %v1280 = vld [vmem:[%s504 + $0xf0] sm:$0xf]
        %v1281 = vld [vmem:[%s504 + $0xf4] sm:$0xf]
        %v1282 = vld [vmem:[%s504 + $0xf8] sm:$0xf]
        %v1283 = vld [vmem:[%s504 + $0xfc] sm:$0xf]
        %v1284 = vld [vmem:[%s513] sm:$0x1]
        %v1285 = vunpack.c.l.bf16 %v1284
        %v1286 = vlaneseq
        %v1287 = vshrl.u32 %v1286, 7
        %v1288 = vsub.s32 0, %v1287
        %v1289 = vrot.slane %v1285, %v1288
        %v1354 = vunpack.c.l.b16 %v1220
        %v1355 = vunpack.c.l.b16 %v1221
        %v1356 = vunpack.c.l.b16 %v1222
        %v1357 = vunpack.c.l.b16 %v1223
        %v1358 = vunpack.c.l.b16 %v1224
        %v1359 = vunpack.c.l.b16 %v1225
        %v1360 = vunpack.c.l.b16 %v1226
        %v1361 = vunpack.c.l.b16 %v1227
        %v1362 = vunpack.c.l.b16 %v1228
        %v1363 = vunpack.c.l.b16 %v1229
        %v1364 = vunpack.c.l.b16 %v1230
        %v1365 = vunpack.c.l.b16 %v1231
        %v1366 = vunpack.c.l.b16 %v1232
        %v1367 = vunpack.c.l.b16 %v1233
        %v1368 = vunpack.c.l.b16 %v1234
        %v1369 = vunpack.c.l.b16 %v1235
        %v1370 = vunpack.c.l.b16 %v1236
        %v1371 = vunpack.c.l.b16 %v1237
        %v1372 = vunpack.c.l.b16 %v1238
        %v1373 = vunpack.c.l.b16 %v1239
        %v1374 = vunpack.c.l.b16 %v1240
        %v1375 = vunpack.c.l.b16 %v1241
        %v1376 = vunpack.c.l.b16 %v1242
        %v1377 = vunpack.c.l.b16 %v1243
        %v1378 = vunpack.c.l.b16 %v1244
        %v1379 = vunpack.c.l.b16 %v1245
        %v1380 = vunpack.c.l.b16 %v1246
        %v1381 = vunpack.c.l.b16 %v1247
        %v1382 = vunpack.c.l.b16 %v1248
        %v1383 = vunpack.c.l.b16 %v1249
        %v1384 = vunpack.c.l.b16 %v1250
        %v1385 = vunpack.c.l.b16 %v1251
        %v1386 = vunpack.c.l.b16 %v1252
        %v1387 = vunpack.c.l.b16 %v1253
        %v1388 = vunpack.c.l.b16 %v1254
        %v1389 = vunpack.c.l.b16 %v1255
        %v1390 = vunpack.c.l.b16 %v1256
        %v1391 = vunpack.c.l.b16 %v1257
        %v1392 = vunpack.c.l.b16 %v1258
        %v1393 = vunpack.c.l.b16 %v1259
        %v1394 = vunpack.c.l.b16 %v1260
        %v1395 = vunpack.c.l.b16 %v1261
        %v1396 = vunpack.c.l.b16 %v1262
        %v1397 = vunpack.c.l.b16 %v1263
        %v1398 = vunpack.c.l.b16 %v1264
        %v1399 = vunpack.c.l.b16 %v1265
        %v1400 = vunpack.c.l.b16 %v1266
        %v1401 = vunpack.c.l.b16 %v1267
        %v1402 = vunpack.c.l.b16 %v1268
        %v1403 = vunpack.c.l.b16 %v1269
        %v1404 = vunpack.c.l.b16 %v1270
        %v1405 = vunpack.c.l.b16 %v1271
        %v1406 = vunpack.c.l.b16 %v1272
        %v1407 = vunpack.c.l.b16 %v1273
        %v1408 = vunpack.c.l.b16 %v1274
        %v1409 = vunpack.c.l.b16 %v1275
        %v1410 = vunpack.c.l.b16 %v1276
        %v1411 = vunpack.c.l.b16 %v1277
        %v1412 = vunpack.c.l.b16 %v1278
        %v1413 = vunpack.c.l.b16 %v1279
        %v1414 = vunpack.c.l.b16 %v1280
        %v1415 = vunpack.c.l.b16 %v1281
        %v1416 = vunpack.c.l.b16 %v1282
        %v1417 = vunpack.c.l.b16 %v1283
        %v1418 = vpack.c.b16 %v1355, %v1354
        %v1419 = vpack.c.b16 %v1357, %v1356
        %v1420 = vpack.c.b16 %v1359, %v1358
        %v1421 = vpack.c.b16 %v1361, %v1360
        %v1422 = vpack.c.b16 %v1363, %v1362
        %v1423 = vpack.c.b16 %v1365, %v1364
        %v1424 = vpack.c.b16 %v1367, %v1366
        %v1425 = vpack.c.b16 %v1369, %v1368
        %v1426 = vpack.c.b16 %v1371, %v1370
        %v1427 = vpack.c.b16 %v1373, %v1372
        %v1428 = vpack.c.b16 %v1375, %v1374
        %v1429 = vpack.c.b16 %v1377, %v1376
        %v1430 = vpack.c.b16 %v1379, %v1378
        %v1431 = vpack.c.b16 %v1381, %v1380
        %v1432 = vpack.c.b16 %v1383, %v1382
        %v1433 = vpack.c.b16 %v1385, %v1384
        %v1434 = vpack.c.b16 %v1387, %v1386
        %v1435 = vpack.c.b16 %v1389, %v1388
        %v1436 = vpack.c.b16 %v1391, %v1390
        %v1437 = vpack.c.b16 %v1393, %v1392
        %v1438 = vpack.c.b16 %v1395, %v1394
        %v1439 = vpack.c.b16 %v1397, %v1396
        %v1440 = vpack.c.b16 %v1399, %v1398
        %v1441 = vpack.c.b16 %v1401, %v1400
        %v1442 = vpack.c.b16 %v1403, %v1402
        %v1443 = vpack.c.b16 %v1405, %v1404
        %v1444 = vpack.c.b16 %v1407, %v1406
        %v1445 = vpack.c.b16 %v1409, %v1408
        %v1446 = vpack.c.b16 %v1411, %v1410
        %v1447 = vpack.c.b16 %v1413, %v1412
        %v1448 = vpack.c.b16 %v1415, %v1414
        %v1449 = vpack.c.b16 %v1417, %v1416
        %1482 = vmatprep.subr.bf16.mxu0 0
        %1483 = vmatpush1.bf16.msra.mxu0 %v1425
        %1484 = vmatprep.subr.bf16.mxu0 0
        %1485 = vmatpush1.bf16.msra.mxu0 %v1424
        %1486 = vmatprep.subr.bf16.mxu0 0
        %1487 = vmatpush1.bf16.msra.mxu0 %v1423
        %1488 = vmatprep.subr.bf16.mxu0 0
        %1489 = vmatpush1.bf16.msra.mxu0 %v1422
        %1490 = vmatprep.subr.bf16.mxu0 0
        %1491 = vmatpush1.bf16.msra.mxu0 %v1421
        %1492 = vmatprep.subr.bf16.mxu0 0
        %1493 = vmatpush1.bf16.msra.mxu0 %v1420
        %1494 = vmatprep.subr.bf16.mxu0 0
        %1495 = vmatpush1.bf16.msra.mxu0 %v1419
        %1496 = vmatprep.subr.bf16.mxu0 0
        %1497 = vmatpush1.bf16.msra.mxu0 %v1418
        %1498 = vmatprep.subr.bf16.mxu0 0
        %1499 = vmatpush2.bf16.msra.mxu0 %v1433
        %1500 = vmatprep.subr.bf16.mxu0 0
        %1501 = vmatpush2.bf16.msra.mxu0 %v1432
        %1502 = vmatprep.subr.bf16.mxu0 0
        %1503 = vmatpush2.bf16.msra.mxu0 %v1431
        %1504 = vmatprep.subr.bf16.mxu0 0
        %1505 = vmatpush2.bf16.msra.mxu0 %v1430
        %1506 = vmatprep.subr.bf16.mxu0 0
        %1507 = vmatpush2.bf16.msra.mxu0 %v1429
        %1508 = vmatprep.subr.bf16.mxu0 0
        %1509 = vmatpush2.bf16.msra.mxu0 %v1428
        %1510 = vmatprep.subr.bf16.mxu0 0
        %1511 = vmatpush2.bf16.msra.mxu0 %v1427
        %1512 = vmatprep.subr.bf16.mxu0 0
        %1513 = vmatpush2.bf16.msra.mxu0 %v1426
        %1514 = vmatprep.mubr.bf16.mxu0 %v599
        %1515 = vmatmul.mubr.bf16.gmra.mxu0 %v598
        %v1516 = vpop.f32.mrf.mxu0
        %v1517 = vadd.f32 %v1289, %v1516
        %v1518 = vpop.f32.mrf.mxu0
        %v1519 = vpop.f32.mrf.mxu0
        %v1520 = vpop.f32.mrf.mxu0
        %1521 = vdwg.mxu0
        %1522 = vmatprep.subr.bf16.mxu0 0
        %1523 = vmatpush1.bf16.msra.mxu0 %v1441
        %1524 = vmatprep.subr.bf16.mxu0 0
        %1525 = vmatpush1.bf16.msra.mxu0 %v1440
        %1526 = vmatprep.subr.bf16.mxu0 0
        %1527 = vmatpush1.bf16.msra.mxu0 %v1439
        %1528 = vmatprep.subr.bf16.mxu0 0
        %1529 = vmatpush1.bf16.msra.mxu0 %v1438
        %1530 = vmatprep.subr.bf16.mxu0 0
        %1531 = vmatpush1.bf16.msra.mxu0 %v1437
        %1532 = vmatprep.subr.bf16.mxu0 0
        %1533 = vmatpush1.bf16.msra.mxu0 %v1436
        %1534 = vmatprep.subr.bf16.mxu0 0
        %1535 = vmatpush1.bf16.msra.mxu0 %v1435
        %1536 = vmatprep.subr.bf16.mxu0 0
        %1537 = vmatpush1.bf16.msra.mxu0 %v1434
        %1538 = vmatprep.subr.bf16.mxu0 0
        %1539 = vmatpush2.bf16.msra.mxu0 %v1449
        %1540 = vmatprep.subr.bf16.mxu0 0
        %1541 = vmatpush2.bf16.msra.mxu0 %v1448
        %1542 = vmatprep.subr.bf16.mxu0 0
        %1543 = vmatpush2.bf16.msra.mxu0 %v1447
        %1544 = vmatprep.subr.bf16.mxu0 0
        %1545 = vmatpush2.bf16.msra.mxu0 %v1446
        %1546 = vmatprep.subr.bf16.mxu0 0
        %1547 = vmatpush2.bf16.msra.mxu0 %v1445
        %1548 = vmatprep.subr.bf16.mxu0 0
        %1549 = vmatpush2.bf16.msra.mxu0 %v1444
        %1550 = vmatprep.subr.bf16.mxu0 0
        %1551 = vmatpush2.bf16.msra.mxu0 %v1443
        %1552 = vmatprep.subr.bf16.mxu0 0
        %1553 = vmatpush2.bf16.msra.mxu0 %v1442
        %1554 = vmatprep.mubr.bf16.mxu0 %v601
        %1555 = vmatmul.mubr.bf16.gmra.mxu0 %v600
        %v1556 = vpop.f32.mrf.mxu0
        %v1557 = vadd.f32 %v1517, %v1556
        %v1558 = vpop.f32.mrf.mxu0
        %v1559 = vpop.f32.mrf.mxu0
        %v1560 = vpop.f32.mrf.mxu0
        %1561 = vdwg.mxu0
        %v1562 = vpack.c.bf16 %v873, %v873
        %v1563 = vpack.c.bf16 %v1215, %v1215
        %vm1564 = vcmask 523264
        %v1566 = vsel %vm1564, %v1562, 0
        %v1569 = vsel %vm1564, %v1563, 0
        %1571 = vmatprep.subr.bf16.mxu0 0
        %1572 = vmatpush1.bf16.xpose.msra.mxu0 0
        %1573 = vmatprep.subr.bf16.mxu0 0
        %1574 = vmatpush1.bf16.xpose.msra.mxu0 0
        %1575 = vmatprep.subr.bf16.mxu0 0
        %1576 = vmatpush1.bf16.xpose.msra.mxu0 0
        %1577 = vmatprep.subr.bf16.mxu0 0
        %1578 = vmatpush1.bf16.xpose.msra.mxu0 0
        %1579 = vmatprep.subr.bf16.mxu0 0
        %1580 = vmatpush1.bf16.xpose.msra.mxu0 0
        %1581 = vmatprep.subr.bf16.mxu0 0
        %1582 = vmatpush1.bf16.xpose.msra.mxu0 0
        %1583 = vmatprep.subr.bf16.mxu0 0
        %1584 = vmatpush1.bf16.xpose.msra.mxu0 0
        %1585 = vmatprep.subr.bf16.mxu0 0
        %1586 = vmatpush1.bf16.xpose.msra.mxu0 %v1569
        %1587 = vmatprep.subr.bf16.mxu0 0
        %1588 = vmatpush2.bf16.xpose.msra.mxu0 0
        %1589 = vmatprep.subr.bf16.mxu0 0
        %1590 = vmatpush2.bf16.xpose.msra.mxu0 0
        %1591 = vmatprep.subr.bf16.mxu0 0
        %1592 = vmatpush2.bf16.xpose.msra.mxu0 0
        %1593 = vmatprep.subr.bf16.mxu0 0
        %1594 = vmatpush2.bf16.xpose.msra.mxu0 0
        %1595 = vmatprep.subr.bf16.mxu0 0
        %1596 = vmatpush2.bf16.xpose.msra.mxu0 0
        %1597 = vmatprep.subr.bf16.mxu0 0
        %1598 = vmatpush2.bf16.xpose.msra.mxu0 0
        %1599 = vmatprep.subr.bf16.mxu0 0
        %1600 = vmatpush2.bf16.xpose.msra.mxu0 0
        %1601 = vmatprep.subr.bf16.mxu0 0
        %1602 = vmatpush2.bf16.xpose.msra.mxu0 0
        %1603 = vmatprep.mubr.bf16.mxu0 0
        %1604 = vmatmul.mubr.bf16.gmra.mxu0 %v1566
        %v1605 = vpop.f32.mrf.mxu0
        %v1606 = vadd.f32 0.0, %v1605
        %v1607 = vpop.f32.mrf.mxu0
        %v1608 = vpop.f32.mrf.mxu0
        %v1609 = vpop.f32.mrf.mxu0
        %1610 = vdwg.mxu0
        %v1611 = vmul.f32 %v1606, 0.125
        %vm1612 = vcmask 64512
        %v1613 = vsel %vm1612, %v1611, -inf
        %1614 = vmax.xlane.f32.xlu0 %v1613
        %v1615 = vpop.xlane.xlu0 %1614
        %v1616 = vsub.f32 %v1611, %v1615
        %v1617 = vmul.f32 %v1616, 1.442695
        %v1618 = vpow.pop %v1617
        %v1619 = vsel %vm1612, %v1618, 0.0
        %1620 = vadd.xlane.f32.xlu0 %v1619
        %v1621 = vpop.xlane.xlu0 %1620
        %v1622 = vrcp.pop %v1621
        %v1623 = vmul.f32 %v1618, %v1622
        %v1624 = vpack.c.bf16 %v1623, %v1623
        %v1625 = vpack.c.bf16 %v1557, %v1557
        %v1627 = vsel %vm1612, %v1624, 0
        %vm1629 = vcmask 1043456
        %v1631 = vsel %vm1629, %v1625, 0
        %1633 = vmatprep.subr.bf16.mxu0 0
        %1634 = vmatpush1.bf16.msra.mxu0 0
        %1635 = vmatprep.subr.bf16.mxu0 0
        %1636 = vmatpush1.bf16.msra.mxu0 0
        %1637 = vmatprep.subr.bf16.mxu0 0
        %1638 = vmatpush1.bf16.msra.mxu0 0
        %1639 = vmatprep.subr.bf16.mxu0 0
        %1640 = vmatpush1.bf16.msra.mxu0 0
        %1641 = vmatprep.subr.bf16.mxu0 0
        %1642 = vmatpush1.bf16.msra.mxu0 0
        %1643 = vmatprep.subr.bf16.mxu0 0
        %1644 = vmatpush1.bf16.msra.mxu0 0
        %1645 = vmatprep.subr.bf16.mxu0 0
        %1646 = vmatpush1.bf16.msra.mxu0 0
        %1647 = vmatprep.subr.bf16.mxu0 0
        %1648 = vmatpush1.bf16.msra.mxu0 %v1631
        %1649 = vmatprep.subr.bf16.mxu0 0
        %1650 = vmatpush2.bf16.msra.mxu0 0
        %1651 = vmatprep.subr.bf16.mxu0 0
        %1652 = vmatpush2.bf16.msra.mxu0 0
        %1653 = vmatprep.subr.bf16.mxu0 0
        %1654 = vmatpush2.bf16.msra.mxu0 0
        %1655 = vmatprep.subr.bf16.mxu0 0
        %1656 = vmatpush2.bf16.msra.mxu0 0
        %1657 = vmatprep.subr.bf16.mxu0 0
        %1658 = vmatpush2.bf16.msra.mxu0 0
        %1659 = vmatprep.subr.bf16.mxu0 0
        %1660 = vmatpush2.bf16.msra.mxu0 0
        %1661 = vmatprep.subr.bf16.mxu0 0
        %1662 = vmatpush2.bf16.msra.mxu0 0
        %1663 = vmatprep.subr.bf16.mxu0 0
        %1664 = vmatpush2.bf16.msra.mxu0 0
        %1665 = vmatprep.mubr.bf16.mxu0 0
        %1666 = vmatmul.mubr.bf16.gmra.mxu0 %v1627
        %v1667 = vpop.f32.mrf.mxu0
        %v1668 = vadd.f32 0.0, %v1667
        %v1669 = vpop.f32.mrf.mxu0
        %v1670 = vpop.f32.mrf.mxu0
        %v1671 = vpop.f32.mrf.mxu0
        %1672 = vdwg.mxu0
        %v1673 = vpack.c.bf16 %v1668, %v1668
        %v1674 = vld [vmem:[%s518] sm:$0xff]
        %v1675 = vld [vmem:[%s518 + $0x8] sm:$0xff]
        %v1676 = vld [vmem:[%s518 + $0x10] sm:$0xff]
        %v1677 = vld [vmem:[%s518 + $0x18] sm:$0xff]
        %v1678 = vld [vmem:[%s518 + $0x20] sm:$0xff]
        %v1679 = vld [vmem:[%s518 + $0x28] sm:$0xff]
        %v1680 = vld [vmem:[%s518 + $0x30] sm:$0xff]
        %v1681 = vld [vmem:[%s518 + $0x38] sm:$0xff]
        %v1682 = vld [vmem:[%s518 + $0x40] sm:$0xff]
        %v1683 = vld [vmem:[%s518 + $0x48] sm:$0xff]
        %v1684 = vld [vmem:[%s518 + $0x50] sm:$0xff]
        %v1685 = vld [vmem:[%s518 + $0x58] sm:$0xff]
        %v1686 = vld [vmem:[%s518 + $0x60] sm:$0xff]
        %v1687 = vld [vmem:[%s518 + $0x68] sm:$0xff]
        %v1688 = vld [vmem:[%s518 + $0x70] sm:$0xff]
        %v1689 = vld [vmem:[%s518 + $0x78] sm:$0xff]
        %v1706 = vunpack.c.l.b16 %v1674
        %v1707 = vunpack.c.h.b16 %v1674
        %v1708 = vunpack.c.l.b16 %v1675
        %v1709 = vunpack.c.h.b16 %v1675
        %v1710 = vunpack.c.l.b16 %v1676
        %v1711 = vunpack.c.h.b16 %v1676
        %v1712 = vunpack.c.l.b16 %v1677
        %v1713 = vunpack.c.h.b16 %v1677
        %v1714 = vunpack.c.l.b16 %v1678
        %v1715 = vunpack.c.h.b16 %v1678
        %v1716 = vunpack.c.l.b16 %v1679
        %v1717 = vunpack.c.h.b16 %v1679
        %v1718 = vunpack.c.l.b16 %v1680
        %v1719 = vunpack.c.h.b16 %v1680
        %v1720 = vunpack.c.l.b16 %v1681
        %v1721 = vunpack.c.h.b16 %v1681
        %v1722 = vunpack.c.l.b16 %v1682
        %v1723 = vunpack.c.h.b16 %v1682
        %v1724 = vunpack.c.l.b16 %v1683
        %v1725 = vunpack.c.h.b16 %v1683
        %v1726 = vunpack.c.l.b16 %v1684
        %v1727 = vunpack.c.h.b16 %v1684
        %v1728 = vunpack.c.l.b16 %v1685
        %v1729 = vunpack.c.h.b16 %v1685
        %v1730 = vunpack.c.l.b16 %v1686
        %v1731 = vunpack.c.h.b16 %v1686
        %v1732 = vunpack.c.l.b16 %v1687
        %v1733 = vunpack.c.h.b16 %v1687
        %v1734 = vunpack.c.l.b16 %v1688
        %v1735 = vunpack.c.h.b16 %v1688
        %v1736 = vunpack.c.l.b16 %v1689
        %v1737 = vunpack.c.h.b16 %v1689
        %v1738 = vpack.c.b16 %v1710, %v1706
        %v1739 = vpack.c.b16 %v1711, %v1707
        %v1740 = vpack.c.b16 %v1712, %v1708
        %v1741 = vpack.c.b16 %v1713, %v1709
        %v1742 = vpack.c.b16 %v1718, %v1714
        %v1743 = vpack.c.b16 %v1719, %v1715
        %v1744 = vpack.c.b16 %v1720, %v1716
        %v1745 = vpack.c.b16 %v1721, %v1717
        %v1746 = vpack.c.b16 %v1726, %v1722
        %v1747 = vpack.c.b16 %v1727, %v1723
        %v1748 = vpack.c.b16 %v1728, %v1724
        %v1749 = vpack.c.b16 %v1729, %v1725
        %v1750 = vpack.c.b16 %v1734, %v1730
        %v1751 = vpack.c.b16 %v1735, %v1731
        %v1752 = vpack.c.b16 %v1736, %v1732
        %v1753 = vpack.c.b16 %v1737, %v1733
        %v1771 = vsel %vm1564, %v1673, 0
        %1773 = vmatprep.subr.bf16.mxu0 0
        %1774 = vmatpush1.bf16.msra.mxu0 0
        %1775 = vmatprep.subr.bf16.mxu0 0
        %1776 = vmatpush1.bf16.msra.mxu0 0
        %1777 = vmatprep.subr.bf16.mxu0 0
        %1778 = vmatpush1.bf16.msra.mxu0 0
        %1779 = vmatprep.subr.bf16.mxu0 0
        %1780 = vmatpush1.bf16.msra.mxu0 0
        %1781 = vmatprep.subr.bf16.mxu0 %v1751
        %1782 = vmatpush1.bf16.msra.mxu0 %v1750
        %1783 = vmatprep.subr.bf16.mxu0 %v1747
        %1784 = vmatpush1.bf16.msra.mxu0 %v1746
        %1785 = vmatprep.subr.bf16.mxu0 %v1743
        %1786 = vmatpush1.bf16.msra.mxu0 %v1742
        %1787 = vmatprep.subr.bf16.mxu0 %v1739
        %1788 = vmatpush1.bf16.msra.mxu0 %v1738
        %1789 = vmatprep.subr.bf16.mxu0 0
        %1790 = vmatpush2.bf16.msra.mxu0 0
        %1791 = vmatprep.subr.bf16.mxu0 0
        %1792 = vmatpush2.bf16.msra.mxu0 0
        %1793 = vmatprep.subr.bf16.mxu0 0
        %1794 = vmatpush2.bf16.msra.mxu0 0
        %1795 = vmatprep.subr.bf16.mxu0 0
        %1796 = vmatpush2.bf16.msra.mxu0 0
        %1797 = vmatprep.subr.bf16.mxu0 0
        %1798 = vmatpush2.bf16.msra.mxu0 0
        %1799 = vmatprep.subr.bf16.mxu0 0
        %1800 = vmatpush2.bf16.msra.mxu0 0
        %1801 = vmatprep.subr.bf16.mxu0 0
        %1802 = vmatpush2.bf16.msra.mxu0 0
        %1803 = vmatprep.subr.bf16.mxu0 0
        %1804 = vmatpush2.bf16.msra.mxu0 0
        %1805 = vmatprep.mubr.bf16.mxu0 0
        %1806 = vmatmul.mubr.bf16.gmra.mxu0 %v1771
        %v1807 = vpop.f32.mrf.mxu0
        %v1808 = vadd.f32 0.0, %v1807
        %v1809 = vpop.f32.mrf.mxu0
        %v1810 = vadd.f32 0.0, %v1809
        %v1811 = vpop.f32.mrf.mxu0
        %v1812 = vpop.f32.mrf.mxu0
        %1813 = vdwg.mxu0
        %1814 = vmatprep.subr.bf16.mxu0 0
        %1815 = vmatpush1.bf16.msra.mxu0 0
        %1816 = vmatprep.subr.bf16.mxu0 0
        %1817 = vmatpush1.bf16.msra.mxu0 0
        %1818 = vmatprep.subr.bf16.mxu0 0
        %1819 = vmatpush1.bf16.msra.mxu0 0
        %1820 = vmatprep.subr.bf16.mxu0 0
        %1821 = vmatpush1.bf16.msra.mxu0 0
        %1822 = vmatprep.subr.bf16.mxu0 %v1753
        %1823 = vmatpush1.bf16.msra.mxu0 %v1752
        %1824 = vmatprep.subr.bf16.mxu0 %v1749
        %1825 = vmatpush1.bf16.msra.mxu0 %v1748
        %1826 = vmatprep.subr.bf16.mxu0 %v1745
        %1827 = vmatpush1.bf16.msra.mxu0 %v1744
        %1828 = vmatprep.subr.bf16.mxu0 %v1741
        %1829 = vmatpush1.bf16.msra.mxu0 %v1740
        %1830 = vmatprep.subr.bf16.mxu0 0
        %1831 = vmatpush2.bf16.msra.mxu0 0
        %1832 = vmatprep.subr.bf16.mxu0 0
        %1833 = vmatpush2.bf16.msra.mxu0 0
        %1834 = vmatprep.subr.bf16.mxu0 0
        %1835 = vmatpush2.bf16.msra.mxu0 0
        %1836 = vmatprep.subr.bf16.mxu0 0
        %1837 = vmatpush2.bf16.msra.mxu0 0
        %1838 = vmatprep.subr.bf16.mxu0 0
        %1839 = vmatpush2.bf16.msra.mxu0 0
        %1840 = vmatprep.subr.bf16.mxu0 0
        %1841 = vmatpush2.bf16.msra.mxu0 0
        %1842 = vmatprep.subr.bf16.mxu0 0
        %1843 = vmatpush2.bf16.msra.mxu0 0
        %1844 = vmatprep.subr.bf16.mxu0 0
        %1845 = vmatpush2.bf16.msra.mxu0 0
        %1846 = vmatprep.mubr.bf16.mxu0 0
        %1847 = vmatmul.mubr.bf16.gmra.mxu0 %v1771
        %v1848 = vpop.f32.mrf.mxu0
        %v1849 = vadd.f32 0.0, %v1848
        %v1850 = vpop.f32.mrf.mxu0
        %v1851 = vadd.f32 0.0, %v1850
        %v1852 = vpop.f32.mrf.mxu0
        %v1853 = vpop.f32.mrf.mxu0
        %1854 = vdwg.mxu0
        %p1855 = scmp.eq.s32.totalorder %s30, 0
        // Predicated region
        $region65: #{tpu_custom_call.1} parent=63 // pred_check
          %p1856 = pneg %p1855
        $region66: #{tpu_custom_call.1} parent=63 // pred_check_branch
          %1858 = sbr.rel (%p1856) target = $region68
        $region67: #{tpu_custom_call.1} parent=63 // pred_region
          %1859 = vst [vmem:[#allocation2] sm:$0xff] 0.0
          %1860 = vst [vmem:[#allocation2 + $0x8] sm:$0xff] 0.0
          %1861 = vst [vmem:[#allocation2 + $0x10] sm:$0xff] 0.0
          %1862 = vst [vmem:[#allocation2 + $0x18] sm:$0xff] 0.0
        $region68: #{tpu_custom_call.1} parent=63 // pred_fallthru
          _
        %v1863 = vld [vmem:[#allocation2] sm:$0xff]
        %v1864 = vld [vmem:[#allocation2 + $0x8] sm:$0xff]
        %v1865 = vld [vmem:[#allocation2 + $0x10] sm:$0xff]
        %v1866 = vld [vmem:[#allocation2 + $0x18] sm:$0xff]
        %v1867 = vadd.f32 %v1863, %v1808
        %v1868 = vadd.f32 %v1864, %v1810
        %v1869 = vadd.f32 %v1865, %v1849
        %v1870 = vadd.f32 %v1866, %v1851
        %1871 = vst [vmem:[#allocation2] sm:$0xff] %v1867
        %1872 = vst [vmem:[#allocation2 + $0x8] sm:$0xff] %v1868
        %1873 = vst [vmem:[#allocation2 + $0x10] sm:$0xff] %v1869
        %1874 = vst [vmem:[#allocation2 + $0x18] sm:$0xff] %v1870
        %p1875 = scmp.eq.s32.totalorder %s30, 7
        // Predicated region
        $region69: #{tpu_custom_call.1} parent=63 // pred_check
          %p1876 = pneg %p1875
        $region70: #{tpu_custom_call.1} parent=63 // pred_check_branch
          %1878 = sbr.rel (%p1876) target = $region72
        $region71: #{tpu_custom_call.1} parent=63 // pred_region
          %v1879 = vunpack.c.l.bf16 %v520
          %v1880 = vunpack.c.h.bf16 %v520
          %v1881 = vunpack.c.l.bf16 %v521
          %v1882 = vunpack.c.h.bf16 %v521
          %v1883 = vld [vmem:[#allocation2] sm:$0xff]
          %v1884 = vld [vmem:[#allocation2 + $0x8] sm:$0xff]
          %v1885 = vld [vmem:[#allocation2 + $0x10] sm:$0xff]
          %v1886 = vld [vmem:[#allocation2 + $0x18] sm:$0xff]
          %v1887 = vadd.f32 %v1879, %v1883
          %v1888 = vadd.f32 %v1880, %v1884
          %v1889 = vadd.f32 %v1881, %v1885
          %v1890 = vadd.f32 %v1882, %v1886
          %v1891 = vld [vmem:[%s8] sm:$0xf]
          %v1892 = vunpack.c.l.bf16 %v1891
          %v1894 = vlaneseq
          %v1895 = vshrl.u32 %v1894, 7
          %v1896 = vsub.s32 0, %v1895
          %v1897 = vrot.slane %v1892, %v1896
          %v1898 = vlaneseq
          %v1899 = vshrl.u32 %v1898, 7
          %v1900 = vsub.s32 2, %v1899
          %v1901 = vrot.slane %v1892, %v1900
          %v1902 = vlaneseq
          %v1903 = vshrl.u32 %v1902, 7
          %v1904 = vsub.s32 4, %v1903
          %v1905 = vrot.slane %v1892, %v1904
          %v1906 = vlaneseq
          %v1907 = vshrl.u32 %v1906, 7
          %v1908 = vsub.s32 6, %v1907
          %v1909 = vrot.slane %v1892, %v1908
          %v1914 = vlaneseq
          %v1915 = vshrl.u32 %v1914, 7
          %v1916 = vsub.s32 0, %v1915
          %v1917 = vrot.slane %v1897, %v1916
          %v1918 = vlaneseq
          %v1919 = vshrl.u32 %v1918, 7
          %v1920 = vsub.s32 0, %v1919
          %v1921 = vrot.slane %v1901, %v1920
          %v1922 = vlaneseq
          %v1923 = vshrl.u32 %v1922, 7
          %v1924 = vsub.s32 0, %v1923
          %v1925 = vrot.slane %v1905, %v1924
          %v1926 = vlaneseq
          %v1927 = vshrl.u32 %v1926, 7
          %v1928 = vsub.s32 0, %v1927
          %v1929 = vrot.slane %v1909, %v1928
          %v1930 = vadd.f32 %v1887, %v1917
          %v1931 = vadd.f32 %v1888, %v1921
          %v1932 = vadd.f32 %v1889, %v1925
          %v1933 = vadd.f32 %v1890, %v1929
          %v1934 = vadd.f32 %v1930, %v1931
          %v1935 = vadd.f32 %v1934, %v1932
          %v1936 = vadd.f32 %v1935, %v1933
          %1937 = vadd.xlane.f32.xlu0 %v1936
          %v1938 = vpop.xlane.xlu0 %1937
          %v1939 = vrcp.pop 512.0
          %v1940 = vmul.f32 %v1938, %v1939
          %v1941 = vsub.f32 %v1930, %v1940
          %v1942 = vsub.f32 %v1931, %v1940
          %v1943 = vsub.f32 %v1932, %v1940
          %v1944 = vsub.f32 %v1933, %v1940
          %v1945 = vmul.f32 %v1941, %v1941
          %v1946 = vmul.f32 %v1942, %v1942
          %v1947 = vmul.f32 %v1943, %v1943
          %v1948 = vmul.f32 %v1944, %v1944
          %v1949 = vadd.f32 %v1945, %v1946
          %v1950 = vadd.f32 %v1949, %v1947
          %v1951 = vadd.f32 %v1950, %v1948
          %1952 = vadd.xlane.f32.xlu0 %v1951
          %v1953 = vpop.xlane.xlu0 %1952
          %v1954 = vmul.f32 %v1953, %v1939
          %v1955 = vadd.f32 %v1954, 1e-05
          %v1956 = vrsqrt.pop %v1955
          %v1957 = vmul.f32 %v1941, %v1956
          %v1958 = vmul.f32 %v1942, %v1956
          %v1959 = vmul.f32 %v1943, %v1956
          %v1960 = vmul.f32 %v1944, %v1956
          %v1961 = vld [vmem:[%s9] sm:$0xf]
          %v1962 = vunpack.c.l.bf16 %v1961
          %v1964 = vlaneseq
          %v1965 = vshrl.u32 %v1964, 7
          %v1966 = vsub.s32 0, %v1965
          %v1967 = vrot.slane %v1962, %v1966
          %v1968 = vlaneseq
          %v1969 = vshrl.u32 %v1968, 7
          %v1970 = vsub.s32 2, %v1969
          %v1971 = vrot.slane %v1962, %v1970
          %v1972 = vlaneseq
          %v1973 = vshrl.u32 %v1972, 7
          %v1974 = vsub.s32 4, %v1973
          %v1975 = vrot.slane %v1962, %v1974
          %v1976 = vlaneseq
          %v1977 = vshrl.u32 %v1976, 7
          %v1978 = vsub.s32 6, %v1977
          %v1979 = vrot.slane %v1962, %v1978
          %v1984 = vlaneseq
          %v1985 = vshrl.u32 %v1984, 7
          %v1986 = vsub.s32 0, %v1985
          %v1987 = vrot.slane %v1967, %v1986
          %v1988 = vlaneseq
          %v1989 = vshrl.u32 %v1988, 7
          %v1990 = vsub.s32 0, %v1989
          %v1991 = vrot.slane %v1971, %v1990
          %v1992 = vlaneseq
          %v1993 = vshrl.u32 %v1992, 7
          %v1994 = vsub.s32 0, %v1993
          %v1995 = vrot.slane %v1975, %v1994
          %v1996 = vlaneseq
          %v1997 = vshrl.u32 %v1996, 7
          %v1998 = vsub.s32 0, %v1997
          %v1999 = vrot.slane %v1979, %v1998
          %v2000 = vmul.f32 %v1957, %v1987
          %v2001 = vmul.f32 %v1958, %v1991
          %v2002 = vmul.f32 %v1959, %v1995
          %v2003 = vmul.f32 %v1960, %v1999
          %v2004 = vld [vmem:[%s10] sm:$0xf]
          %v2005 = vunpack.c.l.bf16 %v2004
          %v2007 = vlaneseq
          %v2008 = vshrl.u32 %v2007, 7
          %v2009 = vsub.s32 0, %v2008
          %v2010 = vrot.slane %v2005, %v2009
          %v2011 = vlaneseq
          %v2012 = vshrl.u32 %v2011, 7
          %v2013 = vsub.s32 2, %v2012
          %v2014 = vrot.slane %v2005, %v2013
          %v2015 = vlaneseq
          %v2016 = vshrl.u32 %v2015, 7
          %v2017 = vsub.s32 4, %v2016
          %v2018 = vrot.slane %v2005, %v2017
          %v2019 = vlaneseq
          %v2020 = vshrl.u32 %v2019, 7
          %v2021 = vsub.s32 6, %v2020
          %v2022 = vrot.slane %v2005, %v2021
          %v2027 = vlaneseq
          %v2028 = vshrl.u32 %v2027, 7
          %v2029 = vsub.s32 0, %v2028
          %v2030 = vrot.slane %v2010, %v2029
          %v2031 = vlaneseq
          %v2032 = vshrl.u32 %v2031, 7
          %v2033 = vsub.s32 0, %v2032
          %v2034 = vrot.slane %v2014, %v2033
          %v2035 = vlaneseq
          %v2036 = vshrl.u32 %v2035, 7
          %v2037 = vsub.s32 0, %v2036
          %v2038 = vrot.slane %v2018, %v2037
          %v2039 = vlaneseq
          %v2040 = vshrl.u32 %v2039, 7
          %v2041 = vsub.s32 0, %v2040
          %v2042 = vrot.slane %v2022, %v2041
          %v2043 = vadd.f32 %v2000, %v2030
          %v2044 = vadd.f32 %v2001, %v2034
          %v2045 = vadd.f32 %v2002, %v2038
          %v2046 = vadd.f32 %v2003, %v2042
          %v2047 = vpack.c.bf16 %v2043, %v2043
          %v2048 = vpack.c.bf16 %v2044, %v2044
          %v2049 = vpack.c.bf16 %v2045, %v2045
          %v2050 = vpack.c.bf16 %v2046, %v2046
          %v2055 = vunpack.c.l.b16 %v2047
          %v2056 = vunpack.c.l.b16 %v2048
          %v2057 = vunpack.c.l.b16 %v2049
          %v2058 = vunpack.c.l.b16 %v2050
          %v2059 = vpack.c.b16 %v2056, %v2055
          %v2060 = vpack.c.b16 %v2058, %v2057
          %2063 = vst [vmem:[%s484] sm:$0xff] %v2059
          %2064 = vst [vmem:[%s484 + $0x8] sm:$0xff] %v2060
        $region72: #{tpu_custom_call.1} parent=63 // pred_fallthru
          _
        %s2065 = sand.u32 %s316, 1
        %s2066 = scalar_lea.sflag [#allocation4], %s2065
        %s2067 = sand.u32 %s316, 1
        %s2068 = smul.addr %s2067, 16
        %s2069 = scalar_lea.vmem [#allocation3], %s2068
        // Predicated region
        $region73: #{tpu_custom_call.1} parent=63 // pred_check
          %p2070 = pneg %p326
        $region74: #{tpu_custom_call.1} parent=63 // pred_check_branch
          %2072 = sbr.rel (%p2070) target = $region76
        $region75: #{tpu_custom_call.1} parent=63 // pred_region
          %s2074 = ssub.s32 256, 256
          %2075 = vsyncadd %s2066, %s2074
          %s2076 = smul.addr %s29, 4
          %s2077 = smul.addr %s2076, 64
          %s2078 = scalar_lea.hbm %s11, %s2077
          %s2080 = sshll.u32 %s2069, 4
          %s2081 = int_to_ptr.vmem [resolvable:$true] %s2080
          %2083 = dma.vmem_to_hbm [thread:$0]  %s2081, 256, %s2078, %s2066
        $region76: #{tpu_custom_call.1} parent=63 // pred_fallthru
          _
      $region64: #{tpu_custom_call.1} parent=5 // pred_fallthru
        _
      %p2084 = scmp.le.s32.totalorder 2, %s20
      // Predicated region
      $region77: #{tpu_custom_call.1} parent=5 // pred_check
        %p2085 = pneg %p2084
      $region78: #{tpu_custom_call.1} parent=5 // pred_check_branch
        %2087 = sbr.rel (%p2085) target = $region80
      $region79: #{tpu_custom_call.1} parent=5 // pred_region
        %s2088 = ssub.s32 %s20, 2
        // Predicated region
        $region81: #{tpu_custom_call.1} parent=79 // pred_check
          %p2089 = pneg %p332
        $region82: #{tpu_custom_call.1} parent=79 // pred_check_branch
          %2091 = sbr.rel (%p2089) target = $region84
        $region83: #{tpu_custom_call.1} parent=79 // pred_region
          %s2092 = sand.u32 %s317, 1
          %s2093 = scalar_lea.sflag [#allocation4], %s2092
          %s2094 = sand.u32 %s317, 1
          %s2095 = smul.addr %s2094, 16
          %s2096 = scalar_lea.vmem [#allocation3], %s2095
          %2097 = dma.done %s2093, 256
        $region84: #{tpu_custom_call.1} parent=79 // pred_fallthru
          _
      $region80: #{tpu_custom_call.1} parent=5 // pred_fallthru
        _
    $region6: #{tpu_custom_call.1} parent=1 // loop_footer
      %s24 = sadd.s32 1, %s20
    $region7: #{tpu_custom_call.1} parent=1 // loop_footer_branch
      %19 = sbr.rel target = $region3
    $region8: #{tpu_custom_call.1} parent=1 // loop_exit
      _
    %2098 = vsyncpa [#allocation4], 1
    %s2099 = scalar_lea.sflag [#allocation4], 1
    %2100 = vsyncpa %s2099, 1

// kernel: tpu_custom_call.1
$region0: #{tpu_custom_call.1}
  #allocation0 [shape = 'u32[]', space=smem, size = 0x4, offset = 0x4, fixed_abs, tag = 'smem constant byte address 0x4 - core index']
  #allocation1 [shape = 'u32[144,128]{1,0:T(1,128)}', space=vmem, size = 0x12000, scoped, tag = 'internal scratch']
  #allocation2 [shape = 'f32[8,512]{1,0:T(8,128)}', space=vmem, size = 0x4000, scoped, tag = 'scratch operand']
  %s0 = inlined_call_operand.vmem [shape: bf16[2,8,512], index: 0, kind: input, shape index: {}]
  %s1 = inlined_call_operand.vmem [shape: bf16[8,512,64], index: 1, kind: input, shape index: {}]
  %s2 = inlined_call_operand.vmem [shape: bf16[8,512,64], index: 2, kind: input, shape index: {}]
  %s3 = inlined_call_operand.vmem [shape: bf16[8,512,64], index: 3, kind: input, shape index: {}]
  %s4 = inlined_call_operand.vmem [shape: bf16[8,1,64], index: 4, kind: input, shape index: {}]
  %s5 = inlined_call_operand.vmem [shape: bf16[8,1,64], index: 5, kind: input, shape index: {}]
  %s6 = inlined_call_operand.vmem [shape: bf16[8,1,64], index: 6, kind: input, shape index: {}]
  %s7 = inlined_call_operand.vmem [shape: bf16[8,64,512], index: 7, kind: input, shape index: {}]
  %s8 = inlined_call_operand.vmem [shape: bf16[1,512], index: 8, kind: input, shape index: {}]
  %s9 = inlined_call_operand.vmem [shape: bf16[1,512], index: 9, kind: input, shape index: {}]
  %s10 = inlined_call_operand.vmem [shape: bf16[1,512], index: 10, kind: input, shape index: {}]
  %s11 = inlined_call_operand.hbm [shape: bf16[2,8,512], index: 11, kind: output, shape index: {}]
  %s12 = sld [smem:[#allocation0]]
  $region85: #{tpu_custom_call.1} parent=0
    _
  %s14 = ssub.s32 1, %s12
  %s15 = scalar_select 0, %s14, %s12
  $region1: #{tpu_custom_call.1} parent=0
    #allocation3 [shape = 'u8[16384]{0}', space=vmem, size = 0x4000, scoped, tag = 'output window, operand 0']
    #allocation4 [shape = 's32[2]{0}', space=sflag, size = 0x8, scoped, tag = 'scoped memory for tpu_custom_call.1']
    %16 = vsyncpa [#allocation4], 0
    %s17 = scalar_lea.sflag [#allocation4], 1
    %18 = vsyncpa %s17, 0
    loop: start=0, step=1, limit=18
    $region2: #{tpu_custom_call.1} parent=1 // loop_pre_header
      _
    $region3: #{tpu_custom_call.1} parent=1 // loop_header
      %s20 = sphi 0, %s24
      %p21 = scmp.ge.s32.totalorder %s20, 18
      %s27 = sphi 0, %s39
      %s28 = sphi 0, %s35
      %s29 = sphi 0, %s27
      %s30 = sphi 0, %s28
      %s31 = sphi 0, %s29
      %s32 = sphi 0, %s30
      %s42 = sphi 0, %s44
      %s45 = sphi 0, %s42
      %s46 = sphi 0, %s45
      %s62 = sphi 0, %s46
      %s68 = sphi 0, %s70
      %s71 = sphi 0, %s68
      %s72 = sphi 0, %s71
      %s88 = sphi 0, %s72
      %s94 = sphi 0, %s96
      %s97 = sphi 0, %s94
      %s98 = sphi 0, %s97
      %s114 = sphi 0, %s98
      %s120 = sphi 0, %s122
      %s123 = sphi 0, %s120
      %s124 = sphi 0, %s123
      %s140 = sphi 0, %s124
      %s146 = sphi 0, %s148
      %s149 = sphi 0, %s146
      %s150 = sphi 0, %s149
      %s166 = sphi 0, %s150
      %s172 = sphi 0, %s174
      %s175 = sphi 0, %s172
      %s176 = sphi 0, %s175
      %s192 = sphi 0, %s176
      %s198 = sphi 0, %s200
      %s201 = sphi 0, %s198
      %s202 = sphi 0, %s201
      %s218 = sphi 0, %s202
      %s224 = sphi 0, %s226
      %s227 = sphi 0, %s224
      %s228 = sphi 0, %s227
      %s244 = sphi 0, %s228
      %s248 = sphi 0, %s248
      %s250 = sphi 0, %s248
      %s251 = sphi 0, %s250
      %s265 = sphi 0, %s251
      %s269 = sphi 0, %s269
      %s271 = sphi 0, %s269
      %s272 = sphi 0, %s271
      %s286 = sphi 0, %s272
      %s290 = sphi 0, %s290
      %s292 = sphi 0, %s290
      %s293 = sphi 0, %s292
      %s307 = sphi 0, %s293
      %s313 = sphi 0, %s315
      %s316 = sphi 0, %s313
      %s317 = sphi 0, %s316
      %s333 = sphi 0, %s317
    $region4: #{tpu_custom_call.1} parent=1 // loop_header_branch
      %23 = sbr.rel (%p21) target = $region8
    $region5: #{tpu_custom_call.1} parent=1 // loop_body
      %s25 = ssub.s32 %s20, 1
      %s26 = ssub.s32 %s20, 2
      %s33 = sadd.s32 1, %s28
      %p34 = scmp.ge.s32.totalorder %s33, 8
      %s35 = scalar_select %p34, 0, %s33
      %s36 = sadd.s32 1, %s27
      %s37 = scalar_select %p34, %s36, %s27
      %p38 = scmp.ge.s32.totalorder %s37, 2
      %s39 = scalar_select %p38, 0, %s37
      %s40 = ssub.s32 %s27, %s39
      %p41 = scmp.eq.s32.totalorder %s40, 0
      %s43 = sadd.s32 %s42, 1
      %s44 = scalar_select %p41, %s42, %s43
      %p47 = pneg %p41
      %p48 = scmp.eq.s32.totalorder %s20, 15
      %p49 = por %p47, %p48
      %p50 = scmp.ne.s32.totalorder %s42, %s45
      %p51 = scmp.eq.s32.totalorder %s20, 0
      %p52 = por %p50, %p51
      %p53 = scmp.ne.s32.totalorder %s42, %s45
      %p54 = scmp.eq.s32.totalorder %s25, 15
      %p55 = por %p53, %p54
      %p56 = scmp.ne.s32.totalorder %s45, %s46
      %p57 = scmp.eq.s32.totalorder %s25, 0
      %p58 = por %p56, %p57
      %p59 = scmp.ne.s32.totalorder %s45, %s46
      %p60 = scmp.eq.s32.totalorder %s26, 15
      %p61 = por %p59, %p60
      %p63 = scmp.ne.s32.totalorder %s46, %s62
      %p64 = scmp.eq.s32.totalorder %s26, 0
      %p65 = por %p63, %p64
      %s66 = ssub.s32 %s28, %s35
      %p67 = scmp.eq.s32.totalorder %s66, 0
      %s69 = sadd.s32 %s68, 1
      %s70 = scalar_select %p67, %s68, %s69
      %p73 = pneg %p67
      %p74 = scmp.eq.s32.totalorder %s20, 15
      %p75 = por %p73, %p74
      %p76 = scmp.ne.s32.totalorder %s68, %s71
      %p77 = scmp.eq.s32.totalorder %s20, 0
      %p78 = por %p76, %p77
      %p79 = scmp.ne.s32.totalorder %s68, %s71
      %p80 = scmp.eq.s32.totalorder %s25, 15
      %p81 = por %p79, %p80
      %p82 = scmp.ne.s32.totalorder %s71, %s72
      %p83 = scmp.eq.s32.totalorder %s25, 0
      %p84 = por %p82, %p83
      %p85 = scmp.ne.s32.totalorder %s71, %s72
      %p86 = scmp.eq.s32.totalorder %s26, 15
      %p87 = por %p85, %p86
      %p89 = scmp.ne.s32.totalorder %s72, %s88
      %p90 = scmp.eq.s32.totalorder %s26, 0
      %p91 = por %p89, %p90
      %s92 = ssub.s32 %s28, %s35
      %p93 = scmp.eq.s32.totalorder %s92, 0
      %s95 = sadd.s32 %s94, 1
      %s96 = scalar_select %p93, %s94, %s95
      %p99 = pneg %p93
      %p100 = scmp.eq.s32.totalorder %s20, 15
      %p101 = por %p99, %p100
      %p102 = scmp.ne.s32.totalorder %s94, %s97
      %p103 = scmp.eq.s32.totalorder %s20, 0
      %p104 = por %p102, %p103
      %p105 = scmp.ne.s32.totalorder %s94, %s97
      %p106 = scmp.eq.s32.totalorder %s25, 15
      %p107 = por %p105, %p106
      %p108 = scmp.ne.s32.totalorder %s97, %s98
      %p109 = scmp.eq.s32.totalorder %s25, 0
      %p110 = por %p108, %p109
      %p111 = scmp.ne.s32.totalorder %s97, %s98
      %p112 = scmp.eq.s32.totalorder %s26, 15
      %p113 = por %p111, %p112
      %p115 = scmp.ne.s32.totalorder %s98, %s114
      %p116 = scmp.eq.s32.totalorder %s26, 0
      %p117 = por %p115, %p116
      %s118 = ssub.s32 %s28, %s35
      %p119 = scmp.eq.s32.totalorder %s118, 0
      %s121 = sadd.s32 %s120, 1
      %s122 = scalar_select %p119, %s120, %s121
      %p125 = pneg %p119
      %p126 = scmp.eq.s32.totalorder %s20, 15
      %p127 = por %p125, %p126
      %p128 = scmp.ne.s32.totalorder %s120, %s123
      %p129 = scmp.eq.s32.totalorder %s20, 0
      %p130 = por %p128, %p129
      %p131 = scmp.ne.s32.totalorder %s120, %s123
      %p132 = scmp.eq.s32.totalorder %s25, 15
      %p133 = por %p131, %p132
      %p134 = scmp.ne.s32.totalorder %s123, %s124
      %p135 = scmp.eq.s32.totalorder %s25, 0
      %p136 = por %p134, %p135
      %p137 = scmp.ne.s32.totalorder %s123, %s124
      %p138 = scmp.eq.s32.totalorder %s26, 15
      %p139 = por %p137, %p138
      %p141 = scmp.ne.s32.totalorder %s124, %s140
      %p142 = scmp.eq.s32.totalorder %s26, 0
      %p143 = por %p141, %p142
      %s144 = ssub.s32 %s28, %s35
      %p145 = scmp.eq.s32.totalorder %s144, 0
      %s147 = sadd.s32 %s146, 1
      %s148 = scalar_select %p145, %s146, %s147
      %p151 = pneg %p145
      %p152 = scmp.eq.s32.totalorder %s20, 15
      %p153 = por %p151, %p152
      %p154 = scmp.ne.s32.totalorder %s146, %s149
      %p155 = scmp.eq.s32.totalorder %s20, 0
      %p156 = por %p154, %p155
      %p157 = scmp.ne.s32.totalorder %s146, %s149
      %p158 = scmp.eq.s32.totalorder %s25, 15
      %p159 = por %p157, %p158
      %p160 = scmp.ne.s32.totalorder %s149, %s150
      %p161 = scmp.eq.s32.totalorder %s25, 0
      %p162 = por %p160, %p161
      %p163 = scmp.ne.s32.totalorder %s149, %s150
      %p164 = scmp.eq.s32.totalorder %s26, 15
      %p165 = por %p163, %p164
      %p167 = scmp.ne.s32.totalorder %s150, %s166
      %p168 = scmp.eq.s32.totalorder %s26, 0
      %p169 = por %p167, %p168
      %s170 = ssub.s32 %s28, %s35
      %p171 = scmp.eq.s32.totalorder %s170, 0
      %s173 = sadd.s32 %s172, 1
      %s174 = scalar_select %p171, %s172, %s173
      %p177 = pneg %p171
      %p178 = scmp.eq.s32.totalorder %s20, 15
      %p179 = por %p177, %p178
      %p180 = scmp.ne.s32.totalorder %s172, %s175
      %p181 = scmp.eq.s32.totalorder %s20, 0
      %p182 = por %p180, %p181
      %p183 = scmp.ne.s32.totalorder %s172, %s175
      %p184 = scmp.eq.s32.totalorder %s25, 15
      %p185 = por %p183, %p184
      %p186 = scmp.ne.s32.totalorder %s175, %s176
      %p187 = scmp.eq.s32.totalorder %s25, 0
      %p188 = por %p186, %p187
      %p189 = scmp.ne.s32.totalorder %s175, %s176
      %p190 = scmp.eq.s32.totalorder %s26, 15
      %p191 = por %p189, %p190
      %p193 = scmp.ne.s32.totalorder %s176, %s192
      %p194 = scmp.eq.s32.totalorder %s26, 0
      %p195 = por %p193, %p194
      %s196 = ssub.s32 %s28, %s35
      %p197 = scmp.eq.s32.totalorder %s196, 0
      %s199 = sadd.s32 %s198, 1
      %s200 = scalar_select %p197, %s198, %s199
      %p203 = pneg %p197
      %p204 = scmp.eq.s32.totalorder %s20, 15
      %p205 = por %p203, %p204
      %p206 = scmp.ne.s32.totalorder %s198, %s201
      %p207 = scmp.eq.s32.totalorder %s20, 0
      %p208 = por %p206, %p207
      %p209 = scmp.ne.s32.totalorder %s198, %s201
      %p210 = scmp.eq.s32.totalorder %s25, 15
      %p211 = por %p209, %p210
      %p212 = scmp.ne.s32.totalorder %s201, %s202
      %p213 = scmp.eq.s32.totalorder %s25, 0
      %p214 = por %p212, %p213
      %p215 = scmp.ne.s32.totalorder %s201, %s202
      %p216 = scmp.eq.s32.totalorder %s26, 15
      %p217 = por %p215, %p216
      %p219 = scmp.ne.s32.totalorder %s202, %s218
      %p220 = scmp.eq.s32.totalorder %s26, 0
      %p221 = por %p219, %p220
      %s222 = ssub.s32 %s28, %s35
      %p223 = scmp.eq.s32.totalorder %s222, 0
      %s225 = sadd.s32 %s224, 1
      %s226 = scalar_select %p223, %s224, %s225
      %p229 = pneg %p223
      %p230 = scmp.eq.s32.totalorder %s20, 15
      %p231 = por %p229, %p230
      %p232 = scmp.ne.s32.totalorder %s224, %s227
      %p233 = scmp.eq.s32.totalorder %s20, 0
      %p234 = por %p232, %p233
      %p235 = scmp.ne.s32.totalorder %s224, %s227
      %p236 = scmp.eq.s32.totalorder %s25, 15
      %p237 = por %p235, %p236
      %p238 = scmp.ne.s32.totalorder %s227, %s228
      %p239 = scmp.eq.s32.totalorder %s25, 0
      %p240 = por %p238, %p239
      %p241 = scmp.ne.s32.totalorder %s227, %s228
      %p242 = scmp.eq.s32.totalorder %s26, 15
      %p243 = por %p241, %p242
      %p245 = scmp.ne.s32.totalorder %s228, %s244
      %p246 = scmp.eq.s32.totalorder %s26, 0
      %p247 = por %p245, %p246
      %s249 = sadd.s32 %s248, 1
      %p252 = scmp.eq.s32.totalorder %s20, 15
      %p253 = scmp.ne.s32.totalorder %s248, %s250
      %p254 = scmp.eq.s32.totalorder %s20, 0
      %p255 = por %p253, %p254
      %p256 = scmp.ne.s32.totalorder %s248, %s250
      %p257 = scmp.eq.s32.totalorder %s25, 15
      %p258 = por %p256, %p257
      %p259 = scmp.ne.s32.totalorder %s250, %s251
      %p260 = scmp.eq.s32.totalorder %s25, 0
      %p261 = por %p259, %p260
      %p262 = scmp.ne.s32.totalorder %s250, %s251
      %p263 = scmp.eq.s32.totalorder %s26, 15
      %p264 = por %p262, %p263
      %p266 = scmp.ne.s32.totalorder %s251, %s265
      %p267 = scmp.eq.s32.totalorder %s26, 0
      %p268 = por %p266, %p267
      %s270 = sadd.s32 %s269, 1
      %p273 = scmp.eq.s32.totalorder %s20, 15
      %p274 = scmp.ne.s32.totalorder %s269, %s271
      %p275 = scmp.eq.s32.totalorder %s20, 0
      %p276 = por %p274, %p275
      %p277 = scmp.ne.s32.totalorder %s269, %s271
      %p278 = scmp.eq.s32.totalorder %s25, 15
      %p279 = por %p277, %p278
      %p280 = scmp.ne.s32.totalorder %s271, %s272
      %p281 = scmp.eq.s32.totalorder %s25, 0
      %p282 = por %p280, %p281
      %p283 = scmp.ne.s32.totalorder %s271, %s272
      %p284 = scmp.eq.s32.totalorder %s26, 15
      %p285 = por %p283, %p284
      %p287 = scmp.ne.s32.totalorder %s272, %s286
      %p288 = scmp.eq.s32.totalorder %s26, 0
      %p289 = por %p287, %p288
      %s291 = sadd.s32 %s290, 1
      %p294 = scmp.eq.s32.totalorder %s20, 15
      %p295 = scmp.ne.s32.totalorder %s290, %s292
      %p296 = scmp.eq.s32.totalorder %s20, 0
      %p297 = por %p295, %p296
      %p298 = scmp.ne.s32.totalorder %s290, %s292
      %p299 = scmp.eq.s32.totalorder %s25, 15
      %p300 = por %p298, %p299
      %p301 = scmp.ne.s32.totalorder %s292, %s293
      %p302 = scmp.eq.s32.totalorder %s25, 0
      %p303 = por %p301, %p302
      %p304 = scmp.ne.s32.totalorder %s292, %s293
      %p305 = scmp.eq.s32.totalorder %s26, 15
      %p306 = por %p304, %p305
      %p308 = scmp.ne.s32.totalorder %s293, %s307
      %p309 = scmp.eq.s32.totalorder %s26, 0
      %p310 = por %p308, %p309
      %s311 = ssub.s32 %s27, %s39
      %p312 = scmp.eq.s32.totalorder %s311, 0
      %s314 = sadd.s32 %s313, 1
      %s315 = scalar_select %p312, %s313, %s314
      %p318 = pneg %p312
      %p319 = scmp.eq.s32.totalorder %s20, 15
      %p320 = por %p318, %p319
      %p321 = scmp.ne.s32.totalorder %s313, %s316
      %p322 = scmp.eq.s32.totalorder %s20, 0
      %p323 = por %p321, %p322
      %p324 = scmp.ne.s32.totalorder %s313, %s316
      %p325 = scmp.eq.s32.totalorder %s25, 15
      %p326 = por %p324, %p325
      %p327 = scmp.ne.s32.totalorder %s316, %s317
      %p328 = scmp.eq.s32.totalorder %s25, 0
      %p329 = por %p327, %p328
      %p330 = scmp.ne.s32.totalorder %s316, %s317
      %p331 = scmp.eq.s32.totalorder %s26, 15
      %p332 = por %p330, %p331
      %p334 = scmp.ne.s32.totalorder %s317, %s333
      %p335 = scmp.eq.s32.totalorder %s26, 0
      %p336 = por %p334, %p335
      %p337 = scmp.le.s32.totalorder 1, %s20
      %p338 = scmp.lt.s32.totalorder %s20, 17
      %p339 = pnand %p337, %p338
      %p340 = pneg %p339
      // Predicated region
      $region9: #{tpu_custom_call.1} parent=5 // pred_check
        _
      $region10: #{tpu_custom_call.1} parent=5 // pred_check_branch
        %342 = sbr.rel (%p339) target = $region12
      $region11: #{tpu_custom_call.1} parent=5 // pred_region
        %s343 = ssub.s32 %s20, 1
        // Predicated region
        $region13: #{tpu_custom_call.1} parent=11 // pred_check
          %p344 = pneg %p261
        $region14: #{tpu_custom_call.1} parent=11 // pred_check_branch
          %346 = sbr.rel (%p344) target = $region16
        $region15: #{tpu_custom_call.1} parent=11 // pred_region
          _
        $region16: #{tpu_custom_call.1} parent=11 // pred_fallthru
          _
        // Predicated region
        $region17: #{tpu_custom_call.1} parent=11 // pred_check
          %p347 = pneg %p282
        $region18: #{tpu_custom_call.1} parent=11 // pred_check_branch
          %349 = sbr.rel (%p347) target = $region20
        $region19: #{tpu_custom_call.1} parent=11 // pred_region
          _
        $region20: #{tpu_custom_call.1} parent=11 // pred_fallthru
          _
        // Predicated region
        $region21: #{tpu_custom_call.1} parent=11 // pred_check
          %p350 = pneg %p303
        $region22: #{tpu_custom_call.1} parent=11 // pred_check_branch
          %352 = sbr.rel (%p350) target = $region24
        $region23: #{tpu_custom_call.1} parent=11 // pred_region
          _
        $region24: #{tpu_custom_call.1} parent=11 // pred_fallthru
          _
      $region12: #{tpu_custom_call.1} parent=5 // pred_fallthru
        _
      %p353 = scmp.lt.s32.totalorder %s20, 16
      // Predicated region
      $region25: #{tpu_custom_call.1} parent=5 // pred_check
        %p354 = pneg %p353
      $region26: #{tpu_custom_call.1} parent=5 // pred_check_branch
        %356 = sbr.rel (%p354) target = $region28
      $region27: #{tpu_custom_call.1} parent=5 // pred_region
        // Predicated region
        $region29: #{tpu_custom_call.1} parent=27 // pred_check
          %p357 = pneg %p52
        $region30: #{tpu_custom_call.1} parent=27 // pred_check_branch
          %359 = sbr.rel (%p357) target = $region32
        $region31: #{tpu_custom_call.1} parent=27 // pred_region
          %p360 = scmp.lt.s32.totalorder %s27, 1
          %s361 = scalar_select %p360, %s27, 1
          %s362 = smul.addr %s361, 4
          %s363 = smul.addr %s362, 4
          %s364 = scalar_lea.vmem %s0, %s363
        $region32: #{tpu_custom_call.1} parent=27 // pred_fallthru
          _
        // Predicated region
        $region33: #{tpu_custom_call.1} parent=27 // pred_check
          %p365 = pneg %p78
        $region34: #{tpu_custom_call.1} parent=27 // pred_check_branch
          %367 = sbr.rel (%p365) target = $region36
        $region35: #{tpu_custom_call.1} parent=27 // pred_region
          %p368 = scmp.lt.s32.totalorder %s28, 7
          %s369 = scalar_select %p368, %s28, 7
          %s370 = smul.addr %s369, 64
          %s371 = smul.addr %s370, 4
          %s372 = scalar_lea.vmem %s1, %s371
        $region36: #{tpu_custom_call.1} parent=27 // pred_fallthru
          _
        // Predicated region
        $region37: #{tpu_custom_call.1} parent=27 // pred_check
          %p373 = pneg %p104
        $region38: #{tpu_custom_call.1} parent=27 // pred_check_branch
          %375 = sbr.rel (%p373) target = $region40
        $region39: #{tpu_custom_call.1} parent=27 // pred_region
          %p376 = scmp.lt.s32.totalorder %s28, 7
          %s377 = scalar_select %p376, %s28, 7
          %s378 = smul.addr %s377, 64
          %s379 = smul.addr %s378, 4
          %s380 = scalar_lea.vmem %s2, %s379
        $region40: #{tpu_custom_call.1} parent=27 // pred_fallthru
          _
        // Predicated region
        $region41: #{tpu_custom_call.1} parent=27 // pred_check
          %p381 = pneg %p130
        $region42: #{tpu_custom_call.1} parent=27 // pred_check_branch
          %383 = sbr.rel (%p381) target = $region44
        $region43: #{tpu_custom_call.1} parent=27 // pred_region
          %p384 = scmp.lt.s32.totalorder %s28, 7
          %s385 = scalar_select %p384, %s28, 7
          %s386 = smul.addr %s385, 64
          %s387 = smul.addr %s386, 4
          %s388 = scalar_lea.vmem %s3, %s387
        $region44: #{tpu_custom_call.1} parent=27 // pred_fallthru
          _
        // Predicated region
        $region45: #{tpu_custom_call.1} parent=27 // pred_check
          %p389 = pneg %p156
        $region46: #{tpu_custom_call.1} parent=27 // pred_check_branch
          %391 = sbr.rel (%p389) target = $region48
        $region47: #{tpu_custom_call.1} parent=27 // pred_region
          %p392 = scmp.lt.s32.totalorder %s28, 7
          %s393 = scalar_select %p392, %s28, 7
          %s394 = scalar_lea.vmem %s4, %s393
        $region48: #{tpu_custom_call.1} parent=27 // pred_fallthru
          _
        // Predicated region
        $region49: #{tpu_custom_call.1} parent=27 // pred_check
          %p395 = pneg %p182
        $region50: #{tpu_custom_call.1} parent=27 // pred_check_branch
          %397 = sbr.rel (%p395) target = $region52
        $region51: #{tpu_custom_call.1} parent=27 // pred_region
          %p398 = scmp.lt.s32.totalorder %s28, 7
          %s399 = scalar_select %p398, %s28, 7
          %s400 = scalar_lea.vmem %s5, %s399
        $region52: #{tpu_custom_call.1} parent=27 // pred_fallthru
          _
        // Predicated region
        $region53: #{tpu_custom_call.1} parent=27 // pred_check
          %p401 = pneg %p208
        $region54: #{tpu_custom_call.1} parent=27 // pred_check_branch
          %403 = sbr.rel (%p401) target = $region56
        $region55: #{tpu_custom_call.1} parent=27 // pred_region
          %p404 = scmp.lt.s32.totalorder %s28, 7
          %s405 = scalar_select %p404, %s28, 7
          %s406 = scalar_lea.vmem %s6, %s405
        $region56: #{tpu_custom_call.1} parent=27 // pred_fallthru
          _
        // Predicated region
        $region57: #{tpu_custom_call.1} parent=27 // pred_check
          %p407 = pneg %p234
        $region58: #{tpu_custom_call.1} parent=27 // pred_check_branch
          %409 = sbr.rel (%p407) target = $region60
        $region59: #{tpu_custom_call.1} parent=27 // pred_region
          %p410 = scmp.lt.s32.totalorder %s28, 7
          %s411 = scalar_select %p410, %s28, 7
          %s412 = smul.addr %s411, 32
          %s413 = smul.addr %s412, 4
          %s414 = scalar_lea.vmem %s7, %s413
        $region60: #{tpu_custom_call.1} parent=27 // pred_fallthru
          _
      $region28: #{tpu_custom_call.1} parent=5 // pred_fallthru
        _
      %p415 = scmp.le.s32.totalorder 1, %s20
      %p416 = scmp.lt.s32.totalorder %s20, 17
      %p417 = pnand %p415, %p416
      %p418 = pneg %p417
      // Predicated region
      $region61: #{tpu_custom_call.1} parent=5 // pred_check
        _
      $region62: #{tpu_custom_call.1} parent=5 // pred_check_branch
        %420 = sbr.rel (%p417) target = $region64
      $region63: #{tpu_custom_call.1} parent=5 // pred_region
        %s421 = ssub.s32 %s20, 1
        %p422 = scmp.lt.s32.totalorder %s29, 1
        %s423 = scalar_select %p422, %s29, 1
        %s424 = smul.addr %s423, 4
        %s425 = smul.addr %s424, 4
        %s426 = scalar_lea.vmem %s0, %s425
        %p427 = pneg %p58
        %p428 = pneg %p55
        %p429 = scmp.lt.s32.totalorder %s30, 7
        %s430 = scalar_select %p429, %s30, 7
        %s431 = smul.addr %s430, 64
        %s432 = smul.addr %s431, 4
        %s433 = scalar_lea.vmem %s1, %s432
        %p434 = pneg %p84
        %p435 = pneg %p81
        %p436 = scmp.lt.s32.totalorder %s30, 7
        %s437 = scalar_select %p436, %s30, 7
        %s438 = smul.addr %s437, 64
        %s439 = smul.addr %s438, 4
        %s440 = scalar_lea.vmem %s2, %s439
        %p441 = pneg %p110
        %p442 = pneg %p107
        %p443 = scmp.lt.s32.totalorder %s30, 7
        %s444 = scalar_select %p443, %s30, 7
        %s445 = smul.addr %s444, 64
        %s446 = smul.addr %s445, 4
        %s447 = scalar_lea.vmem %s3, %s446
        %p448 = pneg %p136
        %p449 = pneg %p133
        %p450 = scmp.lt.s32.totalorder %s30, 7
        %s451 = scalar_select %p450, %s30, 7
        %s452 = scalar_lea.vmem %s4, %s451
        %p453 = pneg %p162
        %p454 = pneg %p159
        %p455 = scmp.lt.s32.totalorder %s30, 7
        %s456 = scalar_select %p455, %s30, 7
        %s457 = scalar_lea.vmem %s5, %s456
        %p458 = pneg %p188
        %p459 = pneg %p185
        %p460 = scmp.lt.s32.totalorder %s30, 7
        %s461 = scalar_select %p460, %s30, 7
        %s462 = scalar_lea.vmem %s6, %s461
        %p463 = pneg %p214
        %p464 = pneg %p211
        %p465 = scmp.lt.s32.totalorder %s30, 7
        %s466 = scalar_select %p465, %s30, 7
        %s467 = smul.addr %s466, 32
        %s468 = smul.addr %s467, 4
        %s469 = scalar_lea.vmem %s7, %s468
        %p470 = pneg %p240
        %p471 = pneg %p237
        %p472 = pneg %p261
        %p473 = pneg %p258
        %p474 = pneg %p282
        %p475 = pneg %p279
        %p476 = pneg %p303
        %p477 = pneg %p300
        %p478 = pneg %p329
        %p479 = pneg %p326
        %s480 = sand.u32 %s316, 1
        %s481 = scalar_lea.sflag [#allocation4], %s480
        %s482 = sand.u32 %s316, 1
        %s483 = smul.addr %s482, 16
        %s484 = scalar_lea.vmem [#allocation3], %s483
        %p485 = scmp.lt.s32.totalorder %s29, 1
        %s486 = scalar_select %p485, %s29, 1
        %s487 = smul.addr %s486, 4
        %s488 = smul.addr %s487, 4
        %s489 = scalar_lea.vmem %s0, %s488
        %p490 = scmp.lt.s32.totalorder %s30, 7
        %s491 = scalar_select %p490, %s30, 7
        %s492 = smul.addr %s491, 64
        %s493 = smul.addr %s492, 4
        %s494 = scalar_lea.vmem %s1, %s493
        %p495 = scmp.lt.s32.totalorder %s30, 7
        %s496 = scalar_select %p495, %s30, 7
        %s497 = smul.addr %s496, 64
        %s498 = smul.addr %s497, 4
        %s499 = scalar_lea.vmem %s2, %s498
        %p500 = scmp.lt.s32.totalorder %s30, 7
        %s501 = scalar_select %p500, %s30, 7
        %s502 = smul.addr %s501, 64
        %s503 = smul.addr %s502, 4
        %s504 = scalar_lea.vmem %s3, %s503
        %p505 = scmp.lt.s32.totalorder %s30, 7
        %s506 = scalar_select %p505, %s30, 7
        %s507 = scalar_lea.vmem %s4, %s506
        %p508 = scmp.lt.s32.totalorder %s30, 7
        %s509 = scalar_select %p508, %s30, 7
        %s510 = scalar_lea.vmem %s5, %s509
        %p511 = scmp.lt.s32.totalorder %s30, 7
        %s512 = scalar_select %p511, %s30, 7
        %s513 = scalar_lea.vmem %s6, %s512
        %p514 = scmp.lt.s32.totalorder %s30, 7
        %s515 = scalar_select %p514, %s30, 7
        %s516 = smul.addr %s515, 32
        %s517 = smul.addr %s516, 4
        %s518 = scalar_lea.vmem %s7, %s517
        %v520 = vld [vmem:[%s489] sm:$0xff]
        %v521 = vld [vmem:[%s489 + $0x8] sm:$0xff]
        %v522 = vld [vmem:[%s494] sm:$0xf]
        %v523 = vld [vmem:[%s494 + $0x4] sm:$0xf]
        %v524 = vld [vmem:[%s494 + $0x8] sm:$0xf]
        %v525 = vld [vmem:[%s494 + $0xc] sm:$0xf]
        %v526 = vld [vmem:[%s494 + $0x10] sm:$0xf]
        %v527 = vld [vmem:[%s494 + $0x14] sm:$0xf]
        %v528 = vld [vmem:[%s494 + $0x18] sm:$0xf]
        %v529 = vld [vmem:[%s494 + $0x1c] sm:$0xf]
        %v530 = vld [vmem:[%s494 + $0x20] sm:$0xf]
        %v531 = vld [vmem:[%s494 + $0x24] sm:$0xf]
        %v532 = vld [vmem:[%s494 + $0x28] sm:$0xf]
        %v533 = vld [vmem:[%s494 + $0x2c] sm:$0xf]
        %v534 = vld [vmem:[%s494 + $0x30] sm:$0xf]
        %v535 = vld [vmem:[%s494 + $0x34] sm:$0xf]
        %v536 = vld [vmem:[%s494 + $0x38] sm:$0xf]
        %v537 = vld [vmem:[%s494 + $0x3c] sm:$0xf]
        %v538 = vld [vmem:[%s494 + $0x40] sm:$0xf]
        %v539 = vld [vmem:[%s494 + $0x44] sm:$0xf]
        %v540 = vld [vmem:[%s494 + $0x48] sm:$0xf]
        %v541 = vld [vmem:[%s494 + $0x4c] sm:$0xf]
        %v542 = vld [vmem:[%s494 + $0x50] sm:$0xf]
        %v543 = vld [vmem:[%s494 + $0x54] sm:$0xf]
        %v544 = vld [vmem:[%s494 + $0x58] sm:$0xf]
        %v545 = vld [vmem:[%s494 + $0x5c] sm:$0xf]
        %v546 = vld [vmem:[%s494 + $0x60] sm:$0xf]
        %v547 = vld [vmem:[%s494 + $0x64] sm:$0xf]
        %v548 = vld [vmem:[%s494 + $0x68] sm:$0xf]
        %v549 = vld [vmem:[%s494 + $0x6c] sm:$0xf]
        %v550 = vld [vmem:[%s494 + $0x70] sm:$0xf]
        %v551 = vld [vmem:[%s494 + $0x74] sm:$0xf]
        %v552 = vld [vmem:[%s494 + $0x78] sm:$0xf]
        %v553 = vld [vmem:[%s494 + $0x7c] sm:$0xf]
        %v554 = vld [vmem:[%s494 + $0x80] sm:$0xf]
        %v555 = vld [vmem:[%s494 + $0x84] sm:$0xf]
        %v556 = vld [vmem:[%s494 + $0x88] sm:$0xf]
        %v557 = vld [vmem:[%s494 + $0x8c] sm:$0xf]
        %v558 = vld [vmem:[%s494 + $0x90] sm:$0xf]
        %v559 = vld [vmem:[%s494 + $0x94] sm:$0xf]
        %v560 = vld [vmem:[%s494 + $0x98] sm:$0xf]
        %v561 = vld [vmem:[%s494 + $0x9c] sm:$0xf]
        %v562 = vld [vmem:[%s494 + $0xa0] sm:$0xf]
        %v563 = vld [vmem:[%s494 + $0xa4] sm:$0xf]
        %v564 = vld [vmem:[%s494 + $0xa8] sm:$0xf]
        %v565 = vld [vmem:[%s494 + $0xac] sm:$0xf]
        %v566 = vld [vmem:[%s494 + $0xb0] sm:$0xf]
        %v567 = vld [vmem:[%s494 + $0xb4] sm:$0xf]
        %v568 = vld [vmem:[%s494 + $0xb8] sm:$0xf]
        %v569 = vld [vmem:[%s494 + $0xbc] sm:$0xf]
        %v570 = vld [vmem:[%s494 + $0xc0] sm:$0xf]
        %v571 = vld [vmem:[%s494 + $0xc4] sm:$0xf]
        %v572 = vld [vmem:[%s494 + $0xc8] sm:$0xf]
        %v573 = vld [vmem:[%s494 + $0xcc] sm:$0xf]
        %v574 = vld [vmem:[%s494 + $0xd0] sm:$0xf]
        %v575 = vld [vmem:[%s494 + $0xd4] sm:$0xf]
        %v576 = vld [vmem:[%s494 + $0xd8] sm:$0xf]
        %v577 = vld [vmem:[%s494 + $0xdc] sm:$0xf]
        %v578 = vld [vmem:[%s494 + $0xe0] sm:$0xf]
        %v579 = vld [vmem:[%s494 + $0xe4] sm:$0xf]
        %v580 = vld [vmem:[%s494 + $0xe8] sm:$0xf]
        %v581 = vld [vmem:[%s494 + $0xec] sm:$0xf]
        %v582 = vld [vmem:[%s494 + $0xf0] sm:$0xf]
        %v583 = vld [vmem:[%s494 + $0xf4] sm:$0xf]
        %v584 = vld [vmem:[%s494 + $0xf8] sm:$0xf]
        %v585 = vld [vmem:[%s494 + $0xfc] sm:$0xf]
        %v586 = vld [vmem:[%s507] sm:$0x1]
        %v587 = vunpack.c.l.bf16 %v586
        %v588 = vlaneseq
        %v589 = vshrl.u32 %v588, 7
        %v590 = vsub.s32 0, %v589
        %v591 = vrot.slane %v587, %v590
        %v594 = vunpack.c.l.b16 %v520
        %v595 = vunpack.c.h.b16 %v520
        %v596 = vunpack.c.l.b16 %v521
        %v597 = vunpack.c.h.b16 %v521
        %v598 = vpack.c.b16 %v594, %v594
        %v599 = vpack.c.b16 %v595, %v595
        %v600 = vpack.c.b16 %v596, %v596
        %v601 = vpack.c.b16 %v597, %v597
        %v670 = vunpack.c.l.b16 %v522
        %v671 = vunpack.c.l.b16 %v523
        %v672 = vunpack.c.l.b16 %v524
        %v673 = vunpack.c.l.b16 %v525
        %v674 = vunpack.c.l.b16 %v526
        %v675 = vunpack.c.l.b16 %v527
        %v676 = vunpack.c.l.b16 %v528
        %v677 = vunpack.c.l.b16 %v529
        %v678 = vunpack.c.l.b16 %v530
        %v679 = vunpack.c.l.b16 %v531
        %v680 = vunpack.c.l.b16 %v532
        %v681 = vunpack.c.l.b16 %v533
        %v682 = vunpack.c.l.b16 %v534
        %v683 = vunpack.c.l.b16 %v535
        %v684 = vunpack.c.l.b16 %v536
        %v685 = vunpack.c.l.b16 %v537
        %v686 = vunpack.c.l.b16 %v538
        %v687 = vunpack.c.l.b16 %v539
        %v688 = vunpack.c.l.b16 %v540
        %v689 = vunpack.c.l.b16 %v541
        %v690 = vunpack.c.l.b16 %v542
        %v691 = vunpack.c.l.b16 %v543
        %v692 = vunpack.c.l.b16 %v544
        %v693 = vunpack.c.l.b16 %v545
        %v694 = vunpack.c.l.b16 %v546
        %v695 = vunpack.c.l.b16 %v547
        %v696 = vunpack.c.l.b16 %v548
        %v697 = vunpack.c.l.b16 %v549
        %v698 = vunpack.c.l.b16 %v550
        %v699 = vunpack.c.l.b16 %v551
        %v700 = vunpack.c.l.b16 %v552
        %v701 = vunpack.c.l.b16 %v553
        %v702 = vunpack.c.l.b16 %v554
        %v703 = vunpack.c.l.b16 %v555
        %v704 = vunpack.c.l.b16 %v556
        %v705 = vunpack.c.l.b16 %v557
        %v706 = vunpack.c.l.b16 %v558
        %v707 = vunpack.c.l.b16 %v559
        %v708 = vunpack.c.l.b16 %v560
        %v709 = vunpack.c.l.b16 %v561
        %v710 = vunpack.c.l.b16 %v562
        %v711 = vunpack.c.l.b16 %v563
        %v712 = vunpack.c.l.b16 %v564
        %v713 = vunpack.c.l.b16 %v565
        %v714 = vunpack.c.l.b16 %v566
        %v715 = vunpack.c.l.b16 %v567
        %v716 = vunpack.c.l.b16 %v568
        %v717 = vunpack.c.l.b16 %v569
        %v718 = vunpack.c.l.b16 %v570
        %v719 = vunpack.c.l.b16 %v571
        %v720 = vunpack.c.l.b16 %v572
        %v721 = vunpack.c.l.b16 %v573
        %v722 = vunpack.c.l.b16 %v574
        %v723 = vunpack.c.l.b16 %v575
        %v724 = vunpack.c.l.b16 %v576
        %v725 = vunpack.c.l.b16 %v577
        %v726 = vunpack.c.l.b16 %v578
        %v727 = vunpack.c.l.b16 %v579
        %v728 = vunpack.c.l.b16 %v580
        %v729 = vunpack.c.l.b16 %v581
        %v730 = vunpack.c.l.b16 %v582
        %v731 = vunpack.c.l.b16 %v583
        %v732 = vunpack.c.l.b16 %v584
        %v733 = vunpack.c.l.b16 %v585
        %v734 = vpack.c.b16 %v671, %v670
        %v735 = vpack.c.b16 %v673, %v672
        %v736 = vpack.c.b16 %v675, %v674
        %v737 = vpack.c.b16 %v677, %v676
        %v738 = vpack.c.b16 %v679, %v678
        %v739 = vpack.c.b16 %v681, %v680
        %v740 = vpack.c.b16 %v683, %v682
        %v741 = vpack.c.b16 %v685, %v684
        %v742 = vpack.c.b16 %v687, %v686
        %v743 = vpack.c.b16 %v689, %v688
        %v744 = vpack.c.b16 %v691, %v690
        %v745 = vpack.c.b16 %v693, %v692
        %v746 = vpack.c.b16 %v695, %v694
        %v747 = vpack.c.b16 %v697, %v696
        %v748 = vpack.c.b16 %v699, %v698
        %v749 = vpack.c.b16 %v701, %v700
        %v750 = vpack.c.b16 %v703, %v702
        %v751 = vpack.c.b16 %v705, %v704
        %v752 = vpack.c.b16 %v707, %v706
        %v753 = vpack.c.b16 %v709, %v708
        %v754 = vpack.c.b16 %v711, %v710
        %v755 = vpack.c.b16 %v713, %v712
        %v756 = vpack.c.b16 %v715, %v714
        %v757 = vpack.c.b16 %v717, %v716
        %v758 = vpack.c.b16 %v719, %v718
        %v759 = vpack.c.b16 %v721, %v720
        %v760 = vpack.c.b16 %v723, %v722
        %v761 = vpack.c.b16 %v725, %v724
        %v762 = vpack.c.b16 %v727, %v726
        %v763 = vpack.c.b16 %v729, %v728
        %v764 = vpack.c.b16 %v731, %v730
        %v765 = vpack.c.b16 %v733, %v732
        %798 = vmatprep.subr.bf16.mxu0 0
        %799 = vmatpush1.bf16.msra.mxu0 %v741
        %800 = vmatprep.subr.bf16.mxu0 0
        %801 = vmatpush1.bf16.msra.mxu0 %v740
        %802 = vmatprep.subr.bf16.mxu0 0
        %803 = vmatpush1.bf16.msra.mxu0 %v739
        %804 = vmatprep.subr.bf16.mxu0 0
        %805 = vmatpush1.bf16.msra.mxu0 %v738
        %806 = vmatprep.subr.bf16.mxu0 0
        %807 = vmatpush1.bf16.msra.mxu0 %v737
        %808 = vmatprep.subr.bf16.mxu0 0
        %809 = vmatpush1.bf16.msra.mxu0 %v736
        %810 = vmatprep.subr.bf16.mxu0 0
        %811 = vmatpush1.bf16.msra.mxu0 %v735
        %812 = vmatprep.subr.bf16.mxu0 0
        %813 = vmatpush1.bf16.msra.mxu0 %v734
        %814 = vmatprep.subr.bf16.mxu0 0
        %815 = vmatpush2.bf16.msra.mxu0 %v749
        %816 = vmatprep.subr.bf16.mxu0 0
        %817 = vmatpush2.bf16.msra.mxu0 %v748
        %818 = vmatprep.subr.bf16.mxu0 0
        %819 = vmatpush2.bf16.msra.mxu0 %v747
        %820 = vmatprep.subr.bf16.mxu0 0
        %821 = vmatpush2.bf16.msra.mxu0 %v746
        %822 = vmatprep.subr.bf16.mxu0 0
        %823 = vmatpush2.bf16.msra.mxu0 %v745
        %824 = vmatprep.subr.bf16.mxu0 0
        %825 = vmatpush2.bf16.msra.mxu0 %v744
        %826 = vmatprep.subr.bf16.mxu0 0
        %827 = vmatpush2.bf16.msra.mxu0 %v743
        %828 = vmatprep.subr.bf16.mxu0 0
        %829 = vmatpush2.bf16.msra.mxu0 %v742
        %830 = vmatprep.mubr.bf16.mxu0 %v599
        %831 = vmatmul.mubr.bf16.gmra.mxu0 %v598
        %v832 = vpop.f32.mrf.mxu0
        %v833 = vadd.f32 %v591, %v832
        %v834 = vpop.f32.mrf.mxu0
        %v835 = vpop.f32.mrf.mxu0
        %v836 = vpop.f32.mrf.mxu0
        %837 = vdwg.mxu0
        %838 = vmatprep.subr.bf16.mxu0 0
        %839 = vmatpush1.bf16.msra.mxu0 %v757
        %840 = vmatprep.subr.bf16.mxu0 0
        %841 = vmatpush1.bf16.msra.mxu0 %v756
        %842 = vmatprep.subr.bf16.mxu0 0
        %843 = vmatpush1.bf16.msra.mxu0 %v755
        %844 = vmatprep.subr.bf16.mxu0 0
        %845 = vmatpush1.bf16.msra.mxu0 %v754
        %846 = vmatprep.subr.bf16.mxu0 0
        %847 = vmatpush1.bf16.msra.mxu0 %v753
        %848 = vmatprep.subr.bf16.mxu0 0
        %849 = vmatpush1.bf16.msra.mxu0 %v752
        %850 = vmatprep.subr.bf16.mxu0 0
        %851 = vmatpush1.bf16.msra.mxu0 %v751
        %852 = vmatprep.subr.bf16.mxu0 0
        %853 = vmatpush1.bf16.msra.mxu0 %v750
        %854 = vmatprep.subr.bf16.mxu0 0
        %855 = vmatpush2.bf16.msra.mxu0 %v765
        %856 = vmatprep.subr.bf16.mxu0 0
        %857 = vmatpush2.bf16.msra.mxu0 %v764
        %858 = vmatprep.subr.bf16.mxu0 0
        %859 = vmatpush2.bf16.msra.mxu0 %v763
        %860 = vmatprep.subr.bf16.mxu0 0
        %861 = vmatpush2.bf16.msra.mxu0 %v762
        %862 = vmatprep.subr.bf16.mxu0 0
        %863 = vmatpush2.bf16.msra.mxu0 %v761
        %864 = vmatprep.subr.bf16.mxu0 0
        %865 = vmatpush2.bf16.msra.mxu0 %v760
        %866 = vmatprep.subr.bf16.mxu0 0
        %867 = vmatpush2.bf16.msra.mxu0 %v759
        %868 = vmatprep.subr.bf16.mxu0 0
        %869 = vmatpush2.bf16.msra.mxu0 %v758
        %870 = vmatprep.mubr.bf16.mxu0 %v601
        %871 = vmatmul.mubr.bf16.gmra.mxu0 %v600
        %v872 = vpop.f32.mrf.mxu0
        %v873 = vadd.f32 %v833, %v872
        %v874 = vpop.f32.mrf.mxu0
        %v875 = vpop.f32.mrf.mxu0
        %v876 = vpop.f32.mrf.mxu0
        %877 = vdwg.mxu0
        %v878 = vld [vmem:[%s499] sm:$0xf]
        %v879 = vld [vmem:[%s499 + $0x4] sm:$0xf]
        %v880 = vld [vmem:[%s499 + $0x8] sm:$0xf]
        %v881 = vld [vmem:[%s499 + $0xc] sm:$0xf]
        %v882 = vld [vmem:[%s499 + $0x10] sm:$0xf]
        %v883 = vld [vmem:[%s499 + $0x14] sm:$0xf]
        %v884 = vld [vmem:[%s499 + $0x18] sm:$0xf]
        %v885 = vld [vmem:[%s499 + $0x1c] sm:$0xf]
        %v886 = vld [vmem:[%s499 + $0x20] sm:$0xf]
        %v887 = vld [vmem:[%s499 + $0x24] sm:$0xf]
        %v888 = vld [vmem:[%s499 + $0x28] sm:$0xf]
        %v889 = vld [vmem:[%s499 + $0x2c] sm:$0xf]
        %v890 = vld [vmem:[%s499 + $0x30] sm:$0xf]
        %v891 = vld [vmem:[%s499 + $0x34] sm:$0xf]
        %v892 = vld [vmem:[%s499 + $0x38] sm:$0xf]
        %v893 = vld [vmem:[%s499 + $0x3c] sm:$0xf]
        %v894 = vld [vmem:[%s499 + $0x40] sm:$0xf]
        %v895 = vld [vmem:[%s499 + $0x44] sm:$0xf]
        %v896 = vld [vmem:[%s499 + $0x48] sm:$0xf]
        %v897 = vld [vmem:[%s499 + $0x4c] sm:$0xf]
        %v898 = vld [vmem:[%s499 + $0x50] sm:$0xf]
        %v899 = vld [vmem:[%s499 + $0x54] sm:$0xf]
        %v900 = vld [vmem:[%s499 + $0x58] sm:$0xf]
        %v901 = vld [vmem:[%s499 + $0x5c] sm:$0xf]
        %v902 = vld [vmem:[%s499 + $0x60] sm:$0xf]
        %v903 = vld [vmem:[%s499 + $0x64] sm:$0xf]
        %v904 = vld [vmem:[%s499 + $0x68] sm:$0xf]
        %v905 = vld [vmem:[%s499 + $0x6c] sm:$0xf]
        %v906 = vld [vmem:[%s499 + $0x70] sm:$0xf]
        %v907 = vld [vmem:[%s499 + $0x74] sm:$0xf]
        %v908 = vld [vmem:[%s499 + $0x78] sm:$0xf]
        %v909 = vld [vmem:[%s499 + $0x7c] sm:$0xf]
        %v910 = vld [vmem:[%s499 + $0x80] sm:$0xf]
        %v911 = vld [vmem:[%s499 + $0x84] sm:$0xf]
        %v912 = vld [vmem:[%s499 + $0x88] sm:$0xf]
        %v913 = vld [vmem:[%s499 + $0x8c] sm:$0xf]
        %v914 = vld [vmem:[%s499 + $0x90] sm:$0xf]
        %v915 = vld [vmem:[%s499 + $0x94] sm:$0xf]
        %v916 = vld [vmem:[%s499 + $0x98] sm:$0xf]
        %v917 = vld [vmem:[%s499 + $0x9c] sm:$0xf]
        %v918 = vld [vmem:[%s499 + $0xa0] sm:$0xf]
        %v919 = vld [vmem:[%s499 + $0xa4] sm:$0xf]
        %v920 = vld [vmem:[%s499 + $0xa8] sm:$0xf]
        %v921 = vld [vmem:[%s499 + $0xac] sm:$0xf]
        %v922 = vld [vmem:[%s499 + $0xb0] sm:$0xf]
        %v923 = vld [vmem:[%s499 + $0xb4] sm:$0xf]
        %v924 = vld [vmem:[%s499 + $0xb8] sm:$0xf]
        %v925 = vld [vmem:[%s499 + $0xbc] sm:$0xf]
        %v926 = vld [vmem:[%s499 + $0xc0] sm:$0xf]
        %v927 = vld [vmem:[%s499 + $0xc4] sm:$0xf]
        %v928 = vld [vmem:[%s499 + $0xc8] sm:$0xf]
        %v929 = vld [vmem:[%s499 + $0xcc] sm:$0xf]
        %v930 = vld [vmem:[%s499 + $0xd0] sm:$0xf]
        %v931 = vld [vmem:[%s499 + $0xd4] sm:$0xf]
        %v932 = vld [vmem:[%s499 + $0xd8] sm:$0xf]
        %v933 = vld [vmem:[%s499 + $0xdc] sm:$0xf]
        %v934 = vld [vmem:[%s499 + $0xe0] sm:$0xf]
        %v935 = vld [vmem:[%s499 + $0xe4] sm:$0xf]
        %v936 = vld [vmem:[%s499 + $0xe8] sm:$0xf]
        %v937 = vld [vmem:[%s499 + $0xec] sm:$0xf]
        %v938 = vld [vmem:[%s499 + $0xf0] sm:$0xf]
        %v939 = vld [vmem:[%s499 + $0xf4] sm:$0xf]
        %v940 = vld [vmem:[%s499 + $0xf8] sm:$0xf]
        %v941 = vld [vmem:[%s499 + $0xfc] sm:$0xf]
        %v942 = vld [vmem:[%s510] sm:$0x1]
        %v943 = vunpack.c.l.bf16 %v942
        %v944 = vlaneseq
        %v945 = vshrl.u32 %v944, 7
        %v946 = vsub.s32 0, %v945
        %v947 = vrot.slane %v943, %v946
        %v1012 = vunpack.c.l.b16 %v878
        %v1013 = vunpack.c.l.b16 %v879
        %v1014 = vunpack.c.l.b16 %v880
        %v1015 = vunpack.c.l.b16 %v881
        %v1016 = vunpack.c.l.b16 %v882
        %v1017 = vunpack.c.l.b16 %v883
        %v1018 = vunpack.c.l.b16 %v884
        %v1019 = vunpack.c.l.b16 %v885
        %v1020 = vunpack.c.l.b16 %v886
        %v1021 = vunpack.c.l.b16 %v887
        %v1022 = vunpack.c.l.b16 %v888
        %v1023 = vunpack.c.l.b16 %v889
        %v1024 = vunpack.c.l.b16 %v890
        %v1025 = vunpack.c.l.b16 %v891
        %v1026 = vunpack.c.l.b16 %v892
        %v1027 = vunpack.c.l.b16 %v893
        %v1028 = vunpack.c.l.b16 %v894
        %v1029 = vunpack.c.l.b16 %v895
        %v1030 = vunpack.c.l.b16 %v896
        %v1031 = vunpack.c.l.b16 %v897
        %v1032 = vunpack.c.l.b16 %v898
        %v1033 = vunpack.c.l.b16 %v899
        %v1034 = vunpack.c.l.b16 %v900
        %v1035 = vunpack.c.l.b16 %v901
        %v1036 = vunpack.c.l.b16 %v902
        %v1037 = vunpack.c.l.b16 %v903
        %v1038 = vunpack.c.l.b16 %v904
        %v1039 = vunpack.c.l.b16 %v905
        %v1040 = vunpack.c.l.b16 %v906
        %v1041 = vunpack.c.l.b16 %v907
        %v1042 = vunpack.c.l.b16 %v908
        %v1043 = vunpack.c.l.b16 %v909
        %v1044 = vunpack.c.l.b16 %v910
        %v1045 = vunpack.c.l.b16 %v911
        %v1046 = vunpack.c.l.b16 %v912
        %v1047 = vunpack.c.l.b16 %v913
        %v1048 = vunpack.c.l.b16 %v914
        %v1049 = vunpack.c.l.b16 %v915
        %v1050 = vunpack.c.l.b16 %v916
        %v1051 = vunpack.c.l.b16 %v917
        %v1052 = vunpack.c.l.b16 %v918
        %v1053 = vunpack.c.l.b16 %v919
        %v1054 = vunpack.c.l.b16 %v920
        %v1055 = vunpack.c.l.b16 %v921
        %v1056 = vunpack.c.l.b16 %v922
        %v1057 = vunpack.c.l.b16 %v923
        %v1058 = vunpack.c.l.b16 %v924
        %v1059 = vunpack.c.l.b16 %v925
        %v1060 = vunpack.c.l.b16 %v926
        %v1061 = vunpack.c.l.b16 %v927
        %v1062 = vunpack.c.l.b16 %v928
        %v1063 = vunpack.c.l.b16 %v929
        %v1064 = vunpack.c.l.b16 %v930
        %v1065 = vunpack.c.l.b16 %v931
        %v1066 = vunpack.c.l.b16 %v932
        %v1067 = vunpack.c.l.b16 %v933
        %v1068 = vunpack.c.l.b16 %v934
        %v1069 = vunpack.c.l.b16 %v935
        %v1070 = vunpack.c.l.b16 %v936
        %v1071 = vunpack.c.l.b16 %v937
        %v1072 = vunpack.c.l.b16 %v938
        %v1073 = vunpack.c.l.b16 %v939
        %v1074 = vunpack.c.l.b16 %v940
        %v1075 = vunpack.c.l.b16 %v941
        %v1076 = vpack.c.b16 %v1013, %v1012
        %v1077 = vpack.c.b16 %v1015, %v1014
        %v1078 = vpack.c.b16 %v1017, %v1016
        %v1079 = vpack.c.b16 %v1019, %v1018
        %v1080 = vpack.c.b16 %v1021, %v1020
        %v1081 = vpack.c.b16 %v1023, %v1022
        %v1082 = vpack.c.b16 %v1025, %v1024
        %v1083 = vpack.c.b16 %v1027, %v1026
        %v1084 = vpack.c.b16 %v1029, %v1028
        %v1085 = vpack.c.b16 %v1031, %v1030
        %v1086 = vpack.c.b16 %v1033, %v1032
        %v1087 = vpack.c.b16 %v1035, %v1034
        %v1088 = vpack.c.b16 %v1037, %v1036
        %v1089 = vpack.c.b16 %v1039, %v1038
        %v1090 = vpack.c.b16 %v1041, %v1040
        %v1091 = vpack.c.b16 %v1043, %v1042
        %v1092 = vpack.c.b16 %v1045, %v1044
        %v1093 = vpack.c.b16 %v1047, %v1046
        %v1094 = vpack.c.b16 %v1049, %v1048
        %v1095 = vpack.c.b16 %v1051, %v1050
        %v1096 = vpack.c.b16 %v1053, %v1052
        %v1097 = vpack.c.b16 %v1055, %v1054
        %v1098 = vpack.c.b16 %v1057, %v1056
        %v1099 = vpack.c.b16 %v1059, %v1058
        %v1100 = vpack.c.b16 %v1061, %v1060
        %v1101 = vpack.c.b16 %v1063, %v1062
        %v1102 = vpack.c.b16 %v1065, %v1064
        %v1103 = vpack.c.b16 %v1067, %v1066
        %v1104 = vpack.c.b16 %v1069, %v1068
        %v1105 = vpack.c.b16 %v1071, %v1070
        %v1106 = vpack.c.b16 %v1073, %v1072
        %v1107 = vpack.c.b16 %v1075, %v1074
        %1140 = vmatprep.subr.bf16.mxu0 0
        %1141 = vmatpush1.bf16.msra.mxu0 %v1083
        %1142 = vmatprep.subr.bf16.mxu0 0
        %1143 = vmatpush1.bf16.msra.mxu0 %v1082
        %1144 = vmatprep.subr.bf16.mxu0 0
        %1145 = vmatpush1.bf16.msra.mxu0 %v1081
        %1146 = vmatprep.subr.bf16.mxu0 0
        %1147 = vmatpush1.bf16.msra.mxu0 %v1080
        %1148 = vmatprep.subr.bf16.mxu0 0
        %1149 = vmatpush1.bf16.msra.mxu0 %v1079
        %1150 = vmatprep.subr.bf16.mxu0 0
        %1151 = vmatpush1.bf16.msra.mxu0 %v1078
        %1152 = vmatprep.subr.bf16.mxu0 0
        %1153 = vmatpush1.bf16.msra.mxu0 %v1077
        %1154 = vmatprep.subr.bf16.mxu0 0
        %1155 = vmatpush1.bf16.msra.mxu0 %v1076
        %1156 = vmatprep.subr.bf16.mxu0 0
        %1157 = vmatpush2.bf16.msra.mxu0 %v1091
        %1158 = vmatprep.subr.bf16.mxu0 0
        %1159 = vmatpush2.bf16.msra.mxu0 %v1090
        %1160 = vmatprep.subr.bf16.mxu0 0
        %1161 = vmatpush2.bf16.msra.mxu0 %v1089
        %1162 = vmatprep.subr.bf16.mxu0 0
        %1163 = vmatpush2.bf16.msra.mxu0 %v1088
        %1164 = vmatprep.subr.bf16.mxu0 0
        %1165 = vmatpush2.bf16.msra.mxu0 %v1087
        %1166 = vmatprep.subr.bf16.mxu0 0
        %1167 = vmatpush2.bf16.msra.mxu0 %v1086
        %1168 = vmatprep.subr.bf16.mxu0 0
        %1169 = vmatpush2.bf16.msra.mxu0 %v1085
        %1170 = vmatprep.subr.bf16.mxu0 0
        %1171 = vmatpush2.bf16.msra.mxu0 %v1084
        %1172 = vmatprep.mubr.bf16.mxu0 %v599
        %1173 = vmatmul.mubr.bf16.gmra.mxu0 %v598
        %v1174 = vpop.f32.mrf.mxu0
        %v1175 = vadd.f32 %v947, %v1174
        %v1176 = vpop.f32.mrf.mxu0
        %v1177 = vpop.f32.mrf.mxu0
        %v1178 = vpop.f32.mrf.mxu0
        %1179 = vdwg.mxu0
        %1180 = vmatprep.subr.bf16.mxu0 0
        %1181 = vmatpush1.bf16.msra.mxu0 %v1099
        %1182 = vmatprep.subr.bf16.mxu0 0
        %1183 = vmatpush1.bf16.msra.mxu0 %v1098
        %1184 = vmatprep.subr.bf16.mxu0 0
        %1185 = vmatpush1.bf16.msra.mxu0 %v1097
        %1186 = vmatprep.subr.bf16.mxu0 0
        %1187 = vmatpush1.bf16.msra.mxu0 %v1096
        %1188 = vmatprep.subr.bf16.mxu0 0
        %1189 = vmatpush1.bf16.msra.mxu0 %v1095
        %1190 = vmatprep.subr.bf16.mxu0 0
        %1191 = vmatpush1.bf16.msra.mxu0 %v1094
        %1192 = vmatprep.subr.bf16.mxu0 0
        %1193 = vmatpush1.bf16.msra.mxu0 %v1093
        %1194 = vmatprep.subr.bf16.mxu0 0
        %1195 = vmatpush1.bf16.msra.mxu0 %v1092
        %1196 = vmatprep.subr.bf16.mxu0 0
        %1197 = vmatpush2.bf16.msra.mxu0 %v1107
        %1198 = vmatprep.subr.bf16.mxu0 0
        %1199 = vmatpush2.bf16.msra.mxu0 %v1106
        %1200 = vmatprep.subr.bf16.mxu0 0
        %1201 = vmatpush2.bf16.msra.mxu0 %v1105
        %1202 = vmatprep.subr.bf16.mxu0 0
        %1203 = vmatpush2.bf16.msra.mxu0 %v1104
        %1204 = vmatprep.subr.bf16.mxu0 0
        %1205 = vmatpush2.bf16.msra.mxu0 %v1103
        %1206 = vmatprep.subr.bf16.mxu0 0
        %1207 = vmatpush2.bf16.msra.mxu0 %v1102
        %1208 = vmatprep.subr.bf16.mxu0 0
        %1209 = vmatpush2.bf16.msra.mxu0 %v1101
        %1210 = vmatprep.subr.bf16.mxu0 0
        %1211 = vmatpush2.bf16.msra.mxu0 %v1100
        %1212 = vmatprep.mubr.bf16.mxu0 %v601
        %1213 = vmatmul.mubr.bf16.gmra.mxu0 %v600
        %v1214 = vpop.f32.mrf.mxu0
        %v1215 = vadd.f32 %v1175, %v1214
        %v1216 = vpop.f32.mrf.mxu0
        %v1217 = vpop.f32.mrf.mxu0
        %v1218 = vpop.f32.mrf.mxu0
        %1219 = vdwg.mxu0
        %v1220 = vld [vmem:[%s504] sm:$0xf]
        %v1221 = vld [vmem:[%s504 + $0x4] sm:$0xf]
        %v1222 = vld [vmem:[%s504 + $0x8] sm:$0xf]
        %v1223 = vld [vmem:[%s504 + $0xc] sm:$0xf]
        %v1224 = vld [vmem:[%s504 + $0x10] sm:$0xf]
        %v1225 = vld [vmem:[%s504 + $0x14] sm:$0xf]
        %v1226 = vld [vmem:[%s504 + $0x18] sm:$0xf]
        %v1227 = vld [vmem:[%s504 + $0x1c] sm:$0xf]
        %v1228 = vld [vmem:[%s504 + $0x20] sm:$0xf]
        %v1229 = vld [vmem:[%s504 + $0x24] sm:$0xf]
        %v1230 = vld [vmem:[%s504 + $0x28] sm:$0xf]
        %v1231 = vld [vmem:[%s504 + $0x2c] sm:$0xf]
        %v1232 = vld [vmem:[%s504 + $0x30] sm:$0xf]
        %v1233 = vld [vmem:[%s504 + $0x34] sm:$0xf]
        %v1234 = vld [vmem:[%s504 + $0x38] sm:$0xf]
        %v1235 = vld [vmem:[%s504 + $0x3c] sm:$0xf]
        %v1236 = vld [vmem:[%s504 + $0x40] sm:$0xf]
        %v1237 = vld [vmem:[%s504 + $0x44] sm:$0xf]
        %v1238 = vld [vmem:[%s504 + $0x48] sm:$0xf]
        %v1239 = vld [vmem:[%s504 + $0x4c] sm:$0xf]
        %v1240 = vld [vmem:[%s504 + $0x50] sm:$0xf]
        %v1241 = vld [vmem:[%s504 + $0x54] sm:$0xf]
        %v1242 = vld [vmem:[%s504 + $0x58] sm:$0xf]
        %v1243 = vld [vmem:[%s504 + $0x5c] sm:$0xf]
        %v1244 = vld [vmem:[%s504 + $0x60] sm:$0xf]
        %v1245 = vld [vmem:[%s504 + $0x64] sm:$0xf]
        %v1246 = vld [vmem:[%s504 + $0x68] sm:$0xf]
        %v1247 = vld [vmem:[%s504 + $0x6c] sm:$0xf]
        %v1248 = vld [vmem:[%s504 + $0x70] sm:$0xf]
        %v1249 = vld [vmem:[%s504 + $0x74] sm:$0xf]
        %v1250 = vld [vmem:[%s504 + $0x78] sm:$0xf]
        %v1251 = vld [vmem:[%s504 + $0x7c] sm:$0xf]
        %v1252 = vld [vmem:[%s504 + $0x80] sm:$0xf]
        %v1253 = vld [vmem:[%s504 + $0x84] sm:$0xf]
        %v1254 = vld [vmem:[%s504 + $0x88] sm:$0xf]
        %v1255 = vld [vmem:[%s504 + $0x8c] sm:$0xf]
        %v1256 = vld [vmem:[%s504 + $0x90] sm:$0xf]
        %v1257 = vld [vmem:[%s504 + $0x94] sm:$0xf]
        %v1258 = vld [vmem:[%s504 + $0x98] sm:$0xf]
        %v1259 = vld [vmem:[%s504 + $0x9c] sm:$0xf]
        %v1260 = vld [vmem:[%s504 + $0xa0] sm:$0xf]
        %v1261 = vld [vmem:[%s504 + $0xa4] sm:$0xf]
        %v1262 = vld [vmem:[%s504 + $0xa8] sm:$0xf]
        %v1263 = vld [vmem:[%s504 + $0xac] sm:$0xf]
        %v1264 = vld [vmem:[%s504 + $0xb0] sm:$0xf]
        %v1265 = vld [vmem:[%s504 + $0xb4] sm:$0xf]
        %v1266 = vld [vmem:[%s504 + $0xb8] sm:$0xf]
        %v1267 = vld [vmem:[%s504 + $0xbc] sm:$0xf]
        %v1268 = vld [vmem:[%s504 + $0xc0] sm:$0xf]
        %v1269 = vld [vmem:[%s504 + $0xc4] sm:$0xf]
        %v1270 = vld [vmem:[%s504 + $0xc8] sm:$0xf]
        %v1271 = vld [vmem:[%s504 + $0xcc] sm:$0xf]
        %v1272 = vld [vmem:[%s504 + $0xd0] sm:$0xf]
        %v1273 = vld [vmem:[%s504 + $0xd4] sm:$0xf]
        %v1274 = vld [vmem:[%s504 + $0xd8] sm:$0xf]
        %v1275 = vld [vmem:[%s504 + $0xdc] sm:$0xf]
        %v1276 = vld [vmem:[%s504 + $0xe0] sm:$0xf]
        %v1277 = vld [vmem:[%s504 + $0xe4] sm:$0xf]
        %v1278 = vld [vmem:[%s504 + $0xe8] sm:$0xf]
        %v1279 = vld [vmem:[%s504 + $0xec] sm:$0xf]
        %v1280 = vld [vmem:[%s504 + $0xf0] sm:$0xf]
        %v1281 = vld [vmem:[%s504 + $0xf4] sm:$0xf]
        %v1282 = vld [vmem:[%s504 + $0xf8] sm:$0xf]
        %v1283 = vld [vmem:[%s504 + $0xfc] sm:$0xf]
        %v1284 = vld [vmem:[%s513] sm:$0x1]
        %v1285 = vunpack.c.l.bf16 %v1284
        %v1286 = vlaneseq
        %v1287 = vshrl.u32 %v1286, 7
        %v1288 = vsub.s32 0, %v1287
        %v1289 = vrot.slane %v1285, %v1288
        %v1354 = vunpack.c.l.b16 %v1220
        %v1355 = vunpack.c.l.b16 %v1221
        %v1356 = vunpack.c.l.b16 %v1222
        %v1357 = vunpack.c.l.b16 %v1223
        %v1358 = vunpack.c.l.b16 %v1224
        %v1359 = vunpack.c.l.b16 %v1225
        %v1360 = vunpack.c.l.b16 %v1226
        %v1361 = vunpack.c.l.b16 %v1227
        %v1362 = vunpack.c.l.b16 %v1228
        %v1363 = vunpack.c.l.b16 %v1229
        %v1364 = vunpack.c.l.b16 %v1230
        %v1365 = vunpack.c.l.b16 %v1231
        %v1366 = vunpack.c.l.b16 %v1232
        %v1367 = vunpack.c.l.b16 %v1233
        %v1368 = vunpack.c.l.b16 %v1234
        %v1369 = vunpack.c.l.b16 %v1235
        %v1370 = vunpack.c.l.b16 %v1236
        %v1371 = vunpack.c.l.b16 %v1237
        %v1372 = vunpack.c.l.b16 %v1238
        %v1373 = vunpack.c.l.b16 %v1239
        %v1374 = vunpack.c.l.b16 %v1240
        %v1375 = vunpack.c.l.b16 %v1241
        %v1376 = vunpack.c.l.b16 %v1242
        %v1377 = vunpack.c.l.b16 %v1243
        %v1378 = vunpack.c.l.b16 %v1244
        %v1379 = vunpack.c.l.b16 %v1245
        %v1380 = vunpack.c.l.b16 %v1246
        %v1381 = vunpack.c.l.b16 %v1247
        %v1382 = vunpack.c.l.b16 %v1248
        %v1383 = vunpack.c.l.b16 %v1249
        %v1384 = vunpack.c.l.b16 %v1250
        %v1385 = vunpack.c.l.b16 %v1251
        %v1386 = vunpack.c.l.b16 %v1252
        %v1387 = vunpack.c.l.b16 %v1253
        %v1388 = vunpack.c.l.b16 %v1254
        %v1389 = vunpack.c.l.b16 %v1255
        %v1390 = vunpack.c.l.b16 %v1256
        %v1391 = vunpack.c.l.b16 %v1257
        %v1392 = vunpack.c.l.b16 %v1258
        %v1393 = vunpack.c.l.b16 %v1259
        %v1394 = vunpack.c.l.b16 %v1260
        %v1395 = vunpack.c.l.b16 %v1261
        %v1396 = vunpack.c.l.b16 %v1262
        %v1397 = vunpack.c.l.b16 %v1263
        %v1398 = vunpack.c.l.b16 %v1264
        %v1399 = vunpack.c.l.b16 %v1265
        %v1400 = vunpack.c.l.b16 %v1266
        %v1401 = vunpack.c.l.b16 %v1267
        %v1402 = vunpack.c.l.b16 %v1268
        %v1403 = vunpack.c.l.b16 %v1269
        %v1404 = vunpack.c.l.b16 %v1270
        %v1405 = vunpack.c.l.b16 %v1271
        %v1406 = vunpack.c.l.b16 %v1272
        %v1407 = vunpack.c.l.b16 %v1273
        %v1408 = vunpack.c.l.b16 %v1274
        %v1409 = vunpack.c.l.b16 %v1275
        %v1410 = vunpack.c.l.b16 %v1276
        %v1411 = vunpack.c.l.b16 %v1277
        %v1412 = vunpack.c.l.b16 %v1278
        %v1413 = vunpack.c.l.b16 %v1279
        %v1414 = vunpack.c.l.b16 %v1280
        %v1415 = vunpack.c.l.b16 %v1281
        %v1416 = vunpack.c.l.b16 %v1282
        %v1417 = vunpack.c.l.b16 %v1283
        %v1418 = vpack.c.b16 %v1355, %v1354
        %v1419 = vpack.c.b16 %v1357, %v1356
        %v1420 = vpack.c.b16 %v1359, %v1358
        %v1421 = vpack.c.b16 %v1361, %v1360
        %v1422 = vpack.c.b16 %v1363, %v1362
        %v1423 = vpack.c.b16 %v1365, %v1364
        %v1424 = vpack.c.b16 %v1367, %v1366
        %v1425 = vpack.c.b16 %v1369, %v1368
        %v1426 = vpack.c.b16 %v1371, %v1370
        %v1427 = vpack.c.b16 %v1373, %v1372
        %v1428 = vpack.c.b16 %v1375, %v1374
        %v1429 = vpack.c.b16 %v1377, %v1376
        %v1430 = vpack.c.b16 %v1379, %v1378
        %v1431 = vpack.c.b16 %v1381, %v1380
        %v1432 = vpack.c.b16 %v1383, %v1382
        %v1433 = vpack.c.b16 %v1385, %v1384
        %v1434 = vpack.c.b16 %v1387, %v1386
        %v1435 = vpack.c.b16 %v1389, %v1388
        %v1436 = vpack.c.b16 %v1391, %v1390
        %v1437 = vpack.c.b16 %v1393, %v1392
        %v1438 = vpack.c.b16 %v1395, %v1394
        %v1439 = vpack.c.b16 %v1397, %v1396
        %v1440 = vpack.c.b16 %v1399, %v1398
        %v1441 = vpack.c.b16 %v1401, %v1400
        %v1442 = vpack.c.b16 %v1403, %v1402
        %v1443 = vpack.c.b16 %v1405, %v1404
        %v1444 = vpack.c.b16 %v1407, %v1406
        %v1445 = vpack.c.b16 %v1409, %v1408
        %v1446 = vpack.c.b16 %v1411, %v1410
        %v1447 = vpack.c.b16 %v1413, %v1412
        %v1448 = vpack.c.b16 %v1415, %v1414
        %v1449 = vpack.c.b16 %v1417, %v1416
        %1482 = vmatprep.subr.bf16.mxu0 0
        %1483 = vmatpush1.bf16.msra.mxu0 %v1425
        %1484 = vmatprep.subr.bf16.mxu0 0
        %1485 = vmatpush1.bf16.msra.mxu0 %v1424
        %1486 = vmatprep.subr.bf16.mxu0 0
        %1487 = vmatpush1.bf16.msra.mxu0 %v1423
        %1488 = vmatprep.subr.bf16.mxu0 0
        %1489 = vmatpush1.bf16.msra.mxu0 %v1422
        %1490 = vmatprep.subr.bf16.mxu0 0
        %1491 = vmatpush1.bf16.msra.mxu0 %v1421
        %1492 = vmatprep.subr.bf16.mxu0 0
        %1493 = vmatpush1.bf16.msra.mxu0 %v1420
        %1494 = vmatprep.subr.bf16.mxu0 0
        %1495 = vmatpush1.bf16.msra.mxu0 %v1419
        %1496 = vmatprep.subr.bf16.mxu0 0
        %1497 = vmatpush1.bf16.msra.mxu0 %v1418
        %1498 = vmatprep.subr.bf16.mxu0 0
        %1499 = vmatpush2.bf16.msra.mxu0 %v1433
        %1500 = vmatprep.subr.bf16.mxu0 0
        %1501 = vmatpush2.bf16.msra.mxu0 %v1432
        %1502 = vmatprep.subr.bf16.mxu0 0
        %1503 = vmatpush2.bf16.msra.mxu0 %v1431
        %1504 = vmatprep.subr.bf16.mxu0 0
        %1505 = vmatpush2.bf16.msra.mxu0 %v1430
        %1506 = vmatprep.subr.bf16.mxu0 0
        %1507 = vmatpush2.bf16.msra.mxu0 %v1429
        %1508 = vmatprep.subr.bf16.mxu0 0
        %1509 = vmatpush2.bf16.msra.mxu0 %v1428
        %1510 = vmatprep.subr.bf16.mxu0 0
        %1511 = vmatpush2.bf16.msra.mxu0 %v1427
        %1512 = vmatprep.subr.bf16.mxu0 0
        %1513 = vmatpush2.bf16.msra.mxu0 %v1426
        %1514 = vmatprep.mubr.bf16.mxu0 %v599
        %1515 = vmatmul.mubr.bf16.gmra.mxu0 %v598
        %v1516 = vpop.f32.mrf.mxu0
        %v1517 = vadd.f32 %v1289, %v1516
        %v1518 = vpop.f32.mrf.mxu0
        %v1519 = vpop.f32.mrf.mxu0
        %v1520 = vpop.f32.mrf.mxu0
        %1521 = vdwg.mxu0
        %1522 = vmatprep.subr.bf16.mxu0 0
        %1523 = vmatpush1.bf16.msra.mxu0 %v1441
        %1524 = vmatprep.subr.bf16.mxu0 0
        %1525 = vmatpush1.bf16.msra.mxu0 %v1440
        %1526 = vmatprep.subr.bf16.mxu0 0
        %1527 = vmatpush1.bf16.msra.mxu0 %v1439
        %1528 = vmatprep.subr.bf16.mxu0 0
        %1529 = vmatpush1.bf16.msra.mxu0 %v1438
        %1530 = vmatprep.subr.bf16.mxu0 0
        %1531 = vmatpush1.bf16.msra.mxu0 %v1437
        %1532 = vmatprep.subr.bf16.mxu0 0
        %1533 = vmatpush1.bf16.msra.mxu0 %v1436
        %1534 = vmatprep.subr.bf16.mxu0 0
        %1535 = vmatpush1.bf16.msra.mxu0 %v1435
        %1536 = vmatprep.subr.bf16.mxu0 0
        %1537 = vmatpush1.bf16.msra.mxu0 %v1434
        %1538 = vmatprep.subr.bf16.mxu0 0
        %1539 = vmatpush2.bf16.msra.mxu0 %v1449
        %1540 = vmatprep.subr.bf16.mxu0 0
        %1541 = vmatpush2.bf16.msra.mxu0 %v1448
        %1542 = vmatprep.subr.bf16.mxu0 0
        %1543 = vmatpush2.bf16.msra.mxu0 %v1447
        %1544 = vmatprep.subr.bf16.mxu0 0
        %1545 = vmatpush2.bf16.msra.mxu0 %v1446
        %1546 = vmatprep.subr.bf16.mxu0 0
        %1547 = vmatpush2.bf16.msra.mxu0 %v1445
        %1548 = vmatprep.subr.bf16.mxu0 0
        %1549 = vmatpush2.bf16.msra.mxu0 %v1444
        %1550 = vmatprep.subr.bf16.mxu0 0
        %1551 = vmatpush2.bf16.msra.mxu0 %v1443
        %1552 = vmatprep.subr.bf16.mxu0 0
        %1553 = vmatpush2.bf16.msra.mxu0 %v1442
        %1554 = vmatprep.mubr.bf16.mxu0 %v601
        %1555 = vmatmul.mubr.bf16.gmra.mxu0 %v600
        %v1556 = vpop.f32.mrf.mxu0
        %v1557 = vadd.f32 %v1517, %v1556
        %v1558 = vpop.f32.mrf.mxu0
        %v1559 = vpop.f32.mrf.mxu0
        %v1560 = vpop.f32.mrf.mxu0
        %1561 = vdwg.mxu0
        %v1562 = vpack.c.bf16 %v873, %v873
        %v1563 = vpack.c.bf16 %v1215, %v1215
        %vm1564 = vcmask 523264
        %v1566 = vsel %vm1564, %v1562, 0
        %v1569 = vsel %vm1564, %v1563, 0
        %1571 = vmatprep.subr.bf16.mxu0 0
        %1572 = vmatpush1.bf16.xpose.msra.mxu0 0
        %1573 = vmatprep.subr.bf16.mxu0 0
        %1574 = vmatpush1.bf16.xpose.msra.mxu0 0
        %1575 = vmatprep.subr.bf16.mxu0 0
        %1576 = vmatpush1.bf16.xpose.msra.mxu0 0
        %1577 = vmatprep.subr.bf16.mxu0 0
        %1578 = vmatpush1.bf16.xpose.msra.mxu0 0
        %1579 = vmatprep.subr.bf16.mxu0 0
        %1580 = vmatpush1.bf16.xpose.msra.mxu0 0
        %1581 = vmatprep.subr.bf16.mxu0 0
        %1582 = vmatpush1.bf16.xpose.msra.mxu0 0
        %1583 = vmatprep.subr.bf16.mxu0 0
        %1584 = vmatpush1.bf16.xpose.msra.mxu0 0
        %1585 = vmatprep.subr.bf16.mxu0 0
        %1586 = vmatpush1.bf16.xpose.msra.mxu0 %v1569
        %1587 = vmatprep.subr.bf16.mxu0 0
        %1588 = vmatpush2.bf16.xpose.msra.mxu0 0
        %1589 = vmatprep.subr.bf16.mxu0 0
        %1590 = vmatpush2.bf16.xpose.msra.mxu0 0
        %1591 = vmatprep.subr.bf16.mxu0 0
        %1592 = vmatpush2.bf16.xpose.msra.mxu0 0
        %1593 = vmatprep.subr.bf16.mxu0 0
        %1594 = vmatpush2.bf16.xpose.msra.mxu0 0
        %1595 = vmatprep.subr.bf16.mxu0 0
        %1596 = vmatpush2.bf16.xpose.msra.mxu0 0
        %1597 = vmatprep.subr.bf16.mxu0 0
        %1598 = vmatpush2.bf16.xpose.msra.mxu0 0
        %1599 = vmatprep.subr.bf16.mxu0 0
        %1600 = vmatpush2.bf16.xpose.msra.mxu0 0
        %1601 = vmatprep.subr.bf16.mxu0 0
        %1602 = vmatpush2.bf16.xpose.msra.mxu0 0
        %1603 = vmatprep.mubr.bf16.mxu0 0
        %1604 = vmatmul.mubr.bf16.gmra.mxu0 %v1566
        %v1605 = vpop.f32.mrf.mxu0
        %v1606 = vadd.f32 0.0, %v1605
        %v1607 = vpop.f32.mrf.mxu0
        %v1608 = vpop.f32.mrf.mxu0
        %v1609 = vpop.f32.mrf.mxu0
        %1610 = vdwg.mxu0
        %v1611 = vmul.f32 %v1606, 0.125
        %vm1612 = vcmask 64512
        %v1613 = vsel %vm1612, %v1611, -inf
        %1614 = vmax.xlane.f32.xlu0 %v1613
        %v1615 = vpop.xlane.xlu0 %1614
        %v1616 = vsub.f32 %v1611, %v1615
        %v1617 = vmul.f32 %v1616, 1.442695
        %v1618 = vpow.pop %v1617
        %v1619 = vsel %vm1612, %v1618, 0.0
        %1620 = vadd.xlane.f32.xlu0 %v1619
        %v1621 = vpop.xlane.xlu0 %1620
        %v1622 = vrcp.pop %v1621
        %v1623 = vmul.f32 %v1618, %v1622
        %v1624 = vpack.c.bf16 %v1623, %v1623
        %v1625 = vpack.c.bf16 %v1557, %v1557
        %v1627 = vsel %vm1612, %v1624, 0
        %vm1629 = vcmask 1043456
        %v1631 = vsel %vm1629, %v1625, 0
        %1633 = vmatprep.subr.bf16.mxu0 0
        %1634 = vmatpush1.bf16.msra.mxu0 0
        %1635 = vmatprep.subr.bf16.mxu0 0
        %1636 = vmatpush1.bf16.msra.mxu0 0
        %1637 = vmatprep.subr.bf16.mxu0 0
        %1638 = vmatpush1.bf16.msra.mxu0 0
        %1639 = vmatprep.subr.bf16.mxu0 0
        %1640 = vmatpush1.bf16.msra.mxu0 0
        %1641 = vmatprep.subr.bf16.mxu0 0
        %1642 = vmatpush1.bf16.msra.mxu0 0
        %1643 = vmatprep.subr.bf16.mxu0 0
        %1644 = vmatpush1.bf16.msra.mxu0 0
        %1645 = vmatprep.subr.bf16.mxu0 0
        %1646 = vmatpush1.bf16.msra.mxu0 0
        %1647 = vmatprep.subr.bf16.mxu0 0
        %1648 = vmatpush1.bf16.msra.mxu0 %v1631
        %1649 = vmatprep.subr.bf16.mxu0 0
        %1650 = vmatpush2.bf16.msra.mxu0 0
        %1651 = vmatprep.subr.bf16.mxu0 0
        %1652 = vmatpush2.bf16.msra.mxu0 0
        %1653 = vmatprep.subr.bf16.mxu0 0
        %1654 = vmatpush2.bf16.msra.mxu0 0
        %1655 = vmatprep.subr.bf16.mxu0 0
        %1656 = vmatpush2.bf16.msra.mxu0 0
        %1657 = vmatprep.subr.bf16.mxu0 0
        %1658 = vmatpush2.bf16.msra.mxu0 0
        %1659 = vmatprep.subr.bf16.mxu0 0
        %1660 = vmatpush2.bf16.msra.mxu0 0
        %1661 = vmatprep.subr.bf16.mxu0 0
        %1662 = vmatpush2.bf16.msra.mxu0 0
        %1663 = vmatprep.subr.bf16.mxu0 0
        %1664 = vmatpush2.bf16.msra.mxu0 0
        %1665 = vmatprep.mubr.bf16.mxu0 0
        %1666 = vmatmul.mubr.bf16.gmra.mxu0 %v1627
        %v1667 = vpop.f32.mrf.mxu0
        %v1668 = vadd.f32 0.0, %v1667
        %v1669 = vpop.f32.mrf.mxu0
        %v1670 = vpop.f32.mrf.mxu0
        %v1671 = vpop.f32.mrf.mxu0
        %1672 = vdwg.mxu0
        %v1673 = vpack.c.bf16 %v1668, %v1668
        %v1674 = vld [vmem:[%s518] sm:$0xff]
        %v1675 = vld [vmem:[%s518 + $0x8] sm:$0xff]
        %v1676 = vld [vmem:[%s518 + $0x10] sm:$0xff]
        %v1677 = vld [vmem:[%s518 + $0x18] sm:$0xff]
        %v1678 = vld [vmem:[%s518 + $0x20] sm:$0xff]
        %v1679 = vld [vmem:[%s518 + $0x28] sm:$0xff]
        %v1680 = vld [vmem:[%s518 + $0x30] sm:$0xff]
        %v1681 = vld [vmem:[%s518 + $0x38] sm:$0xff]
        %v1682 = vld [vmem:[%s518 + $0x40] sm:$0xff]
        %v1683 = vld [vmem:[%s518 + $0x48] sm:$0xff]
        %v1684 = vld [vmem:[%s518 + $0x50] sm:$0xff]
        %v1685 = vld [vmem:[%s518 + $0x58] sm:$0xff]
        %v1686 = vld [vmem:[%s518 + $0x60] sm:$0xff]
        %v1687 = vld [vmem:[%s518 + $0x68] sm:$0xff]
        %v1688 = vld [vmem:[%s518 + $0x70] sm:$0xff]
        %v1689 = vld [vmem:[%s518 + $0x78] sm:$0xff]
        %v1706 = vunpack.c.l.b16 %v1674
        %v1707 = vunpack.c.h.b16 %v1674
        %v1708 = vunpack.c.l.b16 %v1675
        %v1709 = vunpack.c.h.b16 %v1675
        %v1710 = vunpack.c.l.b16 %v1676
        %v1711 = vunpack.c.h.b16 %v1676
        %v1712 = vunpack.c.l.b16 %v1677
        %v1713 = vunpack.c.h.b16 %v1677
        %v1714 = vunpack.c.l.b16 %v1678
        %v1715 = vunpack.c.h.b16 %v1678
        %v1716 = vunpack.c.l.b16 %v1679
        %v1717 = vunpack.c.h.b16 %v1679
        %v1718 = vunpack.c.l.b16 %v1680
        %v1719 = vunpack.c.h.b16 %v1680
        %v1720 = vunpack.c.l.b16 %v1681
        %v1721 = vunpack.c.h.b16 %v1681
        %v1722 = vunpack.c.l.b16 %v1682
        %v1723 = vunpack.c.h.b16 %v1682
        %v1724 = vunpack.c.l.b16 %v1683
        %v1725 = vunpack.c.h.b16 %v1683
        %v1726 = vunpack.c.l.b16 %v1684
        %v1727 = vunpack.c.h.b16 %v1684
        %v1728 = vunpack.c.l.b16 %v1685
        %v1729 = vunpack.c.h.b16 %v1685
        %v1730 = vunpack.c.l.b16 %v1686
        %v1731 = vunpack.c.h.b16 %v1686
        %v1732 = vunpack.c.l.b16 %v1687
        %v1733 = vunpack.c.h.b16 %v1687
        %v1734 = vunpack.c.l.b16 %v1688
        %v1735 = vunpack.c.h.b16 %v1688
        %v1736 = vunpack.c.l.b16 %v1689
        %v1737 = vunpack.c.h.b16 %v1689
        %v1738 = vpack.c.b16 %v1710, %v1706
        %v1739 = vpack.c.b16 %v1711, %v1707
        %v1740 = vpack.c.b16 %v1712, %v1708
        %v1741 = vpack.c.b16 %v1713, %v1709
        %v1742 = vpack.c.b16 %v1718, %v1714
        %v1743 = vpack.c.b16 %v1719, %v1715
        %v1744 = vpack.c.b16 %v1720, %v1716
        %v1745 = vpack.c.b16 %v1721, %v1717
        %v1746 = vpack.c.b16 %v1726, %v1722
        %v1747 = vpack.c.b16 %v1727, %v1723
        %v1748 = vpack.c.b16 %v1728, %v1724
        %v1749 = vpack.c.b16 %v1729, %v1725
        %v1750 = vpack.c.b16 %v1734, %v1730
        %v1751 = vpack.c.b16 %v1735, %v1731
        %v1752 = vpack.c.b16 %v1736, %v1732
        %v1753 = vpack.c.b16 %v1737, %v1733
        %v1771 = vsel %vm1564, %v1673, 0
        %1773 = vmatprep.subr.bf16.mxu0 0
        %1774 = vmatpush1.bf16.msra.mxu0 0
        %1775 = vmatprep.subr.bf16.mxu0 0
        %1776 = vmatpush1.bf16.msra.mxu0 0
        %1777 = vmatprep.subr.bf16.mxu0 0
        %1778 = vmatpush1.bf16.msra.mxu0 0
        %1779 = vmatprep.subr.bf16.mxu0 0
        %1780 = vmatpush1.bf16.msra.mxu0 0
        %1781 = vmatprep.subr.bf16.mxu0 %v1751
        %1782 = vmatpush1.bf16.msra.mxu0 %v1750
        %1783 = vmatprep.subr.bf16.mxu0 %v1747
        %1784 = vmatpush1.bf16.msra.mxu0 %v1746
        %1785 = vmatprep.subr.bf16.mxu0 %v1743
        %1786 = vmatpush1.bf16.msra.mxu0 %v1742
        %1787 = vmatprep.subr.bf16.mxu0 %v1739
        %1788 = vmatpush1.bf16.msra.mxu0 %v1738
        %1789 = vmatprep.subr.bf16.mxu0 0
        %1790 = vmatpush2.bf16.msra.mxu0 0
        %1791 = vmatprep.subr.bf16.mxu0 0
        %1792 = vmatpush2.bf16.msra.mxu0 0
        %1793 = vmatprep.subr.bf16.mxu0 0
        %1794 = vmatpush2.bf16.msra.mxu0 0
        %1795 = vmatprep.subr.bf16.mxu0 0
        %1796 = vmatpush2.bf16.msra.mxu0 0
        %1797 = vmatprep.subr.bf16.mxu0 0
        %1798 = vmatpush2.bf16.msra.mxu0 0
        %1799 = vmatprep.subr.bf16.mxu0 0
        %1800 = vmatpush2.bf16.msra.mxu0 0
        %1801 = vmatprep.subr.bf16.mxu0 0
        %1802 = vmatpush2.bf16.msra.mxu0 0
        %1803 = vmatprep.subr.bf16.mxu0 0
        %1804 = vmatpush2.bf16.msra.mxu0 0
        %1805 = vmatprep.mubr.bf16.mxu0 0
        %1806 = vmatmul.mubr.bf16.gmra.mxu0 %v1771
        %v1807 = vpop.f32.mrf.mxu0
        %v1808 = vadd.f32 0.0, %v1807
        %v1809 = vpop.f32.mrf.mxu0
        %v1810 = vadd.f32 0.0, %v1809
        %v1811 = vpop.f32.mrf.mxu0
        %v1812 = vpop.f32.mrf.mxu0
        %1813 = vdwg.mxu0
        %1814 = vmatprep.subr.bf16.mxu0 0
        %1815 = vmatpush1.bf16.msra.mxu0 0
        %1816 = vmatprep.subr.bf16.mxu0 0
        %1817 = vmatpush1.bf16.msra.mxu0 0
        %1818 = vmatprep.subr.bf16.mxu0 0
        %1819 = vmatpush1.bf16.msra.mxu0 0
        %1820 = vmatprep.subr.bf16.mxu0 0
        %1821 = vmatpush1.bf16.msra.mxu0 0
        %1822 = vmatprep.subr.bf16.mxu0 %v1753
        %1823 = vmatpush1.bf16.msra.mxu0 %v1752
        %1824 = vmatprep.subr.bf16.mxu0 %v1749
        %1825 = vmatpush1.bf16.msra.mxu0 %v1748
        %1826 = vmatprep.subr.bf16.mxu0 %v1745
        %1827 = vmatpush1.bf16.msra.mxu0 %v1744
        %1828 = vmatprep.subr.bf16.mxu0 %v1741
        %1829 = vmatpush1.bf16.msra.mxu0 %v1740
        %1830 = vmatprep.subr.bf16.mxu0 0
        %1831 = vmatpush2.bf16.msra.mxu0 0
        %1832 = vmatprep.subr.bf16.mxu0 0
        %1833 = vmatpush2.bf16.msra.mxu0 0
        %1834 = vmatprep.subr.bf16.mxu0 0
        %1835 = vmatpush2.bf16.msra.mxu0 0
        %1836 = vmatprep.subr.bf16.mxu0 0
        %1837 = vmatpush2.bf16.msra.mxu0 0
        %1838 = vmatprep.subr.bf16.mxu0 0
        %1839 = vmatpush2.bf16.msra.mxu0 0
        %1840 = vmatprep.subr.bf16.mxu0 0
        %1841 = vmatpush2.bf16.msra.mxu0 0
        %1842 = vmatprep.subr.bf16.mxu0 0
        %1843 = vmatpush2.bf16.msra.mxu0 0
        %1844 = vmatprep.subr.bf16.mxu0 0
        %1845 = vmatpush2.bf16.msra.mxu0 0
        %1846 = vmatprep.mubr.bf16.mxu0 0
        %1847 = vmatmul.mubr.bf16.gmra.mxu0 %v1771
        %v1848 = vpop.f32.mrf.mxu0
        %v1849 = vadd.f32 0.0, %v1848
        %v1850 = vpop.f32.mrf.mxu0
        %v1851 = vadd.f32 0.0, %v1850
        %v1852 = vpop.f32.mrf.mxu0
        %v1853 = vpop.f32.mrf.mxu0
        %1854 = vdwg.mxu0
        %p1855 = scmp.eq.s32.totalorder %s30, 0
        // Predicated region
        $region65: #{tpu_custom_call.1} parent=63 // pred_check
          %p1856 = pneg %p1855
        $region66: #{tpu_custom_call.1} parent=63 // pred_check_branch
          %1858 = sbr.rel (%p1856) target = $region68
        $region67: #{tpu_custom_call.1} parent=63 // pred_region
          %1859 = vst [vmem:[#allocation2] sm:$0xff] 0.0
          %1860 = vst [vmem:[#allocation2 + $0x8] sm:$0xff] 0.0
          %1861 = vst [vmem:[#allocation2 + $0x10] sm:$0xff] 0.0
          %1862 = vst [vmem:[#allocation2 + $0x18] sm:$0xff] 0.0
        $region68: #{tpu_custom_call.1} parent=63 // pred_fallthru
          _
        %v1863 = vld [vmem:[#allocation2] sm:$0xff]
        %v1864 = vld [vmem:[#allocation2 + $0x8] sm:$0xff]
        %v1865 = vld [vmem:[#allocation2 + $0x10] sm:$0xff]
        %v1866 = vld [vmem:[#allocation2 + $0x18] sm:$0xff]
        %v1867 = vadd.f32 %v1863, %v1808
        %v1868 = vadd.f32 %v1864, %v1810
        %v1869 = vadd.f32 %v1865, %v1849
        %v1870 = vadd.f32 %v1866, %v1851
        %1871 = vst [vmem:[#allocation2] sm:$0xff] %v1867
        %1872 = vst [vmem:[#allocation2 + $0x8] sm:$0xff] %v1868
        %1873 = vst [vmem:[#allocation2 + $0x10] sm:$0xff] %v1869
        %1874 = vst [vmem:[#allocation2 + $0x18] sm:$0xff] %v1870
        %p1875 = scmp.eq.s32.totalorder %s30, 7
        // Predicated region
        $region69: #{tpu_custom_call.1} parent=63 // pred_check
          %p1876 = pneg %p1875
        $region70: #{tpu_custom_call.1} parent=63 // pred_check_branch
          %1878 = sbr.rel (%p1876) target = $region72
        $region71: #{tpu_custom_call.1} parent=63 // pred_region
          %v1879 = vunpack.c.l.bf16 %v520
          %v1880 = vunpack.c.h.bf16 %v520
          %v1881 = vunpack.c.l.bf16 %v521
          %v1882 = vunpack.c.h.bf16 %v521
          %v1883 = vld [vmem:[#allocation2] sm:$0xff]
          %v1884 = vld [vmem:[#allocation2 + $0x8] sm:$0xff]
          %v1885 = vld [vmem:[#allocation2 + $0x10] sm:$0xff]
          %v1886 = vld [vmem:[#allocation2 + $0x18] sm:$0xff]
          %v1887 = vadd.f32 %v1879, %v1883
          %v1888 = vadd.f32 %v1880, %v1884
          %v1889 = vadd.f32 %v1881, %v1885
          %v1890 = vadd.f32 %v1882, %v1886
          %v1891 = vld [vmem:[%s8] sm:$0xf]
          %v1892 = vunpack.c.l.bf16 %v1891
          %v1894 = vlaneseq
          %v1895 = vshrl.u32 %v1894, 7
          %v1896 = vsub.s32 0, %v1895
          %v1897 = vrot.slane %v1892, %v1896
          %v1898 = vlaneseq
          %v1899 = vshrl.u32 %v1898, 7
          %v1900 = vsub.s32 2, %v1899
          %v1901 = vrot.slane %v1892, %v1900
          %v1902 = vlaneseq
          %v1903 = vshrl.u32 %v1902, 7
          %v1904 = vsub.s32 4, %v1903
          %v1905 = vrot.slane %v1892, %v1904
          %v1906 = vlaneseq
          %v1907 = vshrl.u32 %v1906, 7
          %v1908 = vsub.s32 6, %v1907
          %v1909 = vrot.slane %v1892, %v1908
          %v1914 = vlaneseq
          %v1915 = vshrl.u32 %v1914, 7
          %v1916 = vsub.s32 0, %v1915
          %v1917 = vrot.slane %v1897, %v1916
          %v1918 = vlaneseq
          %v1919 = vshrl.u32 %v1918, 7
          %v1920 = vsub.s32 0, %v1919
          %v1921 = vrot.slane %v1901, %v1920
          %v1922 = vlaneseq
          %v1923 = vshrl.u32 %v1922, 7
          %v1924 = vsub.s32 0, %v1923
          %v1925 = vrot.slane %v1905, %v1924
          %v1926 = vlaneseq
          %v1927 = vshrl.u32 %v1926, 7
          %v1928 = vsub.s32 0, %v1927
          %v1929 = vrot.slane %v1909, %v1928
          %v1930 = vadd.f32 %v1887, %v1917
          %v1931 = vadd.f32 %v1888, %v1921
          %v1932 = vadd.f32 %v1889, %v1925
          %v1933 = vadd.f32 %v1890, %v1929
          %v1934 = vadd.f32 %v1930, %v1931
          %v1935 = vadd.f32 %v1934, %v1932
          %v1936 = vadd.f32 %v1935, %v1933
          %1937 = vadd.xlane.f32.xlu0 %v1936
          %v1938 = vpop.xlane.xlu0 %1937
          %v1939 = vrcp.pop 512.0
          %v1940 = vmul.f32 %v1938, %v1939
          %v1941 = vsub.f32 %v1930, %v1940
          %v1942 = vsub.f32 %v1931, %v1940
          %v1943 = vsub.f32 %v1932, %v1940
          %v1944 = vsub.f32 %v1933, %v1940
          %v1945 = vmul.f32 %v1941, %v1941
          %v1946 = vmul.f32 %v1942, %v1942
          %v1947 = vmul.f32 %v1943, %v1943
          %v1948 = vmul.f32 %v1944, %v1944
          %v1949 = vadd.f32 %v1945, %v1946
          %v1950 = vadd.f32 %v1949, %v1947
          %v1951 = vadd.f32 %v1950, %v1948
          %1952 = vadd.xlane.f32.xlu0 %v1951
          %v1953 = vpop.xlane.xlu0 %1952
          %v1954 = vmul.f32 %v1953, %v1939
          %v1955 = vadd.f32 %v1954, 1e-05
          %v1956 = vrsqrt.pop %v1955
          %v1957 = vmul.f32 %v1941, %v1956
          %v1958 = vmul.f32 %v1942, %v1956
          %v1959 = vmul.f32 %v1943, %v1956
          %v1960 = vmul.f32 %v1944, %v1956
          %v1961 = vld [vmem:[%s9] sm:$0xf]
          %v1962 = vunpack.c.l.bf16 %v1961
          %v1964 = vlaneseq
          %v1965 = vshrl.u32 %v1964, 7
          %v1966 = vsub.s32 0, %v1965
          %v1967 = vrot.slane %v1962, %v1966
          %v1968 = vlaneseq
          %v1969 = vshrl.u32 %v1968, 7
          %v1970 = vsub.s32 2, %v1969
          %v1971 = vrot.slane %v1962, %v1970
          %v1972 = vlaneseq
          %v1973 = vshrl.u32 %v1972, 7
          %v1974 = vsub.s32 4, %v1973
          %v1975 = vrot.slane %v1962, %v1974
          %v1976 = vlaneseq
          %v1977 = vshrl.u32 %v1976, 7
          %v1978 = vsub.s32 6, %v1977
          %v1979 = vrot.slane %v1962, %v1978
          %v1984 = vlaneseq
          %v1985 = vshrl.u32 %v1984, 7
          %v1986 = vsub.s32 0, %v1985
          %v1987 = vrot.slane %v1967, %v1986
          %v1988 = vlaneseq
          %v1989 = vshrl.u32 %v1988, 7
          %v1990 = vsub.s32 0, %v1989
          %v1991 = vrot.slane %v1971, %v1990
          %v1992 = vlaneseq
          %v1993 = vshrl.u32 %v1992, 7
          %v1994 = vsub.s32 0, %v1993
          %v1995 = vrot.slane %v1975, %v1994
          %v1996 = vlaneseq
          %v1997 = vshrl.u32 %v1996, 7
          %v1998 = vsub.s32 0, %v1997
          %v1999 = vrot.slane %v1979, %v1998
          %v2000 = vmul.f32 %v1957, %v1987
          %v2001 = vmul.f32 %v1958, %v1991
          %v2002 = vmul.f32 %v1959, %v1995
          %v2003 = vmul.f32 %v1960, %v1999
          %v2004 = vld [vmem:[%s10] sm:$0xf]
          %v2005 = vunpack.c.l.bf16 %v2004
          %v2007 = vlaneseq
          %v2008 = vshrl.u32 %v2007, 7
          %v2009 = vsub.s32 0, %v2008
          %v2010 = vrot.slane %v2005, %v2009
          %v2011 = vlaneseq
          %v2012 = vshrl.u32 %v2011, 7
          %v2013 = vsub.s32 2, %v2012
          %v2014 = vrot.slane %v2005, %v2013
          %v2015 = vlaneseq
          %v2016 = vshrl.u32 %v2015, 7
          %v2017 = vsub.s32 4, %v2016
          %v2018 = vrot.slane %v2005, %v2017
          %v2019 = vlaneseq
          %v2020 = vshrl.u32 %v2019, 7
          %v2021 = vsub.s32 6, %v2020
          %v2022 = vrot.slane %v2005, %v2021
          %v2027 = vlaneseq
          %v2028 = vshrl.u32 %v2027, 7
          %v2029 = vsub.s32 0, %v2028
          %v2030 = vrot.slane %v2010, %v2029
          %v2031 = vlaneseq
          %v2032 = vshrl.u32 %v2031, 7
          %v2033 = vsub.s32 0, %v2032
          %v2034 = vrot.slane %v2014, %v2033
          %v2035 = vlaneseq
          %v2036 = vshrl.u32 %v2035, 7
          %v2037 = vsub.s32 0, %v2036
          %v2038 = vrot.slane %v2018, %v2037
          %v2039 = vlaneseq
          %v2040 = vshrl.u32 %v2039, 7
          %v2041 = vsub.s32 0, %v2040
          %v2042 = vrot.slane %v2022, %v2041
          %v2043 = vadd.f32 %v2000, %v2030
          %v2044 = vadd.f32 %v2001, %v2034
          %v2045 = vadd.f32 %v2002, %v2038
          %v2046 = vadd.f32 %v2003, %v2042
          %v2047 = vpack.c.bf16 %v2043, %v2043
          %v2048 = vpack.c.bf16 %v2044, %v2044
          %v2049 = vpack.c.bf16 %v2045, %v2045
          %v2050 = vpack.c.bf16 %v2046, %v2046
          %v2055 = vunpack.c.l.b16 %v2047
          %v2056 = vunpack.c.l.b16 %v2048
          %v2057 = vunpack.c.l.b16 %v2049
          %v2058 = vunpack.c.l.b16 %v2050
          %v2059 = vpack.c.b16 %v2056, %v2055
          %v2060 = vpack.c.b16 %v2058, %v2057
          %2063 = vst [vmem:[%s484] sm:$0xff] %v2059
          %2064 = vst [vmem:[%s484 + $0x8] sm:$0xff] %v2060
        $region72: #{tpu_custom_call.1} parent=63 // pred_fallthru
          _
        %s2065 = sand.u32 %s316, 1
        %s2066 = scalar_lea.sflag [#allocation4], %s2065
        %s2067 = sand.u32 %s316, 1
        %s2068 = smul.addr %s2067, 16
        %s2069 = scalar_lea.vmem [#allocation3], %s2068
        // Predicated region
        $region73: #{tpu_custom_call.1} parent=63 // pred_check
          %p2070 = pneg %p326
        $region74: #{tpu_custom_call.1} parent=63 // pred_check_branch
          %2072 = sbr.rel (%p2070) target = $region76
        $region75: #{tpu_custom_call.1} parent=63 // pred_region
          %s2074 = ssub.s32 256, 256
          %2075 = vsyncadd %s2066, %s2074
          %s2076 = smul.addr %s29, 4
          %s2077 = smul.addr %s2076, 64
          %s2078 = scalar_lea.hbm %s11, %s2077
          %s2080 = sshll.u32 %s2069, 4
          %s2081 = int_to_ptr.vmem [resolvable:$true] %s2080
          %2083 = dma.vmem_to_hbm [thread:$0]  %s2081, 256, %s2078, %s2066
        $region76: #{tpu_custom_call.1} parent=63 // pred_fallthru
          _
      $region64: #{tpu_custom_call.1} parent=5 // pred_fallthru
        _
      %p2084 = scmp.le.s32.totalorder 2, %s20
      // Predicated region
      $region77: #{tpu_custom_call.1} parent=5 // pred_check
        %p2085 = pneg %p2084
      $region78: #{tpu_custom_call.1} parent=5 // pred_check_branch
        %2087 = sbr.rel (%p2085) target = $region80
      $region79: #{tpu_custom_call.1} parent=5 // pred_region
        %s2088 = ssub.s32 %s20, 2
        // Predicated region
        $region81: #{tpu_custom_call.1} parent=79 // pred_check
          %p2089 = pneg %p332
        $region82: #{tpu_custom_call.1} parent=79 // pred_check_branch
          %2091 = sbr.rel (%p2089) target = $region84
        $region83: #{tpu_custom_call.1} parent=79 // pred_region
          %s2092 = sand.u32 %s317, 1
          %s2093 = scalar_lea.sflag [#allocation4], %s2092
          %s2094 = sand.u32 %s317, 1
          %s2095 = smul.addr %s2094, 16
          %s2096 = scalar_lea.vmem [#allocation3], %s2095
          %2097 = dma.done %s2093, 256
        $region84: #{tpu_custom_call.1} parent=79 // pred_fallthru
          _
      $region80: #{tpu_custom_call.1} parent=5 // pred_fallthru
        _
    $region6: #{tpu_custom_call.1} parent=1 // loop_footer
      %s24 = sadd.s32 1, %s20
    $region7: #{tpu_custom_call.1} parent=1 // loop_footer_branch
      %19 = sbr.rel target = $region3
    $region8: #{tpu_custom_call.1} parent=1 // loop_exit
      _
    %2098 = vsyncpa [#allocation4], 1
    %s2099 = scalar_lea.sflag [#allocation4], 1
    %2100 = vsyncpa %s2099, 1

</llo_original>
